<compile_context>
chip_gen: v6e
topology: v6e:2x2x1
jax: 0.10.0
libtpu: 0.0.40
codegen_flags: <defaults>
</compile_context>

<pallas_src>
import functools
from typing import NamedTuple

import jax
import jax.numpy as jnp
from jax.experimental import pallas as pl
from jax.experimental.pallas import tpu as pltpu

EPS = 1e-5
LANE = 128                        # pad channel (lane) dims to a multiple of this
MXU_DTYPE = jnp.bfloat16          # matmul operand dtype (accumulation is f32)


def _round_up(x, n):
    return (x + n - 1) // n * n


class _Cfg(NamedTuple):
    n: int        # batch
    ho: int       # output height
    wo: int       # output width
    stride: int   # conv1 / shortcut stride
    cin: int      # input channels (unpadded)


# ------------------------------ Pallas kernels ------------------------------ #

def _bn_train(y, gamma, beta, m):
    """Training-mode BatchNorm over axis 0, two-pass (numerically stable)."""
    inv_m = 1.0 / m
    mean = jnp.sum(y, axis=0, keepdims=True) * inv_m
    d = y - mean
    var = jnp.sum(d * d, axis=0, keepdims=True) * inv_m
    return gamma * d * jax.lax.rsqrt(var + EPS) + beta


def _fused_body(x_ref, w1_ref, w2_ref, prm_ref, shortcut_fn, o_ref, y1_ref, *, cfg):
    n, ho, wo, s, cin = cfg
    m = n * ho * wo
    cp = o_ref.shape[-1]                  # lane-padded channel count
    hp, wp = ho + 2, wo + 2

    prm = prm_ref[...]                    # (8, cp) f32: b1,g1,be1,b2,g2,be2,b3,0
    xv = x_ref[...]                       # (s*s*n, hq, wq, cin) bf16 polyphase input

    def x_tap(di, dj):
        # 3x3 tap (di, dj) of the stride-s conv over the padded input: a plain
        # static slice of one polyphase component (no strided access needed).
        p = (di % s) * s + (dj % s)
        oi, oj = di // s, dj // s
        return xv[p * n:(p + 1) * n, oi:oi + ho, oj:oj + wo, :].reshape(m, cin)

    # ---- conv1: nine in-kernel taps, bf16 MXU, f32 accumulation ----
    acc = None
    for t in range(9):
        di, dj = divmod(t, 3)
        d = jnp.dot(x_tap(di, dj), w1_ref[t], preferred_element_type=jnp.float32)
        acc = d if acc is None else acc + d
    y1 = jnp.maximum(_bn_train(acc + prm[0:1], prm[1:2], prm[2:3], m), 0.0)

    # ---- stage y1 (bf16) in the spatially padded VMEM scratch ----
    # Only the 1-pixel halo border is zeroed; the interior is overwritten.
    zrow = jnp.zeros((n, 1, wp, cp), y1_ref.dtype)
    zcol = jnp.zeros((n, hp, 1, cp), y1_ref.dtype)
    y1_ref[:, 0:1, :, :] = zrow
    y1_ref[:, hp - 1:hp, :, :] = zrow
    y1_ref[:, :, 0:1, :] = zcol
    y1_ref[:, :, wp - 1:wp, :] = zcol
    y1_ref[:, 1:1 + ho, 1:1 + wo, :] = (
        y1.astype(y1_ref.dtype).reshape(n, ho, wo, cp))

    # ---- conv2: nine taps of the resident bf16 scratch (no per-tap casts) ----
    acc2 = None
    for t in range(9):
        di, dj = divmod(t, 3)
        tap = y1_ref[:, di:di + ho, dj:dj + wo, :].reshape(m, cp)
        d = jnp.dot(tap, w2_ref[t], preferred_element_type=jnp.float32)
        acc2 = d if acc2 is None else acc2 + d

    # ---- bn2 -> residual add -> relu (lane-dense f32 store) ----
    y2 = _bn_train(acc2 + prm[3:4], prm[4:5], prm[5:6], m)
    o_ref[...] = jnp.maximum(y2 + shortcut_fn(x_tap), 0.0)


def _resblock_proj_kernel(cfg, x_ref, w1_ref, w2_ref, w3_ref, prm_ref,
                          o_ref, y1_ref):
    # 1x1-conv projection shortcut == the centre tap of conv1's input window.
    def shortcut(x_tap):
        return (jnp.dot(x_tap(1, 1), w3_ref[...],
                        preferred_element_type=jnp.float32) + prm_ref[6:7, :])
    _fused_body(x_ref, w1_ref, w2_ref, prm_ref, shortcut, o_ref, y1_ref, cfg=cfg)


def _resblock_id_kernel(cfg, x_ref, xs_ref, w1_ref, w2_ref, prm_ref,
                        o_ref, y1_ref):
    # Identity shortcut (kept in f32 to avoid quantizing the residual path).
    _fused_body(x_ref, w1_ref, w2_ref, prm_ref, lambda _: xs_ref[...],
                o_ref, y1_ref, cfg=cfg)


# --------------------------- hoisted weight packing -------------------------- #

def pack_params(params, use_1x1conv):
    """Done ONCE (outside the per-forward path): transpose/reshape/pad/cast."""
    cout = params["w1"].shape[0]
    cp = _round_up(cout, LANE)

    # conv weights -> per-tap (9, K, cp), output channels padded to lane width.
    def conv_w(w):                                        # (cout, K, 3, 3)
        co, ci, kh, kw = w.shape
        wt = jnp.transpose(w, (2, 3, 1, 0)).reshape(kh * kw, ci, co)
        return jnp.pad(wt, ((0, 0), (0, 0), (0, cp - co))).astype(MXU_DTYPE)

    w1 = conv_w(params["w1"])                             # (9, cin,  cp)
    w2 = conv_w(params["w2"])                             # (9, cout, cp)
    # conv2's contraction dim is the padded y1 channel dim -> pad rows too.
    w2 = jnp.pad(w2, ((0, 0), (0, cp - cout), (0, 0)))    # (9, cp, cp)

    pad1 = lambda v: jnp.pad(v.astype(jnp.float32), (0, cp - cout))
    rows = [pad1(params["b1"]), pad1(params["gamma1"]), pad1(params["beta1"]),
            pad1(params["b2"]), pad1(params["gamma2"]), pad1(params["beta2"])]
    rows.append(pad1(params["b3"]) if use_1x1conv
                else jnp.zeros((cp,), jnp.float32))
    rows.append(jnp.zeros((cp,), jnp.float32))
    prm = jnp.stack(rows, axis=0)                         # (8, cp)

    packed = {"w1": w1, "w2": w2, "prm": prm}
    if use_1x1conv:
        w3 = jnp.transpose(params["w3"][:, :, 0, 0])      # (cin, cout)
        packed["w3"] = jnp.pad(w3, ((0, 0), (0, cp - cout))).astype(MXU_DTYPE)
    return packed


# ------------------------------- JAX-side glue ------------------------------- #

def _polyphase(x_nhwc, k, stride, pad):
    """Zero-pad spatially and split into stride*stride polyphase components.

    Returns xph of shape (s*s*n, hq, wq, c) such that conv tap (di, dj) of the
    padded input equals xph[p*n:(p+1)*n, oi:oi+ho, oj:oj+wo, :] with
    p = (di % s)*s + (dj % s), oi = di // s, oj = dj // s.  Total bytes == the
    padded input (no im2col blow-up).
    """
    n, h, w, c = x_nhwc.shape
    s = stride
    ho = (h + 2 * pad - k) // s + 1
    wo = (w + 2 * pad - k) // s + 1
    hq = max(-(-(h + 2 * pad) // s), (k - 1) // s + ho)
    wq = max(-(-(w + 2 * pad) // s), (k - 1) // s + wo)
    xp = jnp.pad(x_nhwc, ((0, 0), (pad, s * hq - h - pad),
                          (pad, s * wq - w - pad), (0, 0)))
    xp = xp.reshape(n, hq, s, wq, s, c)
    xp = jnp.transpose(xp, (2, 4, 0, 1, 3, 5)).reshape(s * s * n, hq, wq, c)
    return xp, (ho, wo)


def _full_spec(a):
    nd = a.ndim
    return pl.BlockSpec(a.shape, lambda i, _nd=nd: (0,) * _nd)


def residual_block_forward(x_nchw, packed, use_1x1conv, strides, num_channels):
    x = jnp.transpose(x_nchw, (0, 2, 3, 1)).astype(jnp.float32)       # NHWC
    n, h, w, cin = x.shape
    cout = num_channels
    cp = packed["prm"].shape[1]

    xph, (ho, wo) = _polyphase(x, 3, strides, 1)
    xph = xph.astype(MXU_DTYPE)
    m = n * ho * wo
    cfg = _Cfg(n=n, ho=ho, wo=wo, stride=strides, cin=cin)

    if use_1x1conv:
        kernel = functools.partial(_resblock_proj_kernel, cfg)
        inputs = [xph, packed["w1"], packed["w2"], packed["w3"], packed["prm"]]
    else:
        if strides != 1 or cin != cout:
            raise ValueError("identity shortcut requires strides == 1 and "
                             "input_channels == num_channels")
        xs = jnp.pad(x.reshape(m, cin), ((0, 0), (0, cp - cin)))       # f32
        kernel = functools.partial(_resblock_id_kernel, cfg)
        inputs = [xph, xs, packed["w1"], packed["w2"], packed["prm"]]

    out = pl.pallas_call(
        kernel,
        grid=(1,),
        in_specs=[_full_spec(a) for a in inputs],
        out_specs=pl.BlockSpec((m, cp), lambda i: (0, 0)),
        out_shape=jax.ShapeDtypeStruct((m, cp), jnp.float32),
        scratch_shapes=[pltpu.VMEM((n, ho + 2, wo + 2, cp), MXU_DTYPE)],
        compiler_params=pltpu.CompilerParams(
            dimension_semantics=("arbitrary",),
            # Re-derive when M-tiling lands (v7x has 64 MiB physical VMEM).
            vmem_limit_bytes=32 * 1024 * 1024),
    )(*inputs)

    out = out[:, :cout].reshape(n, ho, wo, cout)
    return jnp.transpose(out, (0, 3, 1, 2))                           # NCHW


# ----------------------------- pure-JAX reference ---------------------------- #

def ref_forward(x_nchw, params, use_1x1conv, strides, conv_dtype=jnp.float32):
    x = x_nchw.astype(jnp.float32)

    def conv(v, w, b, stride, pad):
        y = jax.lax.conv_general_dilated(
            v.astype(conv_dtype), w.astype(conv_dtype),
            window_strides=(stride, stride),
            padding=((pad, pad), (pad, pad)),
            dimension_numbers=("NCHW", "OIHW", "NCHW"),
            preferred_element_type=jnp.float32)
        return y + b.reshape(1, -1, 1, 1)

    def bn(y, g, b):
        mean = y.mean(axis=(0, 2, 3), keepdims=True)
        var = ((y - mean) ** 2).mean(axis=(0, 2, 3), keepdims=True)
        return (g.reshape(1, -1, 1, 1) * (y - mean) * jax.lax.rsqrt(var + EPS)
                + b.reshape(1, -1, 1, 1))

    y = jax.nn.relu(bn(conv(x, params["w1"], params["b1"], strides, 1),
                       params["gamma1"], params["beta1"]))
    y = bn(conv(y, params["w2"], params["b2"], 1, 1),
           params["gamma2"], params["beta2"])
    sc = conv(x, params["w3"], params["b3"], strides, 0) if use_1x1conv else x
    return jax.nn.relu(y + sc)


# ------------------------------------ main ----------------------------------- #

def _make_params(key, cin, cout, use_1x1conv):
    ks = jax.random.split(key, 6)
    params = {
        "w1": 0.1 * jax.random.normal(ks[0], (cout, cin, 3, 3), jnp.float32),
        "b1": 0.05 * jax.random.normal(ks[1], (cout,), jnp.float32),
        "w2": 0.1 * jax.random.normal(ks[2], (cout, cout, 3, 3), jnp.float32),
        "b2": 0.05 * jax.random.normal(ks[3], (cout,), jnp.float32),
        "gamma1": jnp.ones((cout,), jnp.float32),
        "beta1": jnp.zeros((cout,), jnp.float32),
        "gamma2": jnp.ones((cout,), jnp.float32),
        "beta2": jnp.zeros((cout,), jnp.float32),
    }
    if use_1x1conv:
        params["w3"] = 0.1 * jax.random.normal(ks[4], (cout, cin, 1, 1), jnp.float32)
        params["b3"] = 0.05 * jax.random.normal(ks[5], (cout,), jnp.float32)
    return params


if __name__ == "__main__":
    fwd = jax.jit(residual_block_forward, static_argnums=(2, 3, 4))
    key = jax.random.PRNGKey(0)
    k = jax.random.split(key, 4)

    # --- Case 1: Residual_Block(3, 6, use_1x1conv=True, strides=2) ---
    cin, cout, strides, use_1x1 = 3, 6, 2, True
    params = _make_params(k[0], cin, cout, use_1x1)
    x = jax.random.normal(k[1], (2, cin, 16, 16), jnp.float32)            # NCHW
    out = jax.block_until_ready(
        fwd(x, pack_params(params, use_1x1), use_1x1, strides, cout))
    assert out.shape == (2, cout, 8, 8)
    # tight check vs a reference using the same bf16 matmul operands
    ref_mx = ref_forward(x, params, use_1x1, strides, conv_dtype=MXU_DTYPE)
    assert float(jnp.max(jnp.abs(out - ref_mx))) < 1e-2
    # loose check vs the pure-f32 reference (bf16 MXU inputs => ~1% deviation)
    ref32 = ref_forward(x, params, use_1x1, strides, conv_dtype=jnp.float32)
    assert float(jnp.max(jnp.abs(out - ref32))) < 1e-1

    # --- Case 2: identity shortcut (use_1x1conv=False, strides=1, cin==cout) ---
    cin2, cout2, strides2, use_1x12 = 6, 6, 1, False
    params2 = _make_params(k[2], cin2, cout2, use_1x12)
    x2 = jax.random.normal(k[3], (2, cin2, 8, 8), jnp.float32)
    out2 = jax.block_until_ready(
        fwd(x2, pack_params(params2, use_1x12), use_1x12, strides2, cout2))
    assert out2.shape == (2, cout2, 8, 8)
    ref2_mx = ref_forward(x2, params2, use_1x12, strides2, conv_dtype=MXU_DTYPE)
    assert float(jnp.max(jnp.abs(out2 - ref2_mx))) < 1e-2
    ref2_32 = ref_forward(x2, params2, use_1x12, strides2, conv_dtype=jnp.float32)
    assert float(jnp.max(jnp.abs(out2 - ref2_32))) < 1e-1

    print("KERNEL_OK")
</pallas_src>

<mosaic_0001>
module attributes {stable_mosaic.version = 11 : i64} {
  func.func @_resblock_proj_kernel(%arg0: i32, %arg1: memref<8x9x9x3xbf16, #tpu.memory_space<vmem>>, %arg2: memref<9x3x128xbf16, #tpu.memory_space<vmem>>, %arg3: memref<9x128x128xbf16, #tpu.memory_space<vmem>>, %arg4: memref<3x128xbf16, #tpu.memory_space<vmem>>, %arg5: memref<8x128xf32, #tpu.memory_space<vmem>>, %arg6: memref<128x128xf32, #tpu.memory_space<vmem>>, %arg7: memref<2x10x10x128xbf16, #tpu.memory_space<vmem>>) attributes {dimension_semantics = [#tpu.dimension_semantics<arbitrary>], iteration_bounds = array<i64: 1>, scalar_prefetch = 0 : i64, scratch_operands = 1 : i64, tpu.core_type = #tpu.core_type<tc>, window_params = [{pipeline_mode = #tpu.pipeline_mode<synchronous>, transform_indices = @transform_0, window_bounds = array<i64: 8, 9, 9, 3>}, {pipeline_mode = #tpu.pipeline_mode<synchronous>, transform_indices = @transform_1, window_bounds = array<i64: 9, 3, 128>}, {pipeline_mode = #tpu.pipeline_mode<synchronous>, transform_indices = @transform_2, window_bounds = array<i64: 9, 128, 128>}, {pipeline_mode = #tpu.pipeline_mode<synchronous>, transform_indices = @transform_3, window_bounds = array<i64: 3, 128>}, {pipeline_mode = #tpu.pipeline_mode<synchronous>, transform_indices = @transform_4, window_bounds = array<i64: 8, 128>}, {pipeline_mode = #tpu.pipeline_mode<synchronous>, transform_indices = @transform_5, window_bounds = array<i64: 128, 128>}]} {
    %c0 = arith.constant 0 : index
    %c0_0 = arith.constant 0 : index
    %0 = vector.load %arg5[%c0, %c0_0] : memref<8x128xf32, #tpu.memory_space<vmem>>, vector<8x128xf32>
    %c0_1 = arith.constant 0 : index
    %c0_2 = arith.constant 0 : index
    %c0_3 = arith.constant 0 : index
    %c0_4 = arith.constant 0 : index
    %1 = vector.load %arg1[%c0_1, %c0_2, %c0_3, %c0_4] : memref<8x9x9x3xbf16, #tpu.memory_space<vmem>>, vector<8x9x9x3xbf16>
    %2 = vector.extract_strided_slice %1 {offsets = [0, 0, 0, 0], sizes = [2, 8, 8, 3], strides = [1, 1, 1, 1]} : vector<8x9x9x3xbf16> to vector<2x8x8x3xbf16>
    %3 = vector.shape_cast %2 : vector<2x8x8x3xbf16> to vector<128x3xbf16>
    %c0_5 = arith.constant 0 : index
    %c0_6 = arith.constant 0 : index
    %c0_7 = arith.constant 0 : index
    %4 = vector.load %arg2[%c0_5, %c0_6, %c0_7] : memref<9x3x128xbf16, #tpu.memory_space<vmem>>, vector<1x3x128xbf16>
    %5 = vector.shape_cast %4 : vector<1x3x128xbf16> to vector<3x128xbf16>
    %cst = arith.constant dense<0.000000e+00> : vector<128x128xf32>
    %6 = tpu.matmul %3, %5, %cst {dimension_numbers = #tpu.dot_dimension_numbers<[1], [0], [0], [1], [0, 0, 1, 1], [], []>} : vector<128x3xbf16>, vector<3x128xbf16>, vector<128x128xf32> -> vector<128x128xf32>
    %7 = vector.extract_strided_slice %1 {offsets = [2, 0, 0, 0], sizes = [2, 8, 8, 3], strides = [1, 1, 1, 1]} : vector<8x9x9x3xbf16> to vector<2x8x8x3xbf16>
    %8 = vector.shape_cast %7 : vector<2x8x8x3xbf16> to vector<128x3xbf16>
    %c1 = arith.constant 1 : index
    %c0_8 = arith.constant 0 : index
    %c0_9 = arith.constant 0 : index
    %9 = vector.load %arg2[%c1, %c0_8, %c0_9] : memref<9x3x128xbf16, #tpu.memory_space<vmem>>, vector<1x3x128xbf16>
    %10 = vector.shape_cast %9 : vector<1x3x128xbf16> to vector<3x128xbf16>
    %cst_10 = arith.constant dense<0.000000e+00> : vector<128x128xf32>
    %11 = tpu.matmul %8, %10, %cst_10 {dimension_numbers = #tpu.dot_dimension_numbers<[1], [0], [0], [1], [0, 0, 1, 1], [], []>} : vector<128x3xbf16>, vector<3x128xbf16>, vector<128x128xf32> -> vector<128x128xf32>
    %12 = arith.addf %6, %11 : vector<128x128xf32>
    %13 = vector.extract_strided_slice %1 {offsets = [0, 0, 1, 0], sizes = [2, 8, 8, 3], strides = [1, 1, 1, 1]} : vector<8x9x9x3xbf16> to vector<2x8x8x3xbf16>
    %14 = vector.shape_cast %13 : vector<2x8x8x3xbf16> to vector<128x3xbf16>
    %c2 = arith.constant 2 : index
    %c0_11 = arith.constant 0 : index
    %c0_12 = arith.constant 0 : index
    %15 = vector.load %arg2[%c2, %c0_11, %c0_12] : memref<9x3x128xbf16, #tpu.memory_space<vmem>>, vector<1x3x128xbf16>
    %16 = vector.shape_cast %15 : vector<1x3x128xbf16> to vector<3x128xbf16>
    %cst_13 = arith.constant dense<0.000000e+00> : vector<128x128xf32>
    %17 = tpu.matmul %14, %16, %cst_13 {dimension_numbers = #tpu.dot_dimension_numbers<[1], [0], [0], [1], [0, 0, 1, 1], [], []>} : vector<128x3xbf16>, vector<3x128xbf16>, vector<128x128xf32> -> vector<128x128xf32>
    %18 = arith.addf %12, %17 : vector<128x128xf32>
    %19 = vector.extract_strided_slice %1 {offsets = [4, 0, 0, 0], sizes = [2, 8, 8, 3], strides = [1, 1, 1, 1]} : vector<8x9x9x3xbf16> to vector<2x8x8x3xbf16>
    %20 = vector.shape_cast %19 : vector<2x8x8x3xbf16> to vector<128x3xbf16>
    %c3 = arith.constant 3 : index
    %c0_14 = arith.constant 0 : index
    %c0_15 = arith.constant 0 : index
    %21 = vector.load %arg2[%c3, %c0_14, %c0_15] : memref<9x3x128xbf16, #tpu.memory_space<vmem>>, vector<1x3x128xbf16>
    %22 = vector.shape_cast %21 : vector<1x3x128xbf16> to vector<3x128xbf16>
    %cst_16 = arith.constant dense<0.000000e+00> : vector<128x128xf32>
    %23 = tpu.matmul %20, %22, %cst_16 {dimension_numbers = #tpu.dot_dimension_numbers<[1], [0], [0], [1], [0, 0, 1, 1], [], []>} : vector<128x3xbf16>, vector<3x128xbf16>, vector<128x128xf32> -> vector<128x128xf32>
    %24 = arith.addf %18, %23 : vector<128x128xf32>
    %25 = vector.extract_strided_slice %1 {offsets = [6, 0, 0, 0], sizes = [2, 8, 8, 3], strides = [1, 1, 1, 1]} : vector<8x9x9x3xbf16> to vector<2x8x8x3xbf16>
    %26 = vector.shape_cast %25 : vector<2x8x8x3xbf16> to vector<128x3xbf16>
    %c4 = arith.constant 4 : index
    %c0_17 = arith.constant 0 : index
    %c0_18 = arith.constant 0 : index
    %27 = vector.load %arg2[%c4, %c0_17, %c0_18] : memref<9x3x128xbf16, #tpu.memory_space<vmem>>, vector<1x3x128xbf16>
    %28 = vector.shape_cast %27 : vector<1x3x128xbf16> to vector<3x128xbf16>
    %cst_19 = arith.constant dense<0.000000e+00> : vector<128x128xf32>
    %29 = tpu.matmul %26, %28, %cst_19 {dimension_numbers = #tpu.dot_dimension_numbers<[1], [0], [0], [1], [0, 0, 1, 1], [], []>} : vector<128x3xbf16>, vector<3x128xbf16>, vector<128x128xf32> -> vector<128x128xf32>
    %30 = arith.addf %24, %29 : vector<128x128xf32>
    %31 = vector.extract_strided_slice %1 {offsets = [4, 0, 1, 0], sizes = [2, 8, 8, 3], strides = [1, 1, 1, 1]} : vector<8x9x9x3xbf16> to vector<2x8x8x3xbf16>
    %32 = vector.shape_cast %31 : vector<2x8x8x3xbf16> to vector<128x3xbf16>
    %c5 = arith.constant 5 : index
    %c0_20 = arith.constant 0 : index
    %c0_21 = arith.constant 0 : index
    %33 = vector.load %arg2[%c5, %c0_20, %c0_21] : memref<9x3x128xbf16, #tpu.memory_space<vmem>>, vector<1x3x128xbf16>
    %34 = vector.shape_cast %33 : vector<1x3x128xbf16> to vector<3x128xbf16>
    %cst_22 = arith.constant dense<0.000000e+00> : vector<128x128xf32>
    %35 = tpu.matmul %32, %34, %cst_22 {dimension_numbers = #tpu.dot_dimension_numbers<[1], [0], [0], [1], [0, 0, 1, 1], [], []>} : vector<128x3xbf16>, vector<3x128xbf16>, vector<128x128xf32> -> vector<128x128xf32>
    %36 = arith.addf %30, %35 : vector<128x128xf32>
    %37 = vector.extract_strided_slice %1 {offsets = [0, 1, 0, 0], sizes = [2, 8, 8, 3], strides = [1, 1, 1, 1]} : vector<8x9x9x3xbf16> to vector<2x8x8x3xbf16>
    %38 = vector.shape_cast %37 : vector<2x8x8x3xbf16> to vector<128x3xbf16>
    %c6 = arith.constant 6 : index
    %c0_23 = arith.constant 0 : index
    %c0_24 = arith.constant 0 : index
    %39 = vector.load %arg2[%c6, %c0_23, %c0_24] : memref<9x3x128xbf16, #tpu.memory_space<vmem>>, vector<1x3x128xbf16>
    %40 = vector.shape_cast %39 : vector<1x3x128xbf16> to vector<3x128xbf16>
    %cst_25 = arith.constant dense<0.000000e+00> : vector<128x128xf32>
    %41 = tpu.matmul %38, %40, %cst_25 {dimension_numbers = #tpu.dot_dimension_numbers<[1], [0], [0], [1], [0, 0, 1, 1], [], []>} : vector<128x3xbf16>, vector<3x128xbf16>, vector<128x128xf32> -> vector<128x128xf32>
    %42 = arith.addf %36, %41 : vector<128x128xf32>
    %43 = vector.extract_strided_slice %1 {offsets = [2, 1, 0, 0], sizes = [2, 8, 8, 3], strides = [1, 1, 1, 1]} : vector<8x9x9x3xbf16> to vector<2x8x8x3xbf16>
    %44 = vector.shape_cast %43 : vector<2x8x8x3xbf16> to vector<128x3xbf16>
    %c7 = arith.constant 7 : index
    %c0_26 = arith.constant 0 : index
    %c0_27 = arith.constant 0 : index
    %45 = vector.load %arg2[%c7, %c0_26, %c0_27] : memref<9x3x128xbf16, #tpu.memory_space<vmem>>, vector<1x3x128xbf16>
    %46 = vector.shape_cast %45 : vector<1x3x128xbf16> to vector<3x128xbf16>
    %cst_28 = arith.constant dense<0.000000e+00> : vector<128x128xf32>
    %47 = tpu.matmul %44, %46, %cst_28 {dimension_numbers = #tpu.dot_dimension_numbers<[1], [0], [0], [1], [0, 0, 1, 1], [], []>} : vector<128x3xbf16>, vector<3x128xbf16>, vector<128x128xf32> -> vector<128x128xf32>
    %48 = arith.addf %42, %47 : vector<128x128xf32>
    %49 = vector.extract_strided_slice %1 {offsets = [0, 1, 1, 0], sizes = [2, 8, 8, 3], strides = [1, 1, 1, 1]} : vector<8x9x9x3xbf16> to vector<2x8x8x3xbf16>
    %50 = vector.shape_cast %49 : vector<2x8x8x3xbf16> to vector<128x3xbf16>
    %c8 = arith.constant 8 : index
    %c0_29 = arith.constant 0 : index
    %c0_30 = arith.constant 0 : index
    %51 = vector.load %arg2[%c8, %c0_29, %c0_30] : memref<9x3x128xbf16, #tpu.memory_space<vmem>>, vector<1x3x128xbf16>
    %52 = vector.shape_cast %51 : vector<1x3x128xbf16> to vector<3x128xbf16>
    %cst_31 = arith.constant dense<0.000000e+00> : vector<128x128xf32>
    %53 = tpu.matmul %50, %52, %cst_31 {dimension_numbers = #tpu.dot_dimension_numbers<[1], [0], [0], [1], [0, 0, 1, 1], [], []>} : vector<128x3xbf16>, vector<3x128xbf16>, vector<128x128xf32> -> vector<128x128xf32>
    %54 = arith.addf %48, %53 : vector<128x128xf32>
    %55 = vector.extract_strided_slice %0 {offsets = [0, 0], sizes = [1, 128], strides = [1, 1]} : vector<8x128xf32> to vector<1x128xf32>
    %56 = vector.broadcast %55 : vector<1x128xf32> to vector<128x128xf32>
    %57 = arith.addf %54, %56 : vector<128x128xf32>
    %58 = vector.extract_strided_slice %0 {offsets = [1, 0], sizes = [1, 128], strides = [1, 1]} : vector<8x128xf32> to vector<1x128xf32>
    %59 = vector.extract_strided_slice %0 {offsets = [2, 0], sizes = [1, 128], strides = [1, 1]} : vector<8x128xf32> to vector<1x128xf32>
    %cst_32 = arith.constant dense<0.000000e+00> : vector<128xf32>
    %60 = vector.multi_reduction <add>, %57, %cst_32 [0] : vector<128x128xf32> to vector<128xf32>
    %61 = vector.shape_cast %60 : vector<128xf32> to vector<1x128xf32>
    %cst_33 = arith.constant 7.812500e-03 : f32
    %62 = vector.broadcast %cst_33 : f32 to vector<1x128xf32>
    %63 = arith.mulf %61, %62 : vector<1x128xf32>
    %64 = vector.broadcast %63 : vector<1x128xf32> to vector<128x128xf32>
    %65 = arith.subf %57, %64 : vector<128x128xf32>
    %66 = arith.mulf %65, %65 : vector<128x128xf32>
    %cst_34 = arith.constant dense<0.000000e+00> : vector<128xf32>
    %67 = vector.multi_reduction <add>, %66, %cst_34 [0] : vector<128x128xf32> to vector<128xf32>
    %68 = vector.shape_cast %67 : vector<128xf32> to vector<1x128xf32>
    %cst_35 = arith.constant 7.812500e-03 : f32
    %69 = vector.broadcast %cst_35 : f32 to vector<1x128xf32>
    %70 = arith.mulf %68, %69 : vector<1x128xf32>
    %71 = vector.broadcast %58 : vector<1x128xf32> to vector<128x128xf32>
    %72 = arith.mulf %71, %65 : vector<128x128xf32>
    %cst_36 = arith.constant 9.99999974E-6 : f32
    %73 = vector.broadcast %cst_36 : f32 to vector<1x128xf32>
    %74 = arith.addf %70, %73 : vector<1x128xf32>
    %75 = math.rsqrt %74 : vector<1x128xf32>
    %76 = vector.broadcast %75 : vector<1x128xf32> to vector<128x128xf32>
    %77 = arith.mulf %72, %76 : vector<128x128xf32>
    %78 = vector.broadcast %59 : vector<1x128xf32> to vector<128x128xf32>
    %79 = arith.addf %77, %78 : vector<128x128xf32>
    %cst_37 = arith.constant 0.000000e+00 : f32
    %80 = vector.broadcast %cst_37 : f32 to vector<128x128xf32>
    %81 = arith.maximumf %79, %80 : vector<128x128xf32>
    %cst_38 = arith.constant 0.000000e+00 : bf16
    %82 = vector.broadcast %cst_38 : bf16 to vector<2x1x10x128xbf16>
    %cst_39 = arith.constant 0.000000e+00 : bf16
    %83 = vector.broadcast %cst_39 : bf16 to vector<2x10x1x128xbf16>
    %c0_40 = arith.constant 0 : index
    %c0_41 = arith.constant 0 : index
    %c0_42 = arith.constant 0 : index
    %c0_43 = arith.constant 0 : index
    %84 = vector.load %arg7[%c0_40, %c0_41, %c0_42, %c0_43] : memref<2x10x10x128xbf16, #tpu.memory_space<vmem>>, vector<2x1x10x128xbf16>
    tpu.vector_store %arg7[%c0_40, %c0_41, %c0_42, %c0_43], %82 {strides = array<i32>} : memref<2x10x10x128xbf16, #tpu.memory_space<vmem>>, vector<2x1x10x128xbf16>,
    %c0_44 = arith.constant 0 : index
    %c9 = arith.constant 9 : index
    %c0_45 = arith.constant 0 : index
    %c0_46 = arith.constant 0 : index
    %85 = vector.load %arg7[%c0_44, %c9, %c0_45, %c0_46] : memref<2x10x10x128xbf16, #tpu.memory_space<vmem>>, vector<2x1x10x128xbf16>
    tpu.vector_store %arg7[%c0_44, %c9, %c0_45, %c0_46], %82 {strides = array<i32>} : memref<2x10x10x128xbf16, #tpu.memory_space<vmem>>, vector<2x1x10x128xbf16>,
    %c0_47 = arith.constant 0 : index
    %c0_48 = arith.constant 0 : index
    %c0_49 = arith.constant 0 : index
    %c0_50 = arith.constant 0 : index
    %86 = vector.load %arg7[%c0_47, %c0_48, %c0_49, %c0_50] : memref<2x10x10x128xbf16, #tpu.memory_space<vmem>>, vector<2x10x1x128xbf16>
    tpu.vector_store %arg7[%c0_47, %c0_48, %c0_49, %c0_50], %83 {strides = array<i32>} : memref<2x10x10x128xbf16, #tpu.memory_space<vmem>>, vector<2x10x1x128xbf16>,
    %c0_51 = arith.constant 0 : index
    %c0_52 = arith.constant 0 : index
    %c9_53 = arith.constant 9 : index
    %c0_54 = arith.constant 0 : index
    %87 = vector.load %arg7[%c0_51, %c0_52, %c9_53, %c0_54] : memref<2x10x10x128xbf16, #tpu.memory_space<vmem>>, vector<2x10x1x128xbf16>
    tpu.vector_store %arg7[%c0_51, %c0_52, %c9_53, %c0_54], %83 {strides = array<i32>} : memref<2x10x10x128xbf16, #tpu.memory_space<vmem>>, vector<2x10x1x128xbf16>,
    %88 = arith.truncf %81 : vector<128x128xf32> to vector<128x128xbf16>
    %89 = vector.shape_cast %88 : vector<128x128xbf16> to vector<2x8x8x128xbf16>
    %c0_55 = arith.constant 0 : index
    %c1_56 = arith.constant 1 : index
    %c1_57 = arith.constant 1 : index
    %c0_58 = arith.constant 0 : index
    %90 = vector.load %arg7[%c0_55, %c1_56, %c1_57, %c0_58] : memref<2x10x10x128xbf16, #tpu.memory_space<vmem>>, vector<2x8x8x128xbf16>
    tpu.vector_store %arg7[%c0_55, %c1_56, %c1_57, %c0_58], %89 {strides = array<i32>} : memref<2x10x10x128xbf16, #tpu.memory_space<vmem>>, vector<2x8x8x128xbf16>,
    %c0_59 = arith.constant 0 : index
    %c0_60 = arith.constant 0 : index
    %c0_61 = arith.constant 0 : index
    %c0_62 = arith.constant 0 : index
    %91 = vector.load %arg7[%c0_59, %c0_60, %c0_61, %c0_62] : memref<2x10x10x128xbf16, #tpu.memory_space<vmem>>, vector<2x8x8x128xbf16>
    %92 = vector.shape_cast %91 : vector<2x8x8x128xbf16> to vector<128x128xbf16>
    %c0_63 = arith.constant 0 : index
    %c0_64 = arith.constant 0 : index
    %c0_65 = arith.constant 0 : index
    %93 = vector.load %arg3[%c0_63, %c0_64, %c0_65] : memref<9x128x128xbf16, #tpu.memory_space<vmem>>, vector<1x128x128xbf16>
    %94 = vector.shape_cast %93 : vector<1x128x128xbf16> to vector<128x128xbf16>
    %cst_66 = arith.constant dense<0.000000e+00> : vector<128x128xf32>
    %95 = tpu.matmul %92, %94, %cst_66 {dimension_numbers = #tpu.dot_dimension_numbers<[1], [0], [0], [1], [0, 0, 1, 1], [], []>} : vector<128x128xbf16>, vector<128x128xbf16>, vector<128x128xf32> -> vector<128x128xf32>
    %c0_67 = arith.constant 0 : index
    %c0_68 = arith.constant 0 : index
    %c1_69 = arith.constant 1 : index
    %c0_70 = arith.constant 0 : index
    %96 = vector.load %arg7[%c0_67, %c0_68, %c1_69, %c0_70] : memref<2x10x10x128xbf16, #tpu.memory_space<vmem>>, vector<2x8x8x128xbf16>
    %97 = vector.shape_cast %96 : vector<2x8x8x128xbf16> to vector<128x128xbf16>
    %c1_71 = arith.constant 1 : index
    %c0_72 = arith.constant 0 : index
    %c0_73 = arith.constant 0 : index
    %98 = vector.load %arg3[%c1_71, %c0_72, %c0_73] : memref<9x128x128xbf16, #tpu.memory_space<vmem>>, vector<1x128x128xbf16>
    %99 = vector.shape_cast %98 : vector<1x128x128xbf16> to vector<128x128xbf16>
    %cst_74 = arith.constant dense<0.000000e+00> : vector<128x128xf32>
    %100 = tpu.matmul %97, %99, %cst_74 {dimension_numbers = #tpu.dot_dimension_numbers<[1], [0], [0], [1], [0, 0, 1, 1], [], []>} : vector<128x128xbf16>, vector<128x128xbf16>, vector<128x128xf32> -> vector<128x128xf32>
    %101 = arith.addf %95, %100 : vector<128x128xf32>
    %c0_75 = arith.constant 0 : index
    %c0_76 = arith.constant 0 : index
    %c2_77 = arith.constant 2 : index
    %c0_78 = arith.constant 0 : index
    %102 = vector.load %arg7[%c0_75, %c0_76, %c2_77, %c0_78] : memref<2x10x10x128xbf16, #tpu.memory_space<vmem>>, vector<2x8x8x128xbf16>
    %103 = vector.shape_cast %102 : vector<2x8x8x128xbf16> to vector<128x128xbf16>
    %c2_79 = arith.constant 2 : index
    %c0_80 = arith.constant 0 : index
    %c0_81 = arith.constant 0 : index
    %104 = vector.load %arg3[%c2_79, %c0_80, %c0_81] : memref<9x128x128xbf16, #tpu.memory_space<vmem>>, vector<1x128x128xbf16>
    %105 = vector.shape_cast %104 : vector<1x128x128xbf16> to vector<128x128xbf16>
    %cst_82 = arith.constant dense<0.000000e+00> : vector<128x128xf32>
    %106 = tpu.matmul %103, %105, %cst_82 {dimension_numbers = #tpu.dot_dimension_numbers<[1], [0], [0], [1], [0, 0, 1, 1], [], []>} : vector<128x128xbf16>, vector<128x128xbf16>, vector<128x128xf32> -> vector<128x128xf32>
    %107 = arith.addf %101, %106 : vector<128x128xf32>
    %c0_83 = arith.constant 0 : index
    %c1_84 = arith.constant 1 : index
    %c0_85 = arith.constant 0 : index
    %c0_86 = arith.constant 0 : index
    %108 = vector.load %arg7[%c0_83, %c1_84, %c0_85, %c0_86] : memref<2x10x10x128xbf16, #tpu.memory_space<vmem>>, vector<2x8x8x128xbf16>
    %109 = vector.shape_cast %108 : vector<2x8x8x128xbf16> to vector<128x128xbf16>
    %c3_87 = arith.constant 3 : index
    %c0_88 = arith.constant 0 : index
    %c0_89 = arith.constant 0 : index
    %110 = vector.load %arg3[%c3_87, %c0_88, %c0_89] : memref<9x128x128xbf16, #tpu.memory_space<vmem>>, vector<1x128x128xbf16>
    %111 = vector.shape_cast %110 : vector<1x128x128xbf16> to vector<128x128xbf16>
    %cst_90 = arith.constant dense<0.000000e+00> : vector<128x128xf32>
    %112 = tpu.matmul %109, %111, %cst_90 {dimension_numbers = #tpu.dot_dimension_numbers<[1], [0], [0], [1], [0, 0, 1, 1], [], []>} : vector<128x128xbf16>, vector<128x128xbf16>, vector<128x128xf32> -> vector<128x128xf32>
    %113 = arith.addf %107, %112 : vector<128x128xf32>
    %c0_91 = arith.constant 0 : index
    %c1_92 = arith.constant 1 : index
    %c1_93 = arith.constant 1 : index
    %c0_94 = arith.constant 0 : index
    %114 = vector.load %arg7[%c0_91, %c1_92, %c1_93, %c0_94] : memref<2x10x10x128xbf16, #tpu.memory_space<vmem>>, vector<2x8x8x128xbf16>
    %115 = vector.shape_cast %114 : vector<2x8x8x128xbf16> to vector<128x128xbf16>
    %c4_95 = arith.constant 4 : index
    %c0_96 = arith.constant 0 : index
    %c0_97 = arith.constant 0 : index
    %116 = vector.load %arg3[%c4_95, %c0_96, %c0_97] : memref<9x128x128xbf16, #tpu.memory_space<vmem>>, vector<1x128x128xbf16>
    %117 = vector.shape_cast %116 : vector<1x128x128xbf16> to vector<128x128xbf16>
    %cst_98 = arith.constant dense<0.000000e+00> : vector<128x128xf32>
    %118 = tpu.matmul %115, %117, %cst_98 {dimension_numbers = #tpu.dot_dimension_numbers<[1], [0], [0], [1], [0, 0, 1, 1], [], []>} : vector<128x128xbf16>, vector<128x128xbf16>, vector<128x128xf32> -> vector<128x128xf32>
    %119 = arith.addf %113, %118 : vector<128x128xf32>
    %c0_99 = arith.constant 0 : index
    %c1_100 = arith.constant 1 : index
    %c2_101 = arith.constant 2 : index
    %c0_102 = arith.constant 0 : index
    %120 = vector.load %arg7[%c0_99, %c1_100, %c2_101, %c0_102] : memref<2x10x10x128xbf16, #tpu.memory_space<vmem>>, vector<2x8x8x128xbf16>
    %121 = vector.shape_cast %120 : vector<2x8x8x128xbf16> to vector<128x128xbf16>
    %c5_103 = arith.constant 5 : index
    %c0_104 = arith.constant 0 : index
    %c0_105 = arith.constant 0 : index
    %122 = vector.load %arg3[%c5_103, %c0_104, %c0_105] : memref<9x128x128xbf16, #tpu.memory_space<vmem>>, vector<1x128x128xbf16>
    %123 = vector.shape_cast %122 : vector<1x128x128xbf16> to vector<128x128xbf16>
    %cst_106 = arith.constant dense<0.000000e+00> : vector<128x128xf32>
    %124 = tpu.matmul %121, %123, %cst_106 {dimension_numbers = #tpu.dot_dimension_numbers<[1], [0], [0], [1], [0, 0, 1, 1], [], []>} : vector<128x128xbf16>, vector<128x128xbf16>, vector<128x128xf32> -> vector<128x128xf32>
    %125 = arith.addf %119, %124 : vector<128x128xf32>
    %c0_107 = arith.constant 0 : index
    %c2_108 = arith.constant 2 : index
    %c0_109 = arith.constant 0 : index
    %c0_110 = arith.constant 0 : index
    %126 = vector.load %arg7[%c0_107, %c2_108, %c0_109, %c0_110] : memref<2x10x10x128xbf16, #tpu.memory_space<vmem>>, vector<2x8x8x128xbf16>
    %127 = vector.shape_cast %126 : vector<2x8x8x128xbf16> to vector<128x128xbf16>
    %c6_111 = arith.constant 6 : index
    %c0_112 = arith.constant 0 : index
    %c0_113 = arith.constant 0 : index
    %128 = vector.load %arg3[%c6_111, %c0_112, %c0_113] : memref<9x128x128xbf16, #tpu.memory_space<vmem>>, vector<1x128x128xbf16>
    %129 = vector.shape_cast %128 : vector<1x128x128xbf16> to vector<128x128xbf16>
    %cst_114 = arith.constant dense<0.000000e+00> : vector<128x128xf32>
    %130 = tpu.matmul %127, %129, %cst_114 {dimension_numbers = #tpu.dot_dimension_numbers<[1], [0], [0], [1], [0, 0, 1, 1], [], []>} : vector<128x128xbf16>, vector<128x128xbf16>, vector<128x128xf32> -> vector<128x128xf32>
    %131 = arith.addf %125, %130 : vector<128x128xf32>
    %c0_115 = arith.constant 0 : index
    %c2_116 = arith.constant 2 : index
    %c1_117 = arith.constant 1 : index
    %c0_118 = arith.constant 0 : index
    %132 = vector.load %arg7[%c0_115, %c2_116, %c1_117, %c0_118] : memref<2x10x10x128xbf16, #tpu.memory_space<vmem>>, vector<2x8x8x128xbf16>
    %133 = vector.shape_cast %132 : vector<2x8x8x128xbf16> to vector<128x128xbf16>
    %c7_119 = arith.constant 7 : index
    %c0_120 = arith.constant 0 : index
    %c0_121 = arith.constant 0 : index
    %134 = vector.load %arg3[%c7_119, %c0_120, %c0_121] : memref<9x128x128xbf16, #tpu.memory_space<vmem>>, vector<1x128x128xbf16>
    %135 = vector.shape_cast %134 : vector<1x128x128xbf16> to vector<128x128xbf16>
    %cst_122 = arith.constant dense<0.000000e+00> : vector<128x128xf32>
    %136 = tpu.matmul %133, %135, %cst_122 {dimension_numbers = #tpu.dot_dimension_numbers<[1], [0], [0], [1], [0, 0, 1, 1], [], []>} : vector<128x128xbf16>, vector<128x128xbf16>, vector<128x128xf32> -> vector<128x128xf32>
    %137 = arith.addf %131, %136 : vector<128x128xf32>
    %c0_123 = arith.constant 0 : index
    %c2_124 = arith.constant 2 : index
    %c2_125 = arith.constant 2 : index
    %c0_126 = arith.constant 0 : index
    %138 = vector.load %arg7[%c0_123, %c2_124, %c2_125, %c0_126] : memref<2x10x10x128xbf16, #tpu.memory_space<vmem>>, vector<2x8x8x128xbf16>
    %139 = vector.shape_cast %138 : vector<2x8x8x128xbf16> to vector<128x128xbf16>
    %c8_127 = arith.constant 8 : index
    %c0_128 = arith.constant 0 : index
    %c0_129 = arith.constant 0 : index
    %140 = vector.load %arg3[%c8_127, %c0_128, %c0_129] : memref<9x128x128xbf16, #tpu.memory_space<vmem>>, vector<1x128x128xbf16>
    %141 = vector.shape_cast %140 : vector<1x128x128xbf16> to vector<128x128xbf16>
    %cst_130 = arith.constant dense<0.000000e+00> : vector<128x128xf32>
    %142 = tpu.matmul %139, %141, %cst_130 {dimension_numbers = #tpu.dot_dimension_numbers<[1], [0], [0], [1], [0, 0, 1, 1], [], []>} : vector<128x128xbf16>, vector<128x128xbf16>, vector<128x128xf32> -> vector<128x128xf32>
    %143 = arith.addf %137, %142 : vector<128x128xf32>
    %144 = vector.extract_strided_slice %0 {offsets = [3, 0], sizes = [1, 128], strides = [1, 1]} : vector<8x128xf32> to vector<1x128xf32>
    %145 = vector.broadcast %144 : vector<1x128xf32> to vector<128x128xf32>
    %146 = arith.addf %143, %145 : vector<128x128xf32>
    %147 = vector.extract_strided_slice %0 {offsets = [4, 0], sizes = [1, 128], strides = [1, 1]} : vector<8x128xf32> to vector<1x128xf32>
    %148 = vector.extract_strided_slice %0 {offsets = [5, 0], sizes = [1, 128], strides = [1, 1]} : vector<8x128xf32> to vector<1x128xf32>
    %cst_131 = arith.constant dense<0.000000e+00> : vector<128xf32>
    %149 = vector.multi_reduction <add>, %146, %cst_131 [0] : vector<128x128xf32> to vector<128xf32>
    %150 = vector.shape_cast %149 : vector<128xf32> to vector<1x128xf32>
    %cst_132 = arith.constant 7.812500e-03 : f32
    %151 = vector.broadcast %cst_132 : f32 to vector<1x128xf32>
    %152 = arith.mulf %150, %151 : vector<1x128xf32>
    %153 = vector.broadcast %152 : vector<1x128xf32> to vector<128x128xf32>
    %154 = arith.subf %146, %153 : vector<128x128xf32>
    %155 = arith.mulf %154, %154 : vector<128x128xf32>
    %cst_133 = arith.constant dense<0.000000e+00> : vector<128xf32>
    %156 = vector.multi_reduction <add>, %155, %cst_133 [0] : vector<128x128xf32> to vector<128xf32>
    %157 = vector.shape_cast %156 : vector<128xf32> to vector<1x128xf32>
    %cst_134 = arith.constant 7.812500e-03 : f32
    %158 = vector.broadcast %cst_134 : f32 to vector<1x128xf32>
    %159 = arith.mulf %157, %158 : vector<1x128xf32>
    %160 = vector.broadcast %147 : vector<1x128xf32> to vector<128x128xf32>
    %161 = arith.mulf %160, %154 : vector<128x128xf32>
    %cst_135 = arith.constant 9.99999974E-6 : f32
    %162 = vector.broadcast %cst_135 : f32 to vector<1x128xf32>
    %163 = arith.addf %159, %162 : vector<1x128xf32>
    %164 = math.rsqrt %163 : vector<1x128xf32>
    %165 = vector.broadcast %164 : vector<1x128xf32> to vector<128x128xf32>
    %166 = arith.mulf %161, %165 : vector<128x128xf32>
    %167 = vector.broadcast %148 : vector<1x128xf32> to vector<128x128xf32>
    %168 = arith.addf %166, %167 : vector<128x128xf32>
    %169 = vector.extract_strided_slice %1 {offsets = [6, 0, 0, 0], sizes = [2, 8, 8, 3], strides = [1, 1, 1, 1]} : vector<8x9x9x3xbf16> to vector<2x8x8x3xbf16>
    %170 = vector.shape_cast %169 : vector<2x8x8x3xbf16> to vector<128x3xbf16>
    %c0_136 = arith.constant 0 : index
    %c0_137 = arith.constant 0 : index
    %171 = vector.load %arg4[%c0_136, %c0_137] : memref<3x128xbf16, #tpu.memory_space<vmem>>, vector<3x128xbf16>
    %cst_138 = arith.constant dense<0.000000e+00> : vector<128x128xf32>
    %172 = tpu.matmul %170, %171, %cst_138 {dimension_numbers = #tpu.dot_dimension_numbers<[1], [0], [0], [1], [0, 0, 1, 1], [], []>} : vector<128x3xbf16>, vector<3x128xbf16>, vector<128x128xf32> -> vector<128x128xf32>
    %c6_139 = arith.constant 6 : index
    %c0_140 = arith.constant 0 : index
    %173 = vector.load %arg5[%c6_139, %c0_140] : memref<8x128xf32, #tpu.memory_space<vmem>>, vector<1x128xf32>
    %174 = vector.broadcast %173 : vector<1x128xf32> to vector<128x128xf32>
    %175 = arith.addf %172, %174 : vector<128x128xf32>
    %176 = arith.addf %168, %175 : vector<128x128xf32>
    %cst_141 = arith.constant 0.000000e+00 : f32
    %177 = vector.broadcast %cst_141 : f32 to vector<128x128xf32>
    %178 = arith.maximumf %176, %177 : vector<128x128xf32>
    %c0_142 = arith.constant 0 : index
    %c0_143 = arith.constant 0 : index
    %179 = vector.load %arg6[%c0_142, %c0_143] : memref<128x128xf32, #tpu.memory_space<vmem>>, vector<128x128xf32>
    tpu.vector_store %arg6[%c0_142, %c0_143], %178 {strides = array<i32>} : memref<128x128xf32, #tpu.memory_space<vmem>>, vector<128x128xf32>,
    return
  }
  func.func @transform_0(%arg0: i32) -> (i32, i32, i32, i32) {
    %c0_i32 = arith.constant 0 : i32
    %c0_i32_0 = arith.constant 0 : i32
    %c0_i32_1 = arith.constant 0 : i32
    %c0_i32_2 = arith.constant 0 : i32
    %c0_i32_3 = arith.constant 0 : i32
    return %c0_i32, %c0_i32_0, %c0_i32_1, %c0_i32_2 : i32, i32, i32, i32
  }
  func.func @transform_1(%arg0: i32) -> (i32, i32, i32) {
    %c0_i32 = arith.constant 0 : i32
    %c0_i32_0 = arith.constant 0 : i32
    %c0_i32_1 = arith.constant 0 : i32
    %c0_i32_2 = arith.constant 0 : i32
    return %c0_i32, %c0_i32_0, %c0_i32_1 : i32, i32, i32
  }
  func.func @transform_2(%arg0: i32) -> (i32, i32, i32) {
    %c0_i32 = arith.constant 0 : i32
    %c0_i32_0 = arith.constant 0 : i32
    %c0_i32_1 = arith.constant 0 : i32
    %c0_i32_2 = arith.constant 0 : i32
    return %c0_i32, %c0_i32_0, %c0_i32_1 : i32, i32, i32
  }
  func.func @transform_3(%arg0: i32) -> (i32, i32) {
    %c0_i32 = arith.constant 0 : i32
    %c0_i32_0 = arith.constant 0 : i32
    %c0_i32_1 = arith.constant 0 : i32
    return %c0_i32, %c0_i32_0 : i32, i32
  }
  func.func @transform_4(%arg0: i32) -> (i32, i32) {
    %c0_i32 = arith.constant 0 : i32
    %c0_i32_0 = arith.constant 0 : i32
    %c0_i32_1 = arith.constant 0 : i32
    return %c0_i32, %c0_i32_0 : i32, i32
  }
  func.func @transform_5(%arg0: i32) -> (i32, i32) {
    %c0_i32 = arith.constant 0 : i32
    %c0_i32_0 = arith.constant 0 : i32
    %c0_i32_1 = arith.constant 0 : i32
    return %c0_i32, %c0_i32_0 : i32, i32
  }
}

</mosaic_0001>

<llo_original>
// kernel: residual_block_forward.1
$region0: #{residual_block_forward.1}
  #allocation0 [shape = 'u32[]', space=smem, size = 0x4, offset = 0x4, fixed_abs, tag = 'smem constant byte address 0x4 - core index']
  #allocation1 [shape = 'u32[144,128]{1,0:T(1,128)}', space=vmem, size = 0x12000, scoped, tag = 'internal scratch']
  #allocation2 [shape = 'bf16[2,10,10,128]{3,2,1,0:T(8,128)(2,1)}', space=vmem, size = 0x14000, scoped, tag = 'scratch operand']
  %s0 = inlined_call_operand.vmem [shape: bf16[8,9,9,3], index: 0, kind: input, shape index: {}]
  %s1 = inlined_call_operand.vmem [shape: bf16[9,3,128], index: 1, kind: input, shape index: {}]
  %s2 = inlined_call_operand.vmem [shape: bf16[9,128,128], index: 2, kind: input, shape index: {}]
  %s3 = inlined_call_operand.vmem [shape: bf16[3,128], index: 3, kind: input, shape index: {}]
  %s4 = inlined_call_operand.vmem [shape: f32[8,128], index: 4, kind: input, shape index: {}]
  %s5 = inlined_call_operand.vmem [shape: f32[128,128], index: 5, kind: output, shape index: {}]
  %s6 = sld [smem:[#allocation0]]
  $region30: #{residual_block_forward.1} parent=0
    _
  %s8 = ssub.s32 1, %s6
  %s9 = scalar_select 0, %s8, %s6
  // Predicated region
  $region2: #{residual_block_forward.1} parent=0 // pred_check
    _
  $region3: #{residual_block_forward.1} parent=0 // pred_check_branch
    %11 = sbr.rel (0) target = $region5
  $region4: #{residual_block_forward.1} parent=0 // pred_region
    _
  $region5: #{residual_block_forward.1} parent=0 // pred_fallthru
    _
  // Predicated region
  $region6: #{residual_block_forward.1} parent=0 // pred_check
    _
  $region7: #{residual_block_forward.1} parent=0 // pred_check_branch
    %13 = sbr.rel (0) target = $region9
  $region8: #{residual_block_forward.1} parent=0 // pred_region
    _
  $region9: #{residual_block_forward.1} parent=0 // pred_fallthru
    _
  // Predicated region
  $region10: #{residual_block_forward.1} parent=0 // pred_check
    _
  $region11: #{residual_block_forward.1} parent=0 // pred_check_branch
    %15 = sbr.rel (0) target = $region13
  $region12: #{residual_block_forward.1} parent=0 // pred_region
    _
  $region13: #{residual_block_forward.1} parent=0 // pred_fallthru
    _
  // Predicated region
  $region14: #{residual_block_forward.1} parent=0 // pred_check
    _
  $region15: #{residual_block_forward.1} parent=0 // pred_check_branch
    %17 = sbr.rel (0) target = $region17
  $region16: #{residual_block_forward.1} parent=0 // pred_region
    _
  $region17: #{residual_block_forward.1} parent=0 // pred_fallthru
    _
  // Predicated region
  $region18: #{residual_block_forward.1} parent=0 // pred_check
    _
  $region19: #{residual_block_forward.1} parent=0 // pred_check_branch
    %19 = sbr.rel (0) target = $region21
  $region20: #{residual_block_forward.1} parent=0 // pred_region
    _
  $region21: #{residual_block_forward.1} parent=0 // pred_fallthru
    _
  %v21 = vld [vmem:[%s4] sm:$0xff]
  %v22 = vld [vmem:[%s0] sm:$0xf]
  %v23 = vld [vmem:[%s0 + $0x4] sm:$0x1]
  %v24 = vld [vmem:[%s0 + $0x8] sm:$0xf]
  %v25 = vld [vmem:[%s0 + $0xc] sm:$0x1]
  %v26 = vld [vmem:[%s0 + $0x10] sm:$0xf]
  %v27 = vld [vmem:[%s0 + $0x14] sm:$0x1]
  %v28 = vld [vmem:[%s0 + $0x18] sm:$0xf]
  %v29 = vld [vmem:[%s0 + $0x1c] sm:$0x1]
  %v30 = vld [vmem:[%s0 + $0x20] sm:$0xf]
  %v31 = vld [vmem:[%s0 + $0x24] sm:$0x1]
  %v32 = vld [vmem:[%s0 + $0x28] sm:$0xf]
  %v33 = vld [vmem:[%s0 + $0x2c] sm:$0x1]
  %v34 = vld [vmem:[%s0 + $0x30] sm:$0xf]
  %v35 = vld [vmem:[%s0 + $0x34] sm:$0x1]
  %v36 = vld [vmem:[%s0 + $0x38] sm:$0xf]
  %v37 = vld [vmem:[%s0 + $0x3c] sm:$0x1]
  %v38 = vld [vmem:[%s0 + $0x40] sm:$0xf]
  %v39 = vld [vmem:[%s0 + $0x44] sm:$0x1]
  %v40 = vld [vmem:[%s0 + $0x48] sm:$0xf]
  %v41 = vld [vmem:[%s0 + $0x4c] sm:$0x1]
  %v42 = vld [vmem:[%s0 + $0x50] sm:$0xf]
  %v43 = vld [vmem:[%s0 + $0x54] sm:$0x1]
  %v44 = vld [vmem:[%s0 + $0x58] sm:$0xf]
  %v45 = vld [vmem:[%s0 + $0x5c] sm:$0x1]
  %v46 = vld [vmem:[%s0 + $0x60] sm:$0xf]
  %v47 = vld [vmem:[%s0 + $0x64] sm:$0x1]
  %v48 = vld [vmem:[%s0 + $0x68] sm:$0xf]
  %v49 = vld [vmem:[%s0 + $0x6c] sm:$0x1]
  %v50 = vld [vmem:[%s0 + $0x70] sm:$0xf]
  %v51 = vld [vmem:[%s0 + $0x74] sm:$0x1]
  %v52 = vld [vmem:[%s0 + $0x78] sm:$0xf]
  %v53 = vld [vmem:[%s0 + $0x7c] sm:$0x1]
  %v54 = vld [vmem:[%s0 + $0x80] sm:$0xf]
  %v55 = vld [vmem:[%s0 + $0x84] sm:$0x1]
  %v56 = vld [vmem:[%s0 + $0x88] sm:$0xf]
  %v57 = vld [vmem:[%s0 + $0x8c] sm:$0x1]
  %v58 = vld [vmem:[%s0 + $0x90] sm:$0xf]
  %v59 = vld [vmem:[%s0 + $0x98] sm:$0xf]
  %v60 = vld [vmem:[%s0 + $0xa0] sm:$0xf]
  %v61 = vld [vmem:[%s0 + $0xa8] sm:$0xf]
  %v62 = vld [vmem:[%s0 + $0xb0] sm:$0xf]
  %v63 = vld [vmem:[%s0 + $0xb8] sm:$0xf]
  %v64 = vld [vmem:[%s0 + $0xc0] sm:$0xf]
  %v65 = vld [vmem:[%s0 + $0xc8] sm:$0xf]
  %v66 = vld [vmem:[%s0 + $0xd0] sm:$0xf]
  %v67 = vld [vmem:[%s0 + $0xd8] sm:$0xf]
  %v68 = vld [vmem:[%s0 + $0xe0] sm:$0xf]
  %v69 = vld [vmem:[%s0 + $0xe8] sm:$0xf]
  %v70 = vld [vmem:[%s0 + $0xf0] sm:$0xf]
  %v71 = vld [vmem:[%s0 + $0xf8] sm:$0xf]
  %v72 = vld [vmem:[%s0 + $0x100] sm:$0xf]
  %v73 = vld [vmem:[%s0 + $0x108] sm:$0xf]
  %v74 = vld [vmem:[%s0 + $0x110] sm:$0xf]
  %v75 = vld [vmem:[%s0 + $0x118] sm:$0xf]
  %v76 = vld [vmem:[%s0 + $0x120] sm:$0xf]
  %v77 = vld [vmem:[%s0 + $0x124] sm:$0x1]
  %v78 = vld [vmem:[%s0 + $0x128] sm:$0xf]
  %v79 = vld [vmem:[%s0 + $0x12c] sm:$0x1]
  %v80 = vld [vmem:[%s0 + $0x130] sm:$0xf]
  %v81 = vld [vmem:[%s0 + $0x134] sm:$0x1]
  %v82 = vld [vmem:[%s0 + $0x138] sm:$0xf]
  %v83 = vld [vmem:[%s0 + $0x13c] sm:$0x1]
  %v84 = vld [vmem:[%s0 + $0x140] sm:$0xf]
  %v85 = vld [vmem:[%s0 + $0x144] sm:$0x1]
  %v86 = vld [vmem:[%s0 + $0x148] sm:$0xf]
  %v87 = vld [vmem:[%s0 + $0x14c] sm:$0x1]
  %v88 = vld [vmem:[%s0 + $0x150] sm:$0xf]
  %v89 = vld [vmem:[%s0 + $0x154] sm:$0x1]
  %v90 = vld [vmem:[%s0 + $0x158] sm:$0xf]
  %v91 = vld [vmem:[%s0 + $0x15c] sm:$0x1]
  %v92 = vld [vmem:[%s0 + $0x168] sm:$0xf]
  %v93 = vld [vmem:[%s0 + $0x16c] sm:$0x1]
  %v94 = vld [vmem:[%s0 + $0x170] sm:$0xf]
  %v95 = vld [vmem:[%s0 + $0x174] sm:$0x1]
  %v96 = vld [vmem:[%s0 + $0x178] sm:$0xf]
  %v97 = vld [vmem:[%s0 + $0x17c] sm:$0x1]
  %v98 = vld [vmem:[%s0 + $0x180] sm:$0xf]
  %v99 = vld [vmem:[%s0 + $0x184] sm:$0x1]
  %v100 = vld [vmem:[%s0 + $0x188] sm:$0xf]
  %v101 = vld [vmem:[%s0 + $0x18c] sm:$0x1]
  %v102 = vld [vmem:[%s0 + $0x190] sm:$0xf]
  %v103 = vld [vmem:[%s0 + $0x194] sm:$0x1]
  %v104 = vld [vmem:[%s0 + $0x198] sm:$0xf]
  %v105 = vld [vmem:[%s0 + $0x19c] sm:$0x1]
  %v106 = vld [vmem:[%s0 + $0x1a0] sm:$0xf]
  %v107 = vld [vmem:[%s0 + $0x1a4] sm:$0x1]
  %v108 = vld [vmem:[%s0 + $0x1b0] sm:$0xf]
  %v109 = vld [vmem:[%s0 + $0x1b8] sm:$0xf]
  %v110 = vld [vmem:[%s0 + $0x1c0] sm:$0xf]
  %v111 = vld [vmem:[%s0 + $0x1c8] sm:$0xf]
  %v112 = vld [vmem:[%s0 + $0x1d0] sm:$0xf]
  %v113 = vld [vmem:[%s0 + $0x1d8] sm:$0xf]
  %v114 = vld [vmem:[%s0 + $0x1e0] sm:$0xf]
  %v115 = vld [vmem:[%s0 + $0x1e8] sm:$0xf]
  %v116 = vld [vmem:[%s0 + $0x1f8] sm:$0xf]
  %v117 = vld [vmem:[%s0 + $0x200] sm:$0xf]
  %v118 = vld [vmem:[%s0 + $0x208] sm:$0xf]
  %v119 = vld [vmem:[%s0 + $0x210] sm:$0xf]
  %v120 = vld [vmem:[%s0 + $0x218] sm:$0xf]
  %v121 = vld [vmem:[%s0 + $0x220] sm:$0xf]
  %v122 = vld [vmem:[%s0 + $0x228] sm:$0xf]
  %v123 = vld [vmem:[%s0 + $0x230] sm:$0xf]
  %v124 = vld [vmem:[%s1] sm:$0x3]
  %s125 = scalar_lea.vmem %s1, 2
  %v126 = vld [vmem:[%s125] sm:$0x3]
  %v143 = vunpack.c.l.b16 %v58
  %v144 = vunpack.c.l.b16 %v59
  %v145 = vunpack.c.l.b16 %v60
  %v146 = vunpack.c.l.b16 %v61
  %v147 = vunpack.c.l.b16 %v62
  %v148 = vunpack.c.l.b16 %v63
  %v149 = vunpack.c.l.b16 %v64
  %v150 = vunpack.c.l.b16 %v65
  %v151 = vunpack.c.l.b16 %v67
  %v152 = vunpack.c.l.b16 %v68
  %v153 = vunpack.c.l.b16 %v69
  %v154 = vunpack.c.l.b16 %v70
  %v155 = vunpack.c.l.b16 %v71
  %v156 = vunpack.c.l.b16 %v72
  %v157 = vunpack.c.l.b16 %v73
  %v158 = vunpack.c.l.b16 %v74
  %v159 = vpack.c.b16 %v144, %v143
  %v160 = vpack.c.b16 %v146, %v145
  %v161 = vpack.c.b16 %v148, %v147
  %v162 = vpack.c.b16 %v150, %v149
  %v163 = vpack.c.b16 %v152, %v151
  %v164 = vpack.c.b16 %v154, %v153
  %v165 = vpack.c.b16 %v156, %v155
  %v166 = vpack.c.b16 %v158, %v157
  %vm167 = vcmask 23552
  %v169 = vsel %vm167, %v159, 0
  %v172 = vsel %vm167, %v160, 0
  %v175 = vsel %vm167, %v161, 0
  %v178 = vsel %vm167, %v162, 0
  %v181 = vsel %vm167, %v163, 0
  %v184 = vsel %vm167, %v164, 0
  %v187 = vsel %vm167, %v165, 0
  %v190 = vsel %vm167, %v166, 0
  %vm192 = vcmask 1040384
  %vm193 = vcmask 1041408
  %v194 = vsel %vm192, 4294967295, 65535
  %v195 = vsel %vm193, %v194, 0
  %v197 = vand.u32 %v126, %v195
  %199 = vmatprep.subr.bf16.mxu0 0
  %200 = vmatpush1.bf16.msra.mxu0 0
  %201 = vmatprep.subr.bf16.mxu0 0
  %202 = vmatpush1.bf16.msra.mxu0 0
  %203 = vmatprep.subr.bf16.mxu0 0
  %204 = vmatpush1.bf16.msra.mxu0 0
  %205 = vmatprep.subr.bf16.mxu0 0
  %206 = vmatpush1.bf16.msra.mxu0 0
  %207 = vmatprep.subr.bf16.mxu0 0
  %208 = vmatpush1.bf16.msra.mxu0 0
  %209 = vmatprep.subr.bf16.mxu0 0
  %210 = vmatpush1.bf16.msra.mxu0 0
  %211 = vmatprep.subr.bf16.mxu0 0
  %212 = vmatpush1.bf16.msra.mxu0 0
  %213 = vmatprep.subr.bf16.mxu0 0
  %214 = vmatpush1.bf16.msra.mxu0 %v197
  %215 = vmatprep.subr.bf16.mxu0 0
  %216 = vmatpush2.bf16.msra.mxu0 0
  %217 = vmatprep.subr.bf16.mxu0 0
  %218 = vmatpush2.bf16.msra.mxu0 0
  %219 = vmatprep.subr.bf16.mxu0 0
  %220 = vmatpush2.bf16.msra.mxu0 0
  %221 = vmatprep.subr.bf16.mxu0 0
  %222 = vmatpush2.bf16.msra.mxu0 0
  %223 = vmatprep.subr.bf16.mxu0 0
  %224 = vmatpush2.bf16.msra.mxu0 0
  %225 = vmatprep.subr.bf16.mxu0 0
  %226 = vmatpush2.bf16.msra.mxu0 0
  %227 = vmatprep.subr.bf16.mxu0 0
  %228 = vmatpush2.bf16.msra.mxu0 0
  %229 = vmatprep.subr.bf16.mxu0 0
  %230 = vmatpush2.bf16.msra.mxu0 0
  %231 = vmatprep.mubr.bf16.mxu0 0
  %232 = vmatmul.mubr.bf16.gmra.mxu0 %v169
  %v233 = vpop.f32.mrf.mxu0
  %v234 = vadd.f32 0.0, %v233
  %v235 = vpop.f32.mrf.mxu0
  %v236 = vpop.f32.mrf.mxu0
  %v237 = vadd.f32 0.0, %v236
  %v238 = vpop.f32.mrf.mxu0
  %239 = vmatprep.mubr.bf16.mxu0 0
  %240 = vmatmul.mubr.bf16.gmra.mxu0 %v172
  %v241 = vpop.f32.mrf.mxu0
  %v242 = vadd.f32 0.0, %v241
  %v243 = vpop.f32.mrf.mxu0
  %v244 = vpop.f32.mrf.mxu0
  %v245 = vadd.f32 0.0, %v244
  %v246 = vpop.f32.mrf.mxu0
  %247 = vmatprep.mubr.bf16.mxu0 0
  %248 = vmatmul.mubr.bf16.gmra.mxu0 %v175
  %v249 = vpop.f32.mrf.mxu0
  %v250 = vadd.f32 0.0, %v249
  %v251 = vpop.f32.mrf.mxu0
  %v252 = vpop.f32.mrf.mxu0
  %v253 = vadd.f32 0.0, %v252
  %v254 = vpop.f32.mrf.mxu0
  %255 = vmatprep.mubr.bf16.mxu0 0
  %256 = vmatmul.mubr.bf16.gmra.mxu0 %v178
  %v257 = vpop.f32.mrf.mxu0
  %v258 = vadd.f32 0.0, %v257
  %v259 = vpop.f32.mrf.mxu0
  %v260 = vpop.f32.mrf.mxu0
  %v261 = vadd.f32 0.0, %v260
  %v262 = vpop.f32.mrf.mxu0
  %263 = vmatprep.mubr.bf16.mxu0 0
  %264 = vmatmul.mubr.bf16.gmra.mxu0 %v181
  %v265 = vpop.f32.mrf.mxu0
  %v266 = vadd.f32 0.0, %v265
  %v267 = vpop.f32.mrf.mxu0
  %v268 = vpop.f32.mrf.mxu0
  %v269 = vadd.f32 0.0, %v268
  %v270 = vpop.f32.mrf.mxu0
  %271 = vmatprep.mubr.bf16.mxu0 0
  %272 = vmatmul.mubr.bf16.gmra.mxu0 %v184
  %v273 = vpop.f32.mrf.mxu0
  %v274 = vadd.f32 0.0, %v273
  %v275 = vpop.f32.mrf.mxu0
  %v276 = vpop.f32.mrf.mxu0
  %v277 = vadd.f32 0.0, %v276
  %v278 = vpop.f32.mrf.mxu0
  %279 = vmatprep.mubr.bf16.mxu0 0
  %280 = vmatmul.mubr.bf16.gmra.mxu0 %v187
  %v281 = vpop.f32.mrf.mxu0
  %v282 = vadd.f32 0.0, %v281
  %v283 = vpop.f32.mrf.mxu0
  %v284 = vpop.f32.mrf.mxu0
  %v285 = vadd.f32 0.0, %v284
  %v286 = vpop.f32.mrf.mxu0
  %287 = vmatprep.mubr.bf16.mxu0 0
  %288 = vmatmul.mubr.bf16.gmra.mxu0 %v190
  %v289 = vpop.f32.mrf.mxu0
  %v290 = vadd.f32 0.0, %v289
  %v291 = vpop.f32.mrf.mxu0
  %v292 = vpop.f32.mrf.mxu0
  %v293 = vadd.f32 0.0, %v292
  %v294 = vpop.f32.mrf.mxu0
  %295 = vdwg.mxu0
  %v312 = vunpack.c.l.b16 %v22
  %v313 = vunpack.c.l.b16 %v24
  %v314 = vunpack.c.l.b16 %v26
  %v315 = vunpack.c.l.b16 %v28
  %v316 = vunpack.c.l.b16 %v30
  %v317 = vunpack.c.l.b16 %v32
  %v318 = vunpack.c.l.b16 %v34
  %v319 = vunpack.c.l.b16 %v36
  %v320 = vunpack.c.l.b16 %v40
  %v321 = vunpack.c.l.b16 %v42
  %v322 = vunpack.c.l.b16 %v44
  %v323 = vunpack.c.l.b16 %v46
  %v324 = vunpack.c.l.b16 %v48
  %v325 = vunpack.c.l.b16 %v50
  %v326 = vunpack.c.l.b16 %v52
  %v327 = vunpack.c.l.b16 %v54
  %v328 = vpack.c.b16 %v313, %v312
  %v329 = vpack.c.b16 %v315, %v314
  %v330 = vpack.c.b16 %v317, %v316
  %v331 = vpack.c.b16 %v319, %v318
  %v332 = vpack.c.b16 %v321, %v320
  %v333 = vpack.c.b16 %v323, %v322
  %v334 = vpack.c.b16 %v325, %v324
  %v335 = vpack.c.b16 %v327, %v326
  %v337 = vsel %vm167, %v328, 0
  %v340 = vsel %vm167, %v329, 0
  %v343 = vsel %vm167, %v330, 0
  %v346 = vsel %vm167, %v331, 0
  %v349 = vsel %vm167, %v332, 0
  %v352 = vsel %vm167, %v333, 0
  %v355 = vsel %vm167, %v334, 0
  %v358 = vsel %vm167, %v335, 0
  %v361 = vand.u32 %v124, %v195
  %363 = vmatprep.subr.bf16.mxu0 0
  %364 = vmatpush1.bf16.msra.mxu0 0
  %365 = vmatprep.subr.bf16.mxu0 0
  %366 = vmatpush1.bf16.msra.mxu0 0
  %367 = vmatprep.subr.bf16.mxu0 0
  %368 = vmatpush1.bf16.msra.mxu0 0
  %369 = vmatprep.subr.bf16.mxu0 0
  %370 = vmatpush1.bf16.msra.mxu0 0
  %371 = vmatprep.subr.bf16.mxu0 0
  %372 = vmatpush1.bf16.msra.mxu0 0
  %373 = vmatprep.subr.bf16.mxu0 0
  %374 = vmatpush1.bf16.msra.mxu0 0
  %375 = vmatprep.subr.bf16.mxu0 0
  %376 = vmatpush1.bf16.msra.mxu0 0
  %377 = vmatprep.subr.bf16.mxu0 0
  %378 = vmatpush1.bf16.msra.mxu0 %v361
  %379 = vmatprep.subr.bf16.mxu0 0
  %380 = vmatpush2.bf16.msra.mxu0 0
  %381 = vmatprep.subr.bf16.mxu0 0
  %382 = vmatpush2.bf16.msra.mxu0 0
  %383 = vmatprep.subr.bf16.mxu0 0
  %384 = vmatpush2.bf16.msra.mxu0 0
  %385 = vmatprep.subr.bf16.mxu0 0
  %386 = vmatpush2.bf16.msra.mxu0 0
  %387 = vmatprep.subr.bf16.mxu0 0
  %388 = vmatpush2.bf16.msra.mxu0 0
  %389 = vmatprep.subr.bf16.mxu0 0
  %390 = vmatpush2.bf16.msra.mxu0 0
  %391 = vmatprep.subr.bf16.mxu0 0
  %392 = vmatpush2.bf16.msra.mxu0 0
  %393 = vmatprep.subr.bf16.mxu0 0
  %394 = vmatpush2.bf16.msra.mxu0 0
  %395 = vmatprep.mubr.bf16.mxu0 0
  %396 = vmatmul.mubr.bf16.gmra.mxu0 %v337
  %v397 = vpop.f32.mrf.mxu0
  %v398 = vadd.f32 %v234, %v397
  %v399 = vpop.f32.mrf.mxu0
  %v400 = vpop.f32.mrf.mxu0
  %v401 = vadd.f32 %v237, %v400
  %v402 = vpop.f32.mrf.mxu0
  %403 = vmatprep.mubr.bf16.mxu0 0
  %404 = vmatmul.mubr.bf16.gmra.mxu0 %v340
  %v405 = vpop.f32.mrf.mxu0
  %v406 = vadd.f32 %v242, %v405
  %v407 = vpop.f32.mrf.mxu0
  %v408 = vpop.f32.mrf.mxu0
  %v409 = vadd.f32 %v245, %v408
  %v410 = vpop.f32.mrf.mxu0
  %411 = vmatprep.mubr.bf16.mxu0 0
  %412 = vmatmul.mubr.bf16.gmra.mxu0 %v343
  %v413 = vpop.f32.mrf.mxu0
  %v414 = vadd.f32 %v250, %v413
  %v415 = vpop.f32.mrf.mxu0
  %v416 = vpop.f32.mrf.mxu0
  %v417 = vadd.f32 %v253, %v416
  %v418 = vpop.f32.mrf.mxu0
  %419 = vmatprep.mubr.bf16.mxu0 0
  %420 = vmatmul.mubr.bf16.gmra.mxu0 %v346
  %v421 = vpop.f32.mrf.mxu0
  %v422 = vadd.f32 %v258, %v421
  %v423 = vpop.f32.mrf.mxu0
  %v424 = vpop.f32.mrf.mxu0
  %v425 = vadd.f32 %v261, %v424
  %v426 = vpop.f32.mrf.mxu0
  %427 = vmatprep.mubr.bf16.mxu0 0
  %428 = vmatmul.mubr.bf16.gmra.mxu0 %v349
  %v429 = vpop.f32.mrf.mxu0
  %v430 = vadd.f32 %v266, %v429
  %v431 = vpop.f32.mrf.mxu0
  %v432 = vpop.f32.mrf.mxu0
  %v433 = vadd.f32 %v269, %v432
  %v434 = vpop.f32.mrf.mxu0
  %435 = vmatprep.mubr.bf16.mxu0 0
  %436 = vmatmul.mubr.bf16.gmra.mxu0 %v352
  %v437 = vpop.f32.mrf.mxu0
  %v438 = vadd.f32 %v274, %v437
  %v439 = vpop.f32.mrf.mxu0
  %v440 = vpop.f32.mrf.mxu0
  %v441 = vadd.f32 %v277, %v440
  %v442 = vpop.f32.mrf.mxu0
  %443 = vmatprep.mubr.bf16.mxu0 0
  %444 = vmatmul.mubr.bf16.gmra.mxu0 %v355
  %v445 = vpop.f32.mrf.mxu0
  %v446 = vadd.f32 %v282, %v445
  %v447 = vpop.f32.mrf.mxu0
  %v448 = vpop.f32.mrf.mxu0
  %v449 = vadd.f32 %v285, %v448
  %v450 = vpop.f32.mrf.mxu0
  %451 = vmatprep.mubr.bf16.mxu0 0
  %452 = vmatmul.mubr.bf16.gmra.mxu0 %v358
  %v453 = vpop.f32.mrf.mxu0
  %v454 = vadd.f32 %v290, %v453
  %v455 = vpop.f32.mrf.mxu0
  %v456 = vpop.f32.mrf.mxu0
  %v457 = vadd.f32 %v293, %v456
  %v458 = vpop.f32.mrf.mxu0
  %459 = vdwg.mxu0
  %vm460 = vsmask.f32 3328
  %vm461 = vsmask.f32 7440
  %vm462 = vmor %vm460, %vm461
  %v464 = vshrl.u32 %v22, 16
  %v466 = vrot.slane %v464, 4
  %v467 = vshll.u32 %v22, 16
  %v469 = vrot.slane %v467, 5
  %v470 = vor.u32 %v466, %v469
  %v471 = vrot.slane %v470, 4
  %v473 = vshll.u32 %v23, 16
  %v475 = vrot.slane %v473, 5
  %v476 = vsel %vm462, %v471, %v475
  %v478 = vshrl.u32 %v24, 16
  %v480 = vrot.slane %v478, 4
  %v481 = vshll.u32 %v24, 16
  %v483 = vrot.slane %v481, 5
  %v484 = vor.u32 %v480, %v483
  %v485 = vrot.slane %v484, 4
  %v487 = vshll.u32 %v25, 16
  %v489 = vrot.slane %v487, 5
  %v490 = vsel %vm462, %v485, %v489
  %v492 = vshrl.u32 %v26, 16
  %v494 = vrot.slane %v492, 4
  %v495 = vshll.u32 %v26, 16
  %v497 = vrot.slane %v495, 5
  %v498 = vor.u32 %v494, %v497
  %v499 = vrot.slane %v498, 4
  %v501 = vshll.u32 %v27, 16
  %v503 = vrot.slane %v501, 5
  %v504 = vsel %vm462, %v499, %v503
  %v506 = vshrl.u32 %v28, 16
  %v508 = vrot.slane %v506, 4
  %v509 = vshll.u32 %v28, 16
  %v511 = vrot.slane %v509, 5
  %v512 = vor.u32 %v508, %v511
  %v513 = vrot.slane %v512, 4
  %v515 = vshll.u32 %v29, 16
  %v517 = vrot.slane %v515, 5
  %v518 = vsel %vm462, %v513, %v517
  %v520 = vshrl.u32 %v30, 16
  %v522 = vrot.slane %v520, 4
  %v523 = vshll.u32 %v30, 16
  %v525 = vrot.slane %v523, 5
  %v526 = vor.u32 %v522, %v525
  %v527 = vrot.slane %v526, 4
  %v529 = vshll.u32 %v31, 16
  %v531 = vrot.slane %v529, 5
  %v532 = vsel %vm462, %v527, %v531
  %v534 = vshrl.u32 %v32, 16
  %v536 = vrot.slane %v534, 4
  %v537 = vshll.u32 %v32, 16
  %v539 = vrot.slane %v537, 5
  %v540 = vor.u32 %v536, %v539
  %v541 = vrot.slane %v540, 4
  %v543 = vshll.u32 %v33, 16
  %v545 = vrot.slane %v543, 5
  %v546 = vsel %vm462, %v541, %v545
  %v548 = vshrl.u32 %v34, 16
  %v550 = vrot.slane %v548, 4
  %v551 = vshll.u32 %v34, 16
  %v553 = vrot.slane %v551, 5
  %v554 = vor.u32 %v550, %v553
  %v555 = vrot.slane %v554, 4
  %v557 = vshll.u32 %v35, 16
  %v559 = vrot.slane %v557, 5
  %v560 = vsel %vm462, %v555, %v559
  %v562 = vshrl.u32 %v36, 16
  %v564 = vrot.slane %v562, 4
  %v565 = vshll.u32 %v36, 16
  %v567 = vrot.slane %v565, 5
  %v568 = vor.u32 %v564, %v567
  %v569 = vrot.slane %v568, 4
  %v571 = vshll.u32 %v37, 16
  %v573 = vrot.slane %v571, 5
  %v574 = vsel %vm462, %v569, %v573
  %v576 = vshrl.u32 %v40, 16
  %v578 = vrot.slane %v576, 4
  %v579 = vshll.u32 %v40, 16
  %v581 = vrot.slane %v579, 5
  %v582 = vor.u32 %v578, %v581
  %v583 = vrot.slane %v582, 4
  %v585 = vshll.u32 %v41, 16
  %v587 = vrot.slane %v585, 5
  %v588 = vsel %vm462, %v583, %v587
  %v590 = vshrl.u32 %v42, 16
  %v592 = vrot.slane %v590, 4
  %v593 = vshll.u32 %v42, 16
  %v595 = vrot.slane %v593, 5
  %v596 = vor.u32 %v592, %v595
  %v597 = vrot.slane %v596, 4
  %v599 = vshll.u32 %v43, 16
  %v601 = vrot.slane %v599, 5
  %v602 = vsel %vm462, %v597, %v601
  %v604 = vshrl.u32 %v44, 16
  %v606 = vrot.slane %v604, 4
  %v607 = vshll.u32 %v44, 16
  %v609 = vrot.slane %v607, 5
  %v610 = vor.u32 %v606, %v609
  %v611 = vrot.slane %v610, 4
  %v613 = vshll.u32 %v45, 16
  %v615 = vrot.slane %v613, 5
  %v616 = vsel %vm462, %v611, %v615
  %v618 = vshrl.u32 %v46, 16
  %v620 = vrot.slane %v618, 4
  %v621 = vshll.u32 %v46, 16
  %v623 = vrot.slane %v621, 5
  %v624 = vor.u32 %v620, %v623
  %v625 = vrot.slane %v624, 4
  %v627 = vshll.u32 %v47, 16
  %v629 = vrot.slane %v627, 5
  %v630 = vsel %vm462, %v625, %v629
  %v632 = vshrl.u32 %v48, 16
  %v634 = vrot.slane %v632, 4
  %v635 = vshll.u32 %v48, 16
  %v637 = vrot.slane %v635, 5
  %v638 = vor.u32 %v634, %v637
  %v639 = vrot.slane %v638, 4
  %v641 = vshll.u32 %v49, 16
  %v643 = vrot.slane %v641, 5
  %v644 = vsel %vm462, %v639, %v643
  %v646 = vshrl.u32 %v50, 16
  %v648 = vrot.slane %v646, 4
  %v649 = vshll.u32 %v50, 16
  %v651 = vrot.slane %v649, 5
  %v652 = vor.u32 %v648, %v651
  %v653 = vrot.slane %v652, 4
  %v655 = vshll.u32 %v51, 16
  %v657 = vrot.slane %v655, 5
  %v658 = vsel %vm462, %v653, %v657
  %v660 = vshrl.u32 %v52, 16
  %v662 = vrot.slane %v660, 4
  %v663 = vshll.u32 %v52, 16
  %v665 = vrot.slane %v663, 5
  %v666 = vor.u32 %v662, %v665
  %v667 = vrot.slane %v666, 4
  %v669 = vshll.u32 %v53, 16
  %v671 = vrot.slane %v669, 5
  %v672 = vsel %vm462, %v667, %v671
  %v674 = vshrl.u32 %v54, 16
  %v676 = vrot.slane %v674, 4
  %v677 = vshll.u32 %v54, 16
  %v679 = vrot.slane %v677, 5
  %v680 = vor.u32 %v676, %v679
  %v681 = vrot.slane %v680, 4
  %v683 = vshll.u32 %v55, 16
  %v685 = vrot.slane %v683, 5
  %v686 = vsel %vm462, %v681, %v685
  %s687 = scalar_lea.vmem %s1, 4
  %v688 = vld [vmem:[%s687] sm:$0x3]
  %v689 = vunpack.c.l.b16 %v476
  %v690 = vunpack.c.l.b16 %v490
  %v691 = vunpack.c.l.b16 %v504
  %v692 = vunpack.c.l.b16 %v518
  %v693 = vunpack.c.l.b16 %v532
  %v694 = vunpack.c.l.b16 %v546
  %v695 = vunpack.c.l.b16 %v560
  %v696 = vunpack.c.l.b16 %v574
  %v697 = vunpack.c.l.b16 %v588
  %v698 = vunpack.c.l.b16 %v602
  %v699 = vunpack.c.l.b16 %v616
  %v700 = vunpack.c.l.b16 %v630
  %v701 = vunpack.c.l.b16 %v644
  %v702 = vunpack.c.l.b16 %v658
  %v703 = vunpack.c.l.b16 %v672
  %v704 = vunpack.c.l.b16 %v686
  %v705 = vpack.c.b16 %v690, %v689
  %v706 = vpack.c.b16 %v692, %v691
  %v707 = vpack.c.b16 %v694, %v693
  %v708 = vpack.c.b16 %v696, %v695
  %v709 = vpack.c.b16 %v698, %v697
  %v710 = vpack.c.b16 %v700, %v699
  %v711 = vpack.c.b16 %v702, %v701
  %v712 = vpack.c.b16 %v704, %v703
  %v714 = vsel %vm167, %v705, 0
  %v717 = vsel %vm167, %v706, 0
  %v720 = vsel %vm167, %v707, 0
  %v723 = vsel %vm167, %v708, 0
  %v726 = vsel %vm167, %v709, 0
  %v729 = vsel %vm167, %v710, 0
  %v732 = vsel %vm167, %v711, 0
  %v735 = vsel %vm167, %v712, 0
  %v738 = vand.u32 %v688, %v195
  %740 = vmatprep.subr.bf16.mxu0 0
  %741 = vmatpush1.bf16.msra.mxu0 0
  %742 = vmatprep.subr.bf16.mxu0 0
  %743 = vmatpush1.bf16.msra.mxu0 0
  %744 = vmatprep.subr.bf16.mxu0 0
  %745 = vmatpush1.bf16.msra.mxu0 0
  %746 = vmatprep.subr.bf16.mxu0 0
  %747 = vmatpush1.bf16.msra.mxu0 0
  %748 = vmatprep.subr.bf16.mxu0 0
  %749 = vmatpush1.bf16.msra.mxu0 0
  %750 = vmatprep.subr.bf16.mxu0 0
  %751 = vmatpush1.bf16.msra.mxu0 0
  %752 = vmatprep.subr.bf16.mxu0 0
  %753 = vmatpush1.bf16.msra.mxu0 0
  %754 = vmatprep.subr.bf16.mxu0 0
  %755 = vmatpush1.bf16.msra.mxu0 %v738
  %756 = vmatprep.subr.bf16.mxu0 0
  %757 = vmatpush2.bf16.msra.mxu0 0
  %758 = vmatprep.subr.bf16.mxu0 0
  %759 = vmatpush2.bf16.msra.mxu0 0
  %760 = vmatprep.subr.bf16.mxu0 0
  %761 = vmatpush2.bf16.msra.mxu0 0
  %762 = vmatprep.subr.bf16.mxu0 0
  %763 = vmatpush2.bf16.msra.mxu0 0
  %764 = vmatprep.subr.bf16.mxu0 0
  %765 = vmatpush2.bf16.msra.mxu0 0
  %766 = vmatprep.subr.bf16.mxu0 0
  %767 = vmatpush2.bf16.msra.mxu0 0
  %768 = vmatprep.subr.bf16.mxu0 0
  %769 = vmatpush2.bf16.msra.mxu0 0
  %770 = vmatprep.subr.bf16.mxu0 0
  %771 = vmatpush2.bf16.msra.mxu0 0
  %772 = vmatprep.mubr.bf16.mxu0 0
  %773 = vmatmul.mubr.bf16.gmra.mxu0 %v714
  %v774 = vpop.f32.mrf.mxu0
  %v775 = vadd.f32 0.0, %v774
  %v776 = vpop.f32.mrf.mxu0
  %v777 = vpop.f32.mrf.mxu0
  %v778 = vadd.f32 0.0, %v777
  %v779 = vpop.f32.mrf.mxu0
  %780 = vmatprep.mubr.bf16.mxu0 0
  %781 = vmatmul.mubr.bf16.gmra.mxu0 %v717
  %v782 = vpop.f32.mrf.mxu0
  %v783 = vadd.f32 0.0, %v782
  %v784 = vpop.f32.mrf.mxu0
  %v785 = vpop.f32.mrf.mxu0
  %v786 = vadd.f32 0.0, %v785
  %v787 = vpop.f32.mrf.mxu0
  %788 = vmatprep.mubr.bf16.mxu0 0
  %789 = vmatmul.mubr.bf16.gmra.mxu0 %v720
  %v790 = vpop.f32.mrf.mxu0
  %v791 = vadd.f32 0.0, %v790
  %v792 = vpop.f32.mrf.mxu0
  %v793 = vpop.f32.mrf.mxu0
  %v794 = vadd.f32 0.0, %v793
  %v795 = vpop.f32.mrf.mxu0
  %796 = vmatprep.mubr.bf16.mxu0 0
  %797 = vmatmul.mubr.bf16.gmra.mxu0 %v723
  %v798 = vpop.f32.mrf.mxu0
  %v799 = vadd.f32 0.0, %v798
  %v800 = vpop.f32.mrf.mxu0
  %v801 = vpop.f32.mrf.mxu0
  %v802 = vadd.f32 0.0, %v801
  %v803 = vpop.f32.mrf.mxu0
  %804 = vmatprep.mubr.bf16.mxu0 0
  %805 = vmatmul.mubr.bf16.gmra.mxu0 %v726
  %v806 = vpop.f32.mrf.mxu0
  %v807 = vadd.f32 0.0, %v806
  %v808 = vpop.f32.mrf.mxu0
  %v809 = vpop.f32.mrf.mxu0
  %v810 = vadd.f32 0.0, %v809
  %v811 = vpop.f32.mrf.mxu0
  %812 = vmatprep.mubr.bf16.mxu0 0
  %813 = vmatmul.mubr.bf16.gmra.mxu0 %v729
  %v814 = vpop.f32.mrf.mxu0
  %v815 = vadd.f32 0.0, %v814
  %v816 = vpop.f32.mrf.mxu0
  %v817 = vpop.f32.mrf.mxu0
  %v818 = vadd.f32 0.0, %v817
  %v819 = vpop.f32.mrf.mxu0
  %820 = vmatprep.mubr.bf16.mxu0 0
  %821 = vmatmul.mubr.bf16.gmra.mxu0 %v732
  %v822 = vpop.f32.mrf.mxu0
  %v823 = vadd.f32 0.0, %v822
  %v824 = vpop.f32.mrf.mxu0
  %v825 = vpop.f32.mrf.mxu0
  %v826 = vadd.f32 0.0, %v825
  %v827 = vpop.f32.mrf.mxu0
  %828 = vmatprep.mubr.bf16.mxu0 0
  %829 = vmatmul.mubr.bf16.gmra.mxu0 %v735
  %v830 = vpop.f32.mrf.mxu0
  %v831 = vadd.f32 0.0, %v830
  %v832 = vpop.f32.mrf.mxu0
  %v833 = vpop.f32.mrf.mxu0
  %v834 = vadd.f32 0.0, %v833
  %v835 = vpop.f32.mrf.mxu0
  %836 = vdwg.mxu0
  %v837 = vadd.f32 %v398, %v775
  %v838 = vadd.f32 %v401, %v778
  %v839 = vadd.f32 %v406, %v783
  %v840 = vadd.f32 %v409, %v786
  %v841 = vadd.f32 %v414, %v791
  %v842 = vadd.f32 %v417, %v794
  %v843 = vadd.f32 %v422, %v799
  %v844 = vadd.f32 %v425, %v802
  %v845 = vadd.f32 %v430, %v807
  %v846 = vadd.f32 %v433, %v810
  %v847 = vadd.f32 %v438, %v815
  %v848 = vadd.f32 %v441, %v818
  %v849 = vadd.f32 %v446, %v823
  %v850 = vadd.f32 %v449, %v826
  %v851 = vadd.f32 %v454, %v831
  %v852 = vadd.f32 %v457, %v834
  %s853 = scalar_lea.vmem %s1, 6
  %v854 = vld [vmem:[%s853] sm:$0x3]
  %v871 = vunpack.c.l.b16 %v76
  %v872 = vunpack.c.l.b16 %v78
  %v873 = vunpack.c.l.b16 %v80
  %v874 = vunpack.c.l.b16 %v82
  %v875 = vunpack.c.l.b16 %v84
  %v876 = vunpack.c.l.b16 %v86
  %v877 = vunpack.c.l.b16 %v88
  %v878 = vunpack.c.l.b16 %v90
  %v879 = vunpack.c.l.b16 %v92
  %v880 = vunpack.c.l.b16 %v94
  %v881 = vunpack.c.l.b16 %v96
  %v882 = vunpack.c.l.b16 %v98
  %v883 = vunpack.c.l.b16 %v100
  %v884 = vunpack.c.l.b16 %v102
  %v885 = vunpack.c.l.b16 %v104
  %v886 = vunpack.c.l.b16 %v106
  %v887 = vpack.c.b16 %v872, %v871
  %v888 = vpack.c.b16 %v874, %v873
  %v889 = vpack.c.b16 %v876, %v875
  %v890 = vpack.c.b16 %v878, %v877
  %v891 = vpack.c.b16 %v880, %v879
  %v892 = vpack.c.b16 %v882, %v881
  %v893 = vpack.c.b16 %v884, %v883
  %v894 = vpack.c.b16 %v886, %v885
  %v896 = vsel %vm167, %v887, 0
  %v899 = vsel %vm167, %v888, 0
  %v902 = vsel %vm167, %v889, 0
  %v905 = vsel %vm167, %v890, 0
  %v908 = vsel %vm167, %v891, 0
  %v911 = vsel %vm167, %v892, 0
  %v914 = vsel %vm167, %v893, 0
  %v917 = vsel %vm167, %v894, 0
  %v920 = vand.u32 %v854, %v195
  %922 = vmatprep.subr.bf16.mxu0 0
  %923 = vmatpush1.bf16.msra.mxu0 0
  %924 = vmatprep.subr.bf16.mxu0 0
  %925 = vmatpush1.bf16.msra.mxu0 0
  %926 = vmatprep.subr.bf16.mxu0 0
  %927 = vmatpush1.bf16.msra.mxu0 0
  %928 = vmatprep.subr.bf16.mxu0 0
  %929 = vmatpush1.bf16.msra.mxu0 0
  %930 = vmatprep.subr.bf16.mxu0 0
  %931 = vmatpush1.bf16.msra.mxu0 0
  %932 = vmatprep.subr.bf16.mxu0 0
  %933 = vmatpush1.bf16.msra.mxu0 0
  %934 = vmatprep.subr.bf16.mxu0 0
  %935 = vmatpush1.bf16.msra.mxu0 0
  %936 = vmatprep.subr.bf16.mxu0 0
  %937 = vmatpush1.bf16.msra.mxu0 %v920
  %938 = vmatprep.subr.bf16.mxu0 0
  %939 = vmatpush2.bf16.msra.mxu0 0
  %940 = vmatprep.subr.bf16.mxu0 0
  %941 = vmatpush2.bf16.msra.mxu0 0
  %942 = vmatprep.subr.bf16.mxu0 0
  %943 = vmatpush2.bf16.msra.mxu0 0
  %944 = vmatprep.subr.bf16.mxu0 0
  %945 = vmatpush2.bf16.msra.mxu0 0
  %946 = vmatprep.subr.bf16.mxu0 0
  %947 = vmatpush2.bf16.msra.mxu0 0
  %948 = vmatprep.subr.bf16.mxu0 0
  %949 = vmatpush2.bf16.msra.mxu0 0
  %950 = vmatprep.subr.bf16.mxu0 0
  %951 = vmatpush2.bf16.msra.mxu0 0
  %952 = vmatprep.subr.bf16.mxu0 0
  %953 = vmatpush2.bf16.msra.mxu0 0
  %954 = vmatprep.mubr.bf16.mxu0 0
  %955 = vmatmul.mubr.bf16.gmra.mxu0 %v896
  %v956 = vpop.f32.mrf.mxu0
  %v957 = vadd.f32 0.0, %v956
  %v958 = vpop.f32.mrf.mxu0
  %v959 = vpop.f32.mrf.mxu0
  %v960 = vadd.f32 0.0, %v959
  %v961 = vpop.f32.mrf.mxu0
  %962 = vmatprep.mubr.bf16.mxu0 0
  %963 = vmatmul.mubr.bf16.gmra.mxu0 %v899
  %v964 = vpop.f32.mrf.mxu0
  %v965 = vadd.f32 0.0, %v964
  %v966 = vpop.f32.mrf.mxu0
  %v967 = vpop.f32.mrf.mxu0
  %v968 = vadd.f32 0.0, %v967
  %v969 = vpop.f32.mrf.mxu0
  %970 = vmatprep.mubr.bf16.mxu0 0
  %971 = vmatmul.mubr.bf16.gmra.mxu0 %v902
  %v972 = vpop.f32.mrf.mxu0
  %v973 = vadd.f32 0.0, %v972
  %v974 = vpop.f32.mrf.mxu0
  %v975 = vpop.f32.mrf.mxu0
  %v976 = vadd.f32 0.0, %v975
  %v977 = vpop.f32.mrf.mxu0
  %978 = vmatprep.mubr.bf16.mxu0 0
  %979 = vmatmul.mubr.bf16.gmra.mxu0 %v905
  %v980 = vpop.f32.mrf.mxu0
  %v981 = vadd.f32 0.0, %v980
  %v982 = vpop.f32.mrf.mxu0
  %v983 = vpop.f32.mrf.mxu0
  %v984 = vadd.f32 0.0, %v983
  %v985 = vpop.f32.mrf.mxu0
  %986 = vmatprep.mubr.bf16.mxu0 0
  %987 = vmatmul.mubr.bf16.gmra.mxu0 %v908
  %v988 = vpop.f32.mrf.mxu0
  %v989 = vadd.f32 0.0, %v988
  %v990 = vpop.f32.mrf.mxu0
  %v991 = vpop.f32.mrf.mxu0
  %v992 = vadd.f32 0.0, %v991
  %v993 = vpop.f32.mrf.mxu0
  %994 = vmatprep.mubr.bf16.mxu0 0
  %995 = vmatmul.mubr.bf16.gmra.mxu0 %v911
  %v996 = vpop.f32.mrf.mxu0
  %v997 = vadd.f32 0.0, %v996
  %v998 = vpop.f32.mrf.mxu0
  %v999 = vpop.f32.mrf.mxu0
  %v1000 = vadd.f32 0.0, %v999
  %v1001 = vpop.f32.mrf.mxu0
  %1002 = vmatprep.mubr.bf16.mxu0 0
  %1003 = vmatmul.mubr.bf16.gmra.mxu0 %v914
  %v1004 = vpop.f32.mrf.mxu0
  %v1005 = vadd.f32 0.0, %v1004
  %v1006 = vpop.f32.mrf.mxu0
  %v1007 = vpop.f32.mrf.mxu0
  %v1008 = vadd.f32 0.0, %v1007
  %v1009 = vpop.f32.mrf.mxu0
  %1010 = vmatprep.mubr.bf16.mxu0 0
  %1011 = vmatmul.mubr.bf16.gmra.mxu0 %v917
  %v1012 = vpop.f32.mrf.mxu0
  %v1013 = vadd.f32 0.0, %v1012
  %v1014 = vpop.f32.mrf.mxu0
  %v1015 = vpop.f32.mrf.mxu0
  %v1016 = vadd.f32 0.0, %v1015
  %v1017 = vpop.f32.mrf.mxu0
  %1018 = vdwg.mxu0
  %v1019 = vadd.f32 %v837, %v957
  %v1020 = vadd.f32 %v838, %v960
  %v1021 = vadd.f32 %v839, %v965
  %v1022 = vadd.f32 %v840, %v968
  %v1023 = vadd.f32 %v841, %v973
  %v1024 = vadd.f32 %v842, %v976
  %v1025 = vadd.f32 %v843, %v981
  %v1026 = vadd.f32 %v844, %v984
  %v1027 = vadd.f32 %v845, %v989
  %v1028 = vadd.f32 %v846, %v992
  %v1029 = vadd.f32 %v847, %v997
  %v1030 = vadd.f32 %v848, %v1000
  %v1031 = vadd.f32 %v849, %v1005
  %v1032 = vadd.f32 %v850, %v1008
  %v1033 = vadd.f32 %v851, %v1013
  %v1034 = vadd.f32 %v852, %v1016
  %s1035 = scalar_lea.vmem %s1, 8
  %v1036 = vld [vmem:[%s1035] sm:$0x3]
  %v1053 = vunpack.c.l.b16 %v108
  %v1054 = vunpack.c.l.b16 %v109
  %v1055 = vunpack.c.l.b16 %v110
  %v1056 = vunpack.c.l.b16 %v111
  %v1057 = vunpack.c.l.b16 %v112
  %v1058 = vunpack.c.l.b16 %v113
  %v1059 = vunpack.c.l.b16 %v114
  %v1060 = vunpack.c.l.b16 %v115
  %v1061 = vunpack.c.l.b16 %v116
  %v1062 = vunpack.c.l.b16 %v117
  %v1063 = vunpack.c.l.b16 %v118
  %v1064 = vunpack.c.l.b16 %v119
  %v1065 = vunpack.c.l.b16 %v120
  %v1066 = vunpack.c.l.b16 %v121
  %v1067 = vunpack.c.l.b16 %v122
  %v1068 = vunpack.c.l.b16 %v123
  %v1069 = vpack.c.b16 %v1054, %v1053
  %v1070 = vpack.c.b16 %v1056, %v1055
  %v1071 = vpack.c.b16 %v1058, %v1057
  %v1072 = vpack.c.b16 %v1060, %v1059
  %v1073 = vpack.c.b16 %v1062, %v1061
  %v1074 = vpack.c.b16 %v1064, %v1063
  %v1075 = vpack.c.b16 %v1066, %v1065
  %v1076 = vpack.c.b16 %v1068, %v1067
  %v1078 = vsel %vm167, %v1069, 0
  %v1081 = vsel %vm167, %v1070, 0
  %v1084 = vsel %vm167, %v1071, 0
  %v1087 = vsel %vm167, %v1072, 0
  %v1090 = vsel %vm167, %v1073, 0
  %v1093 = vsel %vm167, %v1074, 0
  %v1096 = vsel %vm167, %v1075, 0
  %v1099 = vsel %vm167, %v1076, 0
  %v1102 = vand.u32 %v1036, %v195
  %1104 = vmatprep.subr.bf16.mxu0 0
  %1105 = vmatpush1.bf16.msra.mxu0 0
  %1106 = vmatprep.subr.bf16.mxu0 0
  %1107 = vmatpush1.bf16.msra.mxu0 0
  %1108 = vmatprep.subr.bf16.mxu0 0
  %1109 = vmatpush1.bf16.msra.mxu0 0
  %1110 = vmatprep.subr.bf16.mxu0 0
  %1111 = vmatpush1.bf16.msra.mxu0 0
  %1112 = vmatprep.subr.bf16.mxu0 0
  %1113 = vmatpush1.bf16.msra.mxu0 0
  %1114 = vmatprep.subr.bf16.mxu0 0
  %1115 = vmatpush1.bf16.msra.mxu0 0
  %1116 = vmatprep.subr.bf16.mxu0 0
  %1117 = vmatpush1.bf16.msra.mxu0 0
  %1118 = vmatprep.subr.bf16.mxu0 0
  %1119 = vmatpush1.bf16.msra.mxu0 %v1102
  %1120 = vmatprep.subr.bf16.mxu0 0
  %1121 = vmatpush2.bf16.msra.mxu0 0
  %1122 = vmatprep.subr.bf16.mxu0 0
  %1123 = vmatpush2.bf16.msra.mxu0 0
  %1124 = vmatprep.subr.bf16.mxu0 0
  %1125 = vmatpush2.bf16.msra.mxu0 0
  %1126 = vmatprep.subr.bf16.mxu0 0
  %1127 = vmatpush2.bf16.msra.mxu0 0
  %1128 = vmatprep.subr.bf16.mxu0 0
  %1129 = vmatpush2.bf16.msra.mxu0 0
  %1130 = vmatprep.subr.bf16.mxu0 0
  %1131 = vmatpush2.bf16.msra.mxu0 0
  %1132 = vmatprep.subr.bf16.mxu0 0
  %1133 = vmatpush2.bf16.msra.mxu0 0
  %1134 = vmatprep.subr.bf16.mxu0 0
  %1135 = vmatpush2.bf16.msra.mxu0 0
  %1136 = vmatprep.mubr.bf16.mxu0 0
  %1137 = vmatmul.mubr.bf16.gmra.mxu0 %v1078
  %v1138 = vpop.f32.mrf.mxu0
  %v1139 = vadd.f32 0.0, %v1138
  %v1140 = vpop.f32.mrf.mxu0
  %v1141 = vpop.f32.mrf.mxu0
  %v1142 = vadd.f32 0.0, %v1141
  %v1143 = vpop.f32.mrf.mxu0
  %1144 = vmatprep.mubr.bf16.mxu0 0
  %1145 = vmatmul.mubr.bf16.gmra.mxu0 %v1081
  %v1146 = vpop.f32.mrf.mxu0
  %v1147 = vadd.f32 0.0, %v1146
  %v1148 = vpop.f32.mrf.mxu0
  %v1149 = vpop.f32.mrf.mxu0
  %v1150 = vadd.f32 0.0, %v1149
  %v1151 = vpop.f32.mrf.mxu0
  %1152 = vmatprep.mubr.bf16.mxu0 0
  %1153 = vmatmul.mubr.bf16.gmra.mxu0 %v1084
  %v1154 = vpop.f32.mrf.mxu0
  %v1155 = vadd.f32 0.0, %v1154
  %v1156 = vpop.f32.mrf.mxu0
  %v1157 = vpop.f32.mrf.mxu0
  %v1158 = vadd.f32 0.0, %v1157
  %v1159 = vpop.f32.mrf.mxu0
  %1160 = vmatprep.mubr.bf16.mxu0 0
  %1161 = vmatmul.mubr.bf16.gmra.mxu0 %v1087
  %v1162 = vpop.f32.mrf.mxu0
  %v1163 = vadd.f32 0.0, %v1162
  %v1164 = vpop.f32.mrf.mxu0
  %v1165 = vpop.f32.mrf.mxu0
  %v1166 = vadd.f32 0.0, %v1165
  %v1167 = vpop.f32.mrf.mxu0
  %1168 = vmatprep.mubr.bf16.mxu0 0
  %1169 = vmatmul.mubr.bf16.gmra.mxu0 %v1090
  %v1170 = vpop.f32.mrf.mxu0
  %v1171 = vadd.f32 0.0, %v1170
  %v1172 = vpop.f32.mrf.mxu0
  %v1173 = vpop.f32.mrf.mxu0
  %v1174 = vadd.f32 0.0, %v1173
  %v1175 = vpop.f32.mrf.mxu0
  %1176 = vmatprep.mubr.bf16.mxu0 0
  %1177 = vmatmul.mubr.bf16.gmra.mxu0 %v1093
  %v1178 = vpop.f32.mrf.mxu0
  %v1179 = vadd.f32 0.0, %v1178
  %v1180 = vpop.f32.mrf.mxu0
  %v1181 = vpop.f32.mrf.mxu0
  %v1182 = vadd.f32 0.0, %v1181
  %v1183 = vpop.f32.mrf.mxu0
  %1184 = vmatprep.mubr.bf16.mxu0 0
  %1185 = vmatmul.mubr.bf16.gmra.mxu0 %v1096
  %v1186 = vpop.f32.mrf.mxu0
  %v1187 = vadd.f32 0.0, %v1186
  %v1188 = vpop.f32.mrf.mxu0
  %v1189 = vpop.f32.mrf.mxu0
  %v1190 = vadd.f32 0.0, %v1189
  %v1191 = vpop.f32.mrf.mxu0
  %1192 = vmatprep.mubr.bf16.mxu0 0
  %1193 = vmatmul.mubr.bf16.gmra.mxu0 %v1099
  %v1194 = vpop.f32.mrf.mxu0
  %v1195 = vadd.f32 0.0, %v1194
  %v1196 = vpop.f32.mrf.mxu0
  %v1197 = vpop.f32.mrf.mxu0
  %v1198 = vadd.f32 0.0, %v1197
  %v1199 = vpop.f32.mrf.mxu0
  %1200 = vdwg.mxu0
  %v1201 = vadd.f32 %v1019, %v1139
  %v1202 = vadd.f32 %v1020, %v1142
  %v1203 = vadd.f32 %v1021, %v1147
  %v1204 = vadd.f32 %v1022, %v1150
  %v1205 = vadd.f32 %v1023, %v1155
  %v1206 = vadd.f32 %v1024, %v1158
  %v1207 = vadd.f32 %v1025, %v1163
  %v1208 = vadd.f32 %v1026, %v1166
  %v1209 = vadd.f32 %v1027, %v1171
  %v1210 = vadd.f32 %v1028, %v1174
  %v1211 = vadd.f32 %v1029, %v1179
  %v1212 = vadd.f32 %v1030, %v1182
  %v1213 = vadd.f32 %v1031, %v1187
  %v1214 = vadd.f32 %v1032, %v1190
  %v1215 = vadd.f32 %v1033, %v1195
  %v1216 = vadd.f32 %v1034, %v1198
  %v1218 = vshrl.u32 %v76, 16
  %v1220 = vrot.slane %v1218, 4
  %v1221 = vshll.u32 %v76, 16
  %v1223 = vrot.slane %v1221, 5
  %v1224 = vor.u32 %v1220, %v1223
  %v1225 = vrot.slane %v1224, 4
  %v1227 = vshll.u32 %v77, 16
  %v1229 = vrot.slane %v1227, 5
  %v1230 = vsel %vm462, %v1225, %v1229
  %v1232 = vshrl.u32 %v78, 16
  %v1234 = vrot.slane %v1232, 4
  %v1235 = vshll.u32 %v78, 16
  %v1237 = vrot.slane %v1235, 5
  %v1238 = vor.u32 %v1234, %v1237
  %v1239 = vrot.slane %v1238, 4
  %v1241 = vshll.u32 %v79, 16
  %v1243 = vrot.slane %v1241, 5
  %v1244 = vsel %vm462, %v1239, %v1243
  %v1246 = vshrl.u32 %v80, 16
  %v1248 = vrot.slane %v1246, 4
  %v1249 = vshll.u32 %v80, 16
  %v1251 = vrot.slane %v1249, 5
  %v1252 = vor.u32 %v1248, %v1251
  %v1253 = vrot.slane %v1252, 4
  %v1255 = vshll.u32 %v81, 16
  %v1257 = vrot.slane %v1255, 5
  %v1258 = vsel %vm462, %v1253, %v1257
  %v1260 = vshrl.u32 %v82, 16
  %v1262 = vrot.slane %v1260, 4
  %v1263 = vshll.u32 %v82, 16
  %v1265 = vrot.slane %v1263, 5
  %v1266 = vor.u32 %v1262, %v1265
  %v1267 = vrot.slane %v1266, 4
  %v1269 = vshll.u32 %v83, 16
  %v1271 = vrot.slane %v1269, 5
  %v1272 = vsel %vm462, %v1267, %v1271
  %v1274 = vshrl.u32 %v84, 16
  %v1276 = vrot.slane %v1274, 4
  %v1277 = vshll.u32 %v84, 16
  %v1279 = vrot.slane %v1277, 5
  %v1280 = vor.u32 %v1276, %v1279
  %v1281 = vrot.slane %v1280, 4
  %v1283 = vshll.u32 %v85, 16
  %v1285 = vrot.slane %v1283, 5
  %v1286 = vsel %vm462, %v1281, %v1285
  %v1288 = vshrl.u32 %v86, 16
  %v1290 = vrot.slane %v1288, 4
  %v1291 = vshll.u32 %v86, 16
  %v1293 = vrot.slane %v1291, 5
  %v1294 = vor.u32 %v1290, %v1293
  %v1295 = vrot.slane %v1294, 4
  %v1297 = vshll.u32 %v87, 16
  %v1299 = vrot.slane %v1297, 5
  %v1300 = vsel %vm462, %v1295, %v1299
  %v1302 = vshrl.u32 %v88, 16
  %v1304 = vrot.slane %v1302, 4
  %v1305 = vshll.u32 %v88, 16
  %v1307 = vrot.slane %v1305, 5
  %v1308 = vor.u32 %v1304, %v1307
  %v1309 = vrot.slane %v1308, 4
  %v1311 = vshll.u32 %v89, 16
  %v1313 = vrot.slane %v1311, 5
  %v1314 = vsel %vm462, %v1309, %v1313
  %v1316 = vshrl.u32 %v90, 16
  %v1318 = vrot.slane %v1316, 4
  %v1319 = vshll.u32 %v90, 16
  %v1321 = vrot.slane %v1319, 5
  %v1322 = vor.u32 %v1318, %v1321
  %v1323 = vrot.slane %v1322, 4
  %v1325 = vshll.u32 %v91, 16
  %v1327 = vrot.slane %v1325, 5
  %v1328 = vsel %vm462, %v1323, %v1327
  %v1330 = vshrl.u32 %v92, 16
  %v1332 = vrot.slane %v1330, 4
  %v1333 = vshll.u32 %v92, 16
  %v1335 = vrot.slane %v1333, 5
  %v1336 = vor.u32 %v1332, %v1335
  %v1337 = vrot.slane %v1336, 4
  %v1339 = vshll.u32 %v93, 16
  %v1341 = vrot.slane %v1339, 5
  %v1342 = vsel %vm462, %v1337, %v1341
  %v1344 = vshrl.u32 %v94, 16
  %v1346 = vrot.slane %v1344, 4
  %v1347 = vshll.u32 %v94, 16
  %v1349 = vrot.slane %v1347, 5
  %v1350 = vor.u32 %v1346, %v1349
  %v1351 = vrot.slane %v1350, 4
  %v1353 = vshll.u32 %v95, 16
  %v1355 = vrot.slane %v1353, 5
  %v1356 = vsel %vm462, %v1351, %v1355
  %v1358 = vshrl.u32 %v96, 16
  %v1360 = vrot.slane %v1358, 4
  %v1361 = vshll.u32 %v96, 16
  %v1363 = vrot.slane %v1361, 5
  %v1364 = vor.u32 %v1360, %v1363
  %v1365 = vrot.slane %v1364, 4
  %v1367 = vshll.u32 %v97, 16
  %v1369 = vrot.slane %v1367, 5
  %v1370 = vsel %vm462, %v1365, %v1369
  %v1372 = vshrl.u32 %v98, 16
  %v1374 = vrot.slane %v1372, 4
  %v1375 = vshll.u32 %v98, 16
  %v1377 = vrot.slane %v1375, 5
  %v1378 = vor.u32 %v1374, %v1377
  %v1379 = vrot.slane %v1378, 4
  %v1381 = vshll.u32 %v99, 16
  %v1383 = vrot.slane %v1381, 5
  %v1384 = vsel %vm462, %v1379, %v1383
  %v1386 = vshrl.u32 %v100, 16
  %v1388 = vrot.slane %v1386, 4
  %v1389 = vshll.u32 %v100, 16
  %v1391 = vrot.slane %v1389, 5
  %v1392 = vor.u32 %v1388, %v1391
  %v1393 = vrot.slane %v1392, 4
  %v1395 = vshll.u32 %v101, 16
  %v1397 = vrot.slane %v1395, 5
  %v1398 = vsel %vm462, %v1393, %v1397
  %v1400 = vshrl.u32 %v102, 16
  %v1402 = vrot.slane %v1400, 4
  %v1403 = vshll.u32 %v102, 16
  %v1405 = vrot.slane %v1403, 5
  %v1406 = vor.u32 %v1402, %v1405
  %v1407 = vrot.slane %v1406, 4
  %v1409 = vshll.u32 %v103, 16
  %v1411 = vrot.slane %v1409, 5
  %v1412 = vsel %vm462, %v1407, %v1411
  %v1414 = vshrl.u32 %v104, 16
  %v1416 = vrot.slane %v1414, 4
  %v1417 = vshll.u32 %v104, 16
  %v1419 = vrot.slane %v1417, 5
  %v1420 = vor.u32 %v1416, %v1419
  %v1421 = vrot.slane %v1420, 4
  %v1423 = vshll.u32 %v105, 16
  %v1425 = vrot.slane %v1423, 5
  %v1426 = vsel %vm462, %v1421, %v1425
  %v1428 = vshrl.u32 %v106, 16
  %v1430 = vrot.slane %v1428, 4
  %v1431 = vshll.u32 %v106, 16
  %v1433 = vrot.slane %v1431, 5
  %v1434 = vor.u32 %v1430, %v1433
  %v1435 = vrot.slane %v1434, 4
  %v1437 = vshll.u32 %v107, 16
  %v1439 = vrot.slane %v1437, 5
  %v1440 = vsel %vm462, %v1435, %v1439
  %s1441 = scalar_lea.vmem %s1, 10
  %v1442 = vld [vmem:[%s1441] sm:$0x3]
  %v1443 = vunpack.c.l.b16 %v1230
  %v1444 = vunpack.c.l.b16 %v1244
  %v1445 = vunpack.c.l.b16 %v1258
  %v1446 = vunpack.c.l.b16 %v1272
  %v1447 = vunpack.c.l.b16 %v1286
  %v1448 = vunpack.c.l.b16 %v1300
  %v1449 = vunpack.c.l.b16 %v1314
  %v1450 = vunpack.c.l.b16 %v1328
  %v1451 = vunpack.c.l.b16 %v1342
  %v1452 = vunpack.c.l.b16 %v1356
  %v1453 = vunpack.c.l.b16 %v1370
  %v1454 = vunpack.c.l.b16 %v1384
  %v1455 = vunpack.c.l.b16 %v1398
  %v1456 = vunpack.c.l.b16 %v1412
  %v1457 = vunpack.c.l.b16 %v1426
  %v1458 = vunpack.c.l.b16 %v1440
  %v1459 = vpack.c.b16 %v1444, %v1443
  %v1460 = vpack.c.b16 %v1446, %v1445
  %v1461 = vpack.c.b16 %v1448, %v1447
  %v1462 = vpack.c.b16 %v1450, %v1449
  %v1463 = vpack.c.b16 %v1452, %v1451
  %v1464 = vpack.c.b16 %v1454, %v1453
  %v1465 = vpack.c.b16 %v1456, %v1455
  %v1466 = vpack.c.b16 %v1458, %v1457
  %v1468 = vsel %vm167, %v1459, 0
  %v1471 = vsel %vm167, %v1460, 0
  %v1474 = vsel %vm167, %v1461, 0
  %v1477 = vsel %vm167, %v1462, 0
  %v1480 = vsel %vm167, %v1463, 0
  %v1483 = vsel %vm167, %v1464, 0
  %v1486 = vsel %vm167, %v1465, 0
  %v1489 = vsel %vm167, %v1466, 0
  %v1492 = vand.u32 %v1442, %v195
  %1494 = vmatprep.subr.bf16.mxu0 0
  %1495 = vmatpush1.bf16.msra.mxu0 0
  %1496 = vmatprep.subr.bf16.mxu0 0
  %1497 = vmatpush1.bf16.msra.mxu0 0
  %1498 = vmatprep.subr.bf16.mxu0 0
  %1499 = vmatpush1.bf16.msra.mxu0 0
  %1500 = vmatprep.subr.bf16.mxu0 0
  %1501 = vmatpush1.bf16.msra.mxu0 0
  %1502 = vmatprep.subr.bf16.mxu0 0
  %1503 = vmatpush1.bf16.msra.mxu0 0
  %1504 = vmatprep.subr.bf16.mxu0 0
  %1505 = vmatpush1.bf16.msra.mxu0 0
  %1506 = vmatprep.subr.bf16.mxu0 0
  %1507 = vmatpush1.bf16.msra.mxu0 0
  %1508 = vmatprep.subr.bf16.mxu0 0
  %1509 = vmatpush1.bf16.msra.mxu0 %v1492
  %1510 = vmatprep.subr.bf16.mxu0 0
  %1511 = vmatpush2.bf16.msra.mxu0 0
  %1512 = vmatprep.subr.bf16.mxu0 0
  %1513 = vmatpush2.bf16.msra.mxu0 0
  %1514 = vmatprep.subr.bf16.mxu0 0
  %1515 = vmatpush2.bf16.msra.mxu0 0
  %1516 = vmatprep.subr.bf16.mxu0 0
  %1517 = vmatpush2.bf16.msra.mxu0 0
  %1518 = vmatprep.subr.bf16.mxu0 0
  %1519 = vmatpush2.bf16.msra.mxu0 0
  %1520 = vmatprep.subr.bf16.mxu0 0
  %1521 = vmatpush2.bf16.msra.mxu0 0
  %1522 = vmatprep.subr.bf16.mxu0 0
  %1523 = vmatpush2.bf16.msra.mxu0 0
  %1524 = vmatprep.subr.bf16.mxu0 0
  %1525 = vmatpush2.bf16.msra.mxu0 0
  %1526 = vmatprep.mubr.bf16.mxu0 0
  %1527 = vmatmul.mubr.bf16.gmra.mxu0 %v1468
  %v1528 = vpop.f32.mrf.mxu0
  %v1529 = vadd.f32 0.0, %v1528
  %v1530 = vpop.f32.mrf.mxu0
  %v1531 = vpop.f32.mrf.mxu0
  %v1532 = vadd.f32 0.0, %v1531
  %v1533 = vpop.f32.mrf.mxu0
  %1534 = vmatprep.mubr.bf16.mxu0 0
  %1535 = vmatmul.mubr.bf16.gmra.mxu0 %v1471
  %v1536 = vpop.f32.mrf.mxu0
  %v1537 = vadd.f32 0.0, %v1536
  %v1538 = vpop.f32.mrf.mxu0
  %v1539 = vpop.f32.mrf.mxu0
  %v1540 = vadd.f32 0.0, %v1539
  %v1541 = vpop.f32.mrf.mxu0
  %1542 = vmatprep.mubr.bf16.mxu0 0
  %1543 = vmatmul.mubr.bf16.gmra.mxu0 %v1474
  %v1544 = vpop.f32.mrf.mxu0
  %v1545 = vadd.f32 0.0, %v1544
  %v1546 = vpop.f32.mrf.mxu0
  %v1547 = vpop.f32.mrf.mxu0
  %v1548 = vadd.f32 0.0, %v1547
  %v1549 = vpop.f32.mrf.mxu0
  %1550 = vmatprep.mubr.bf16.mxu0 0
  %1551 = vmatmul.mubr.bf16.gmra.mxu0 %v1477
  %v1552 = vpop.f32.mrf.mxu0
  %v1553 = vadd.f32 0.0, %v1552
  %v1554 = vpop.f32.mrf.mxu0
  %v1555 = vpop.f32.mrf.mxu0
  %v1556 = vadd.f32 0.0, %v1555
  %v1557 = vpop.f32.mrf.mxu0
  %1558 = vmatprep.mubr.bf16.mxu0 0
  %1559 = vmatmul.mubr.bf16.gmra.mxu0 %v1480
  %v1560 = vpop.f32.mrf.mxu0
  %v1561 = vadd.f32 0.0, %v1560
  %v1562 = vpop.f32.mrf.mxu0
  %v1563 = vpop.f32.mrf.mxu0
  %v1564 = vadd.f32 0.0, %v1563
  %v1565 = vpop.f32.mrf.mxu0
  %1566 = vmatprep.mubr.bf16.mxu0 0
  %1567 = vmatmul.mubr.bf16.gmra.mxu0 %v1483
  %v1568 = vpop.f32.mrf.mxu0
  %v1569 = vadd.f32 0.0, %v1568
  %v1570 = vpop.f32.mrf.mxu0
  %v1571 = vpop.f32.mrf.mxu0
  %v1572 = vadd.f32 0.0, %v1571
  %v1573 = vpop.f32.mrf.mxu0
  %1574 = vmatprep.mubr.bf16.mxu0 0
  %1575 = vmatmul.mubr.bf16.gmra.mxu0 %v1486
  %v1576 = vpop.f32.mrf.mxu0
  %v1577 = vadd.f32 0.0, %v1576
  %v1578 = vpop.f32.mrf.mxu0
  %v1579 = vpop.f32.mrf.mxu0
  %v1580 = vadd.f32 0.0, %v1579
  %v1581 = vpop.f32.mrf.mxu0
  %1582 = vmatprep.mubr.bf16.mxu0 0
  %1583 = vmatmul.mubr.bf16.gmra.mxu0 %v1489
  %v1584 = vpop.f32.mrf.mxu0
  %v1585 = vadd.f32 0.0, %v1584
  %v1586 = vpop.f32.mrf.mxu0
  %v1587 = vpop.f32.mrf.mxu0
  %v1588 = vadd.f32 0.0, %v1587
  %v1589 = vpop.f32.mrf.mxu0
  %1590 = vdwg.mxu0
  %v1591 = vadd.f32 %v1201, %v1529
  %v1592 = vadd.f32 %v1202, %v1532
  %v1593 = vadd.f32 %v1203, %v1537
  %v1594 = vadd.f32 %v1204, %v1540
  %v1595 = vadd.f32 %v1205, %v1545
  %v1596 = vadd.f32 %v1206, %v1548
  %v1597 = vadd.f32 %v1207, %v1553
  %v1598 = vadd.f32 %v1208, %v1556
  %v1599 = vadd.f32 %v1209, %v1561
  %v1600 = vadd.f32 %v1210, %v1564
  %v1601 = vadd.f32 %v1211, %v1569
  %v1602 = vadd.f32 %v1212, %v1572
  %v1603 = vadd.f32 %v1213, %v1577
  %v1604 = vadd.f32 %v1214, %v1580
  %v1605 = vadd.f32 %v1215, %v1585
  %v1606 = vadd.f32 %v1216, %v1588
  %s1607 = scalar_lea.vmem %s1, 12
  %v1608 = vld [vmem:[%s1607] sm:$0x3]
  %v1611 = vunpack.c.l.b16 %v38
  %v1612 = vunpack.c.l.b16 %v56
  %v1613 = vpack.c.b16 %v314, %v313
  %v1614 = vpack.c.b16 %v316, %v315
  %v1615 = vpack.c.b16 %v318, %v317
  %v1616 = vpack.c.b16 %v1611, %v319
  %v1617 = vpack.c.b16 %v322, %v321
  %v1618 = vpack.c.b16 %v324, %v323
  %v1619 = vpack.c.b16 %v326, %v325
  %v1620 = vpack.c.b16 %v1612, %v327
  %v1622 = vsel %vm167, %v1613, 0
  %v1625 = vsel %vm167, %v1614, 0
  %v1628 = vsel %vm167, %v1615, 0
  %v1631 = vsel %vm167, %v1616, 0
  %v1634 = vsel %vm167, %v1617, 0
  %v1637 = vsel %vm167, %v1618, 0
  %v1640 = vsel %vm167, %v1619, 0
  %v1643 = vsel %vm167, %v1620, 0
  %v1646 = vand.u32 %v1608, %v195
  %1648 = vmatprep.subr.bf16.mxu0 0
  %1649 = vmatpush1.bf16.msra.mxu0 0
  %1650 = vmatprep.subr.bf16.mxu0 0
  %1651 = vmatpush1.bf16.msra.mxu0 0
  %1652 = vmatprep.subr.bf16.mxu0 0
  %1653 = vmatpush1.bf16.msra.mxu0 0
  %1654 = vmatprep.subr.bf16.mxu0 0
  %1655 = vmatpush1.bf16.msra.mxu0 0
  %1656 = vmatprep.subr.bf16.mxu0 0
  %1657 = vmatpush1.bf16.msra.mxu0 0
  %1658 = vmatprep.subr.bf16.mxu0 0
  %1659 = vmatpush1.bf16.msra.mxu0 0
  %1660 = vmatprep.subr.bf16.mxu0 0
  %1661 = vmatpush1.bf16.msra.mxu0 0
  %1662 = vmatprep.subr.bf16.mxu0 0
  %1663 = vmatpush1.bf16.msra.mxu0 %v1646
  %1664 = vmatprep.subr.bf16.mxu0 0
  %1665 = vmatpush2.bf16.msra.mxu0 0
  %1666 = vmatprep.subr.bf16.mxu0 0
  %1667 = vmatpush2.bf16.msra.mxu0 0
  %1668 = vmatprep.subr.bf16.mxu0 0
  %1669 = vmatpush2.bf16.msra.mxu0 0
  %1670 = vmatprep.subr.bf16.mxu0 0
  %1671 = vmatpush2.bf16.msra.mxu0 0
  %1672 = vmatprep.subr.bf16.mxu0 0
  %1673 = vmatpush2.bf16.msra.mxu0 0
  %1674 = vmatprep.subr.bf16.mxu0 0
  %1675 = vmatpush2.bf16.msra.mxu0 0
  %1676 = vmatprep.subr.bf16.mxu0 0
  %1677 = vmatpush2.bf16.msra.mxu0 0
  %1678 = vmatprep.subr.bf16.mxu0 0
  %1679 = vmatpush2.bf16.msra.mxu0 0
  %1680 = vmatprep.mubr.bf16.mxu0 0
  %1681 = vmatmul.mubr.bf16.gmra.mxu0 %v1622
  %v1682 = vpop.f32.mrf.mxu0
  %v1683 = vadd.f32 0.0, %v1682
  %v1684 = vpop.f32.mrf.mxu0
  %v1685 = vpop.f32.mrf.mxu0
  %v1686 = vadd.f32 0.0, %v1685
  %v1687 = vpop.f32.mrf.mxu0
  %1688 = vmatprep.mubr.bf16.mxu0 0
  %1689 = vmatmul.mubr.bf16.gmra.mxu0 %v1625
  %v1690 = vpop.f32.mrf.mxu0
  %v1691 = vadd.f32 0.0, %v1690
  %v1692 = vpop.f32.mrf.mxu0
  %v1693 = vpop.f32.mrf.mxu0
  %v1694 = vadd.f32 0.0, %v1693
  %v1695 = vpop.f32.mrf.mxu0
  %1696 = vmatprep.mubr.bf16.mxu0 0
  %1697 = vmatmul.mubr.bf16.gmra.mxu0 %v1628
  %v1698 = vpop.f32.mrf.mxu0
  %v1699 = vadd.f32 0.0, %v1698
  %v1700 = vpop.f32.mrf.mxu0
  %v1701 = vpop.f32.mrf.mxu0
  %v1702 = vadd.f32 0.0, %v1701
  %v1703 = vpop.f32.mrf.mxu0
  %1704 = vmatprep.mubr.bf16.mxu0 0
  %1705 = vmatmul.mubr.bf16.gmra.mxu0 %v1631
  %v1706 = vpop.f32.mrf.mxu0
  %v1707 = vadd.f32 0.0, %v1706
  %v1708 = vpop.f32.mrf.mxu0
  %v1709 = vpop.f32.mrf.mxu0
  %v1710 = vadd.f32 0.0, %v1709
  %v1711 = vpop.f32.mrf.mxu0
  %1712 = vmatprep.mubr.bf16.mxu0 0
  %1713 = vmatmul.mubr.bf16.gmra.mxu0 %v1634
  %v1714 = vpop.f32.mrf.mxu0
  %v1715 = vadd.f32 0.0, %v1714
  %v1716 = vpop.f32.mrf.mxu0
  %v1717 = vpop.f32.mrf.mxu0
  %v1718 = vadd.f32 0.0, %v1717
  %v1719 = vpop.f32.mrf.mxu0
  %1720 = vmatprep.mubr.bf16.mxu0 0
  %1721 = vmatmul.mubr.bf16.gmra.mxu0 %v1637
  %v1722 = vpop.f32.mrf.mxu0
  %v1723 = vadd.f32 0.0, %v1722
  %v1724 = vpop.f32.mrf.mxu0
  %v1725 = vpop.f32.mrf.mxu0
  %v1726 = vadd.f32 0.0, %v1725
  %v1727 = vpop.f32.mrf.mxu0
  %1728 = vmatprep.mubr.bf16.mxu0 0
  %1729 = vmatmul.mubr.bf16.gmra.mxu0 %v1640
  %v1730 = vpop.f32.mrf.mxu0
  %v1731 = vadd.f32 0.0, %v1730
  %v1732 = vpop.f32.mrf.mxu0
  %v1733 = vpop.f32.mrf.mxu0
  %v1734 = vadd.f32 0.0, %v1733
  %v1735 = vpop.f32.mrf.mxu0
  %1736 = vmatprep.mubr.bf16.mxu0 0
  %1737 = vmatmul.mubr.bf16.gmra.mxu0 %v1643
  %v1738 = vpop.f32.mrf.mxu0
  %v1739 = vadd.f32 0.0, %v1738
  %v1740 = vpop.f32.mrf.mxu0
  %v1741 = vpop.f32.mrf.mxu0
  %v1742 = vadd.f32 0.0, %v1741
  %v1743 = vpop.f32.mrf.mxu0
  %1744 = vdwg.mxu0
  %v1745 = vadd.f32 %v1591, %v1683
  %v1746 = vadd.f32 %v1592, %v1686
  %v1747 = vadd.f32 %v1593, %v1691
  %v1748 = vadd.f32 %v1594, %v1694
  %v1749 = vadd.f32 %v1595, %v1699
  %v1750 = vadd.f32 %v1596, %v1702
  %v1751 = vadd.f32 %v1597, %v1707
  %v1752 = vadd.f32 %v1598, %v1710
  %v1753 = vadd.f32 %v1599, %v1715
  %v1754 = vadd.f32 %v1600, %v1718
  %v1755 = vadd.f32 %v1601, %v1723
  %v1756 = vadd.f32 %v1602, %v1726
  %v1757 = vadd.f32 %v1603, %v1731
  %v1758 = vadd.f32 %v1604, %v1734
  %v1759 = vadd.f32 %v1605, %v1739
  %v1760 = vadd.f32 %v1606, %v1742
  %s1761 = scalar_lea.vmem %s1, 14
  %v1762 = vld [vmem:[%s1761] sm:$0x3]
  %v1765 = vunpack.c.l.b16 %v66
  %v1766 = vunpack.c.l.b16 %v75
  %v1767 = vpack.c.b16 %v145, %v144
  %v1768 = vpack.c.b16 %v147, %v146
  %v1769 = vpack.c.b16 %v149, %v148
  %v1770 = vpack.c.b16 %v1765, %v150
  %v1771 = vpack.c.b16 %v153, %v152
  %v1772 = vpack.c.b16 %v155, %v154
  %v1773 = vpack.c.b16 %v157, %v156
  %v1774 = vpack.c.b16 %v1766, %v158
  %v1776 = vsel %vm167, %v1767, 0
  %v1779 = vsel %vm167, %v1768, 0
  %v1782 = vsel %vm167, %v1769, 0
  %v1785 = vsel %vm167, %v1770, 0
  %v1788 = vsel %vm167, %v1771, 0
  %v1791 = vsel %vm167, %v1772, 0
  %v1794 = vsel %vm167, %v1773, 0
  %v1797 = vsel %vm167, %v1774, 0
  %v1800 = vand.u32 %v1762, %v195
  %1802 = vmatprep.subr.bf16.mxu0 0
  %1803 = vmatpush1.bf16.msra.mxu0 0
  %1804 = vmatprep.subr.bf16.mxu0 0
  %1805 = vmatpush1.bf16.msra.mxu0 0
  %1806 = vmatprep.subr.bf16.mxu0 0
  %1807 = vmatpush1.bf16.msra.mxu0 0
  %1808 = vmatprep.subr.bf16.mxu0 0
  %1809 = vmatpush1.bf16.msra.mxu0 0
  %1810 = vmatprep.subr.bf16.mxu0 0
  %1811 = vmatpush1.bf16.msra.mxu0 0
  %1812 = vmatprep.subr.bf16.mxu0 0
  %1813 = vmatpush1.bf16.msra.mxu0 0
  %1814 = vmatprep.subr.bf16.mxu0 0
  %1815 = vmatpush1.bf16.msra.mxu0 0
  %1816 = vmatprep.subr.bf16.mxu0 0
  %1817 = vmatpush1.bf16.msra.mxu0 %v1800
  %1818 = vmatprep.subr.bf16.mxu0 0
  %1819 = vmatpush2.bf16.msra.mxu0 0
  %1820 = vmatprep.subr.bf16.mxu0 0
  %1821 = vmatpush2.bf16.msra.mxu0 0
  %1822 = vmatprep.subr.bf16.mxu0 0
  %1823 = vmatpush2.bf16.msra.mxu0 0
  %1824 = vmatprep.subr.bf16.mxu0 0
  %1825 = vmatpush2.bf16.msra.mxu0 0
  %1826 = vmatprep.subr.bf16.mxu0 0
  %1827 = vmatpush2.bf16.msra.mxu0 0
  %1828 = vmatprep.subr.bf16.mxu0 0
  %1829 = vmatpush2.bf16.msra.mxu0 0
  %1830 = vmatprep.subr.bf16.mxu0 0
  %1831 = vmatpush2.bf16.msra.mxu0 0
  %1832 = vmatprep.subr.bf16.mxu0 0
  %1833 = vmatpush2.bf16.msra.mxu0 0
  %1834 = vmatprep.mubr.bf16.mxu0 0
  %1835 = vmatmul.mubr.bf16.gmra.mxu0 %v1776
  %v1836 = vpop.f32.mrf.mxu0
  %v1837 = vadd.f32 0.0, %v1836
  %v1838 = vpop.f32.mrf.mxu0
  %v1839 = vpop.f32.mrf.mxu0
  %v1840 = vadd.f32 0.0, %v1839
  %v1841 = vpop.f32.mrf.mxu0
  %1842 = vmatprep.mubr.bf16.mxu0 0
  %1843 = vmatmul.mubr.bf16.gmra.mxu0 %v1779
  %v1844 = vpop.f32.mrf.mxu0
  %v1845 = vadd.f32 0.0, %v1844
  %v1846 = vpop.f32.mrf.mxu0
  %v1847 = vpop.f32.mrf.mxu0
  %v1848 = vadd.f32 0.0, %v1847
  %v1849 = vpop.f32.mrf.mxu0
  %1850 = vmatprep.mubr.bf16.mxu0 0
  %1851 = vmatmul.mubr.bf16.gmra.mxu0 %v1782
  %v1852 = vpop.f32.mrf.mxu0
  %v1853 = vadd.f32 0.0, %v1852
  %v1854 = vpop.f32.mrf.mxu0
  %v1855 = vpop.f32.mrf.mxu0
  %v1856 = vadd.f32 0.0, %v1855
  %v1857 = vpop.f32.mrf.mxu0
  %1858 = vmatprep.mubr.bf16.mxu0 0
  %1859 = vmatmul.mubr.bf16.gmra.mxu0 %v1785
  %v1860 = vpop.f32.mrf.mxu0
  %v1861 = vadd.f32 0.0, %v1860
  %v1862 = vpop.f32.mrf.mxu0
  %v1863 = vpop.f32.mrf.mxu0
  %v1864 = vadd.f32 0.0, %v1863
  %v1865 = vpop.f32.mrf.mxu0
  %1866 = vmatprep.mubr.bf16.mxu0 0
  %1867 = vmatmul.mubr.bf16.gmra.mxu0 %v1788
  %v1868 = vpop.f32.mrf.mxu0
  %v1869 = vadd.f32 0.0, %v1868
  %v1870 = vpop.f32.mrf.mxu0
  %v1871 = vpop.f32.mrf.mxu0
  %v1872 = vadd.f32 0.0, %v1871
  %v1873 = vpop.f32.mrf.mxu0
  %1874 = vmatprep.mubr.bf16.mxu0 0
  %1875 = vmatmul.mubr.bf16.gmra.mxu0 %v1791
  %v1876 = vpop.f32.mrf.mxu0
  %v1877 = vadd.f32 0.0, %v1876
  %v1878 = vpop.f32.mrf.mxu0
  %v1879 = vpop.f32.mrf.mxu0
  %v1880 = vadd.f32 0.0, %v1879
  %v1881 = vpop.f32.mrf.mxu0
  %1882 = vmatprep.mubr.bf16.mxu0 0
  %1883 = vmatmul.mubr.bf16.gmra.mxu0 %v1794
  %v1884 = vpop.f32.mrf.mxu0
  %v1885 = vadd.f32 0.0, %v1884
  %v1886 = vpop.f32.mrf.mxu0
  %v1887 = vpop.f32.mrf.mxu0
  %v1888 = vadd.f32 0.0, %v1887
  %v1889 = vpop.f32.mrf.mxu0
  %1890 = vmatprep.mubr.bf16.mxu0 0
  %1891 = vmatmul.mubr.bf16.gmra.mxu0 %v1797
  %v1892 = vpop.f32.mrf.mxu0
  %v1893 = vadd.f32 0.0, %v1892
  %v1894 = vpop.f32.mrf.mxu0
  %v1895 = vpop.f32.mrf.mxu0
  %v1896 = vadd.f32 0.0, %v1895
  %v1897 = vpop.f32.mrf.mxu0
  %1898 = vdwg.mxu0
  %v1899 = vadd.f32 %v1745, %v1837
  %v1900 = vadd.f32 %v1746, %v1840
  %v1901 = vadd.f32 %v1747, %v1845
  %v1902 = vadd.f32 %v1748, %v1848
  %v1903 = vadd.f32 %v1749, %v1853
  %v1904 = vadd.f32 %v1750, %v1856
  %v1905 = vadd.f32 %v1751, %v1861
  %v1906 = vadd.f32 %v1752, %v1864
  %v1907 = vadd.f32 %v1753, %v1869
  %v1908 = vadd.f32 %v1754, %v1872
  %v1909 = vadd.f32 %v1755, %v1877
  %v1910 = vadd.f32 %v1756, %v1880
  %v1911 = vadd.f32 %v1757, %v1885
  %v1912 = vadd.f32 %v1758, %v1888
  %v1913 = vadd.f32 %v1759, %v1893
  %v1914 = vadd.f32 %v1760, %v1896
  %v1916 = vshrl.u32 %v38, 16
  %v1918 = vrot.slane %v1916, 4
  %v1919 = vshll.u32 %v38, 16
  %v1921 = vrot.slane %v1919, 5
  %v1922 = vor.u32 %v1918, %v1921
  %v1923 = vrot.slane %v1922, 4
  %v1925 = vshll.u32 %v39, 16
  %v1927 = vrot.slane %v1925, 5
  %v1928 = vsel %vm462, %v1923, %v1927
  %v1930 = vshrl.u32 %v56, 16
  %v1932 = vrot.slane %v1930, 4
  %v1933 = vshll.u32 %v56, 16
  %v1935 = vrot.slane %v1933, 5
  %v1936 = vor.u32 %v1932, %v1935
  %v1937 = vrot.slane %v1936, 4
  %v1939 = vshll.u32 %v57, 16
  %v1941 = vrot.slane %v1939, 5
  %v1942 = vsel %vm462, %v1937, %v1941
  %s1943 = scalar_lea.vmem %s1, 16
  %v1944 = vld [vmem:[%s1943] sm:$0x3]
  %v1945 = vunpack.c.l.b16 %v1928
  %v1946 = vunpack.c.l.b16 %v1942
  %v1947 = vpack.c.b16 %v691, %v690
  %v1948 = vpack.c.b16 %v693, %v692
  %v1949 = vpack.c.b16 %v695, %v694
  %v1950 = vpack.c.b16 %v1945, %v696
  %v1951 = vpack.c.b16 %v699, %v698
  %v1952 = vpack.c.b16 %v701, %v700
  %v1953 = vpack.c.b16 %v703, %v702
  %v1954 = vpack.c.b16 %v1946, %v704
  %v1956 = vsel %vm167, %v1947, 0
  %v1959 = vsel %vm167, %v1948, 0
  %v1962 = vsel %vm167, %v1949, 0
  %v1965 = vsel %vm167, %v1950, 0
  %v1968 = vsel %vm167, %v1951, 0
  %v1971 = vsel %vm167, %v1952, 0
  %v1974 = vsel %vm167, %v1953, 0
  %v1977 = vsel %vm167, %v1954, 0
  %v1980 = vand.u32 %v1944, %v195
  %1982 = vmatprep.subr.bf16.mxu0 0
  %1983 = vmatpush1.bf16.msra.mxu0 0
  %1984 = vmatprep.subr.bf16.mxu0 0
  %1985 = vmatpush1.bf16.msra.mxu0 0
  %1986 = vmatprep.subr.bf16.mxu0 0
  %1987 = vmatpush1.bf16.msra.mxu0 0
  %1988 = vmatprep.subr.bf16.mxu0 0
  %1989 = vmatpush1.bf16.msra.mxu0 0
  %1990 = vmatprep.subr.bf16.mxu0 0
  %1991 = vmatpush1.bf16.msra.mxu0 0
  %1992 = vmatprep.subr.bf16.mxu0 0
  %1993 = vmatpush1.bf16.msra.mxu0 0
  %1994 = vmatprep.subr.bf16.mxu0 0
  %1995 = vmatpush1.bf16.msra.mxu0 0
  %1996 = vmatprep.subr.bf16.mxu0 0
  %1997 = vmatpush1.bf16.msra.mxu0 %v1980
  %1998 = vmatprep.subr.bf16.mxu0 0
  %1999 = vmatpush2.bf16.msra.mxu0 0
  %2000 = vmatprep.subr.bf16.mxu0 0
  %2001 = vmatpush2.bf16.msra.mxu0 0
  %2002 = vmatprep.subr.bf16.mxu0 0
  %2003 = vmatpush2.bf16.msra.mxu0 0
  %2004 = vmatprep.subr.bf16.mxu0 0
  %2005 = vmatpush2.bf16.msra.mxu0 0
  %2006 = vmatprep.subr.bf16.mxu0 0
  %2007 = vmatpush2.bf16.msra.mxu0 0
  %2008 = vmatprep.subr.bf16.mxu0 0
  %2009 = vmatpush2.bf16.msra.mxu0 0
  %2010 = vmatprep.subr.bf16.mxu0 0
  %2011 = vmatpush2.bf16.msra.mxu0 0
  %2012 = vmatprep.subr.bf16.mxu0 0
  %2013 = vmatpush2.bf16.msra.mxu0 0
  %2014 = vmatprep.mubr.bf16.mxu0 0
  %2015 = vmatmul.mubr.bf16.gmra.mxu0 %v1956
  %v2016 = vpop.f32.mrf.mxu0
  %v2017 = vadd.f32 0.0, %v2016
  %v2018 = vpop.f32.mrf.mxu0
  %v2019 = vpop.f32.mrf.mxu0
  %v2020 = vadd.f32 0.0, %v2019
  %v2021 = vpop.f32.mrf.mxu0
  %2022 = vmatprep.mubr.bf16.mxu0 0
  %2023 = vmatmul.mubr.bf16.gmra.mxu0 %v1959
  %v2024 = vpop.f32.mrf.mxu0
  %v2025 = vadd.f32 0.0, %v2024
  %v2026 = vpop.f32.mrf.mxu0
  %v2027 = vpop.f32.mrf.mxu0
  %v2028 = vadd.f32 0.0, %v2027
  %v2029 = vpop.f32.mrf.mxu0
  %2030 = vmatprep.mubr.bf16.mxu0 0
  %2031 = vmatmul.mubr.bf16.gmra.mxu0 %v1962
  %v2032 = vpop.f32.mrf.mxu0
  %v2033 = vadd.f32 0.0, %v2032
  %v2034 = vpop.f32.mrf.mxu0
  %v2035 = vpop.f32.mrf.mxu0
  %v2036 = vadd.f32 0.0, %v2035
  %v2037 = vpop.f32.mrf.mxu0
  %2038 = vmatprep.mubr.bf16.mxu0 0
  %2039 = vmatmul.mubr.bf16.gmra.mxu0 %v1965
  %v2040 = vpop.f32.mrf.mxu0
  %v2041 = vadd.f32 0.0, %v2040
  %v2042 = vpop.f32.mrf.mxu0
  %v2043 = vpop.f32.mrf.mxu0
  %v2044 = vadd.f32 0.0, %v2043
  %v2045 = vpop.f32.mrf.mxu0
  %2046 = vmatprep.mubr.bf16.mxu0 0
  %2047 = vmatmul.mubr.bf16.gmra.mxu0 %v1968
  %v2048 = vpop.f32.mrf.mxu0
  %v2049 = vadd.f32 0.0, %v2048
  %v2050 = vpop.f32.mrf.mxu0
  %v2051 = vpop.f32.mrf.mxu0
  %v2052 = vadd.f32 0.0, %v2051
  %v2053 = vpop.f32.mrf.mxu0
  %2054 = vmatprep.mubr.bf16.mxu0 0
  %2055 = vmatmul.mubr.bf16.gmra.mxu0 %v1971
  %v2056 = vpop.f32.mrf.mxu0
  %v2057 = vadd.f32 0.0, %v2056
  %v2058 = vpop.f32.mrf.mxu0
  %v2059 = vpop.f32.mrf.mxu0
  %v2060 = vadd.f32 0.0, %v2059
  %v2061 = vpop.f32.mrf.mxu0
  %2062 = vmatprep.mubr.bf16.mxu0 0
  %2063 = vmatmul.mubr.bf16.gmra.mxu0 %v1974
  %v2064 = vpop.f32.mrf.mxu0
  %v2065 = vadd.f32 0.0, %v2064
  %v2066 = vpop.f32.mrf.mxu0
  %v2067 = vpop.f32.mrf.mxu0
  %v2068 = vadd.f32 0.0, %v2067
  %v2069 = vpop.f32.mrf.mxu0
  %2070 = vmatprep.mubr.bf16.mxu0 0
  %2071 = vmatmul.mubr.bf16.gmra.mxu0 %v1977
  %v2072 = vpop.f32.mrf.mxu0
  %v2073 = vadd.f32 0.0, %v2072
  %v2074 = vpop.f32.mrf.mxu0
  %v2075 = vpop.f32.mrf.mxu0
  %v2076 = vadd.f32 0.0, %v2075
  %v2077 = vpop.f32.mrf.mxu0
  %2078 = vdwg.mxu0
  %v2079 = vadd.f32 %v1899, %v2017
  %v2080 = vadd.f32 %v1900, %v2020
  %v2081 = vadd.f32 %v1901, %v2025
  %v2082 = vadd.f32 %v1902, %v2028
  %v2083 = vadd.f32 %v1903, %v2033
  %v2084 = vadd.f32 %v1904, %v2036
  %v2085 = vadd.f32 %v1905, %v2041
  %v2086 = vadd.f32 %v1906, %v2044
  %v2087 = vadd.f32 %v1907, %v2049
  %v2088 = vadd.f32 %v1908, %v2052
  %v2089 = vadd.f32 %v1909, %v2057
  %v2090 = vadd.f32 %v1910, %v2060
  %v2091 = vadd.f32 %v1911, %v2065
  %v2092 = vadd.f32 %v1912, %v2068
  %v2093 = vadd.f32 %v1913, %v2073
  %v2094 = vadd.f32 %v1914, %v2076
  %v2095 = vlaneseq
  %v2096 = vshrl.u32 %v2095, 7
  %v2097 = vsub.s32 0, %v2096
  %v2098 = vrot.slane %v21, %v2097
  %v2099 = vadd.f32 %v2079, %v2098
  %v2100 = vadd.f32 %v2080, %v2098
  %v2101 = vadd.f32 %v2081, %v2098
  %v2102 = vadd.f32 %v2082, %v2098
  %v2103 = vadd.f32 %v2083, %v2098
  %v2104 = vadd.f32 %v2084, %v2098
  %v2105 = vadd.f32 %v2085, %v2098
  %v2106 = vadd.f32 %v2086, %v2098
  %v2107 = vadd.f32 %v2087, %v2098
  %v2108 = vadd.f32 %v2088, %v2098
  %v2109 = vadd.f32 %v2089, %v2098
  %v2110 = vadd.f32 %v2090, %v2098
  %v2111 = vadd.f32 %v2091, %v2098
  %v2112 = vadd.f32 %v2092, %v2098
  %v2113 = vadd.f32 %v2093, %v2098
  %v2114 = vadd.f32 %v2094, %v2098
  %v2115 = vadd.f32 %v2099, %v2100
  %v2116 = vadd.f32 %v2115, %v2101
  %v2117 = vadd.f32 %v2116, %v2102
  %v2118 = vadd.f32 %v2117, %v2103
  %v2119 = vadd.f32 %v2118, %v2104
  %v2120 = vadd.f32 %v2119, %v2105
  %v2121 = vadd.f32 %v2120, %v2106
  %v2122 = vadd.f32 %v2121, %v2107
  %v2123 = vadd.f32 %v2122, %v2108
  %v2124 = vadd.f32 %v2123, %v2109
  %v2125 = vadd.f32 %v2124, %v2110
  %v2126 = vadd.f32 %v2125, %v2111
  %v2127 = vadd.f32 %v2126, %v2112
  %v2128 = vadd.f32 %v2127, %v2113
  %v2129 = vadd.f32 %v2128, %v2114
  %v2130 = vrot.slane %v2129, 4
  %v2131 = vadd.f32 %v2129, %v2130
  %v2132 = vrot.slane %v2131, 2
  %v2133 = vadd.f32 %v2131, %v2132
  %v2134 = vrot.slane %v2133, 1
  %v2135 = vadd.f32 %v2133, %v2134
  %v2136 = vmul.f32 %v2135, 0.0078125
  %v2137 = vsub.f32 %v2099, %v2136
  %v2138 = vsub.f32 %v2100, %v2136
  %v2139 = vsub.f32 %v2101, %v2136
  %v2140 = vsub.f32 %v2102, %v2136
  %v2141 = vsub.f32 %v2103, %v2136
  %v2142 = vsub.f32 %v2104, %v2136
  %v2143 = vsub.f32 %v2105, %v2136
  %v2144 = vsub.f32 %v2106, %v2136
  %v2145 = vsub.f32 %v2107, %v2136
  %v2146 = vsub.f32 %v2108, %v2136
  %v2147 = vsub.f32 %v2109, %v2136
  %v2148 = vsub.f32 %v2110, %v2136
  %v2149 = vsub.f32 %v2111, %v2136
  %v2150 = vsub.f32 %v2112, %v2136
  %v2151 = vsub.f32 %v2113, %v2136
  %v2152 = vsub.f32 %v2114, %v2136
  %v2153 = vmul.f32 %v2137, %v2137
  %v2154 = vmul.f32 %v2138, %v2138
  %v2155 = vmul.f32 %v2139, %v2139
  %v2156 = vmul.f32 %v2140, %v2140
  %v2157 = vmul.f32 %v2141, %v2141
  %v2158 = vmul.f32 %v2142, %v2142
  %v2159 = vmul.f32 %v2143, %v2143
  %v2160 = vmul.f32 %v2144, %v2144
  %v2161 = vmul.f32 %v2145, %v2145
  %v2162 = vmul.f32 %v2146, %v2146
  %v2163 = vmul.f32 %v2147, %v2147
  %v2164 = vmul.f32 %v2148, %v2148
  %v2165 = vmul.f32 %v2149, %v2149
  %v2166 = vmul.f32 %v2150, %v2150
  %v2167 = vmul.f32 %v2151, %v2151
  %v2168 = vmul.f32 %v2152, %v2152
  %v2169 = vadd.f32 %v2153, %v2154
  %v2170 = vadd.f32 %v2169, %v2155
  %v2171 = vadd.f32 %v2170, %v2156
  %v2172 = vadd.f32 %v2171, %v2157
  %v2173 = vadd.f32 %v2172, %v2158
  %v2174 = vadd.f32 %v2173, %v2159
  %v2175 = vadd.f32 %v2174, %v2160
  %v2176 = vadd.f32 %v2175, %v2161
  %v2177 = vadd.f32 %v2176, %v2162
  %v2178 = vadd.f32 %v2177, %v2163
  %v2179 = vadd.f32 %v2178, %v2164
  %v2180 = vadd.f32 %v2179, %v2165
  %v2181 = vadd.f32 %v2180, %v2166
  %v2182 = vadd.f32 %v2181, %v2167
  %v2183 = vadd.f32 %v2182, %v2168
  %v2184 = vrot.slane %v2183, 4
  %v2185 = vadd.f32 %v2183, %v2184
  %v2186 = vrot.slane %v2185, 2
  %v2187 = vadd.f32 %v2185, %v2186
  %v2188 = vrot.slane %v2187, 1
  %v2189 = vadd.f32 %v2187, %v2188
  %v2190 = vmul.f32 %v2189, 0.0078125
  %v2191 = vlaneseq
  %v2192 = vshrl.u32 %v2191, 7
  %v2193 = vsub.s32 1, %v2192
  %v2194 = vrot.slane %v21, %v2193
  %v2195 = vmul.f32 %v2194, %v2137
  %v2196 = vmul.f32 %v2194, %v2138
  %v2197 = vmul.f32 %v2194, %v2139
  %v2198 = vmul.f32 %v2194, %v2140
  %v2199 = vmul.f32 %v2194, %v2141
  %v2200 = vmul.f32 %v2194, %v2142
  %v2201 = vmul.f32 %v2194, %v2143
  %v2202 = vmul.f32 %v2194, %v2144
  %v2203 = vmul.f32 %v2194, %v2145
  %v2204 = vmul.f32 %v2194, %v2146
  %v2205 = vmul.f32 %v2194, %v2147
  %v2206 = vmul.f32 %v2194, %v2148
  %v2207 = vmul.f32 %v2194, %v2149
  %v2208 = vmul.f32 %v2194, %v2150
  %v2209 = vmul.f32 %v2194, %v2151
  %v2210 = vmul.f32 %v2194, %v2152
  %v2211 = vadd.f32 %v2190, 1e-05
  %v2212 = vrsqrt.pop %v2211
  %v2213 = vmul.f32 %v2195, %v2212
  %v2214 = vmul.f32 %v2196, %v2212
  %v2215 = vmul.f32 %v2197, %v2212
  %v2216 = vmul.f32 %v2198, %v2212
  %v2217 = vmul.f32 %v2199, %v2212
  %v2218 = vmul.f32 %v2200, %v2212
  %v2219 = vmul.f32 %v2201, %v2212
  %v2220 = vmul.f32 %v2202, %v2212
  %v2221 = vmul.f32 %v2203, %v2212
  %v2222 = vmul.f32 %v2204, %v2212
  %v2223 = vmul.f32 %v2205, %v2212
  %v2224 = vmul.f32 %v2206, %v2212
  %v2225 = vmul.f32 %v2207, %v2212
  %v2226 = vmul.f32 %v2208, %v2212
  %v2227 = vmul.f32 %v2209, %v2212
  %v2228 = vmul.f32 %v2210, %v2212
  %v2229 = vlaneseq
  %v2230 = vshrl.u32 %v2229, 7
  %v2231 = vsub.s32 2, %v2230
  %v2232 = vrot.slane %v21, %v2231
  %v2233 = vadd.f32 %v2213, %v2232
  %v2234 = vadd.f32 %v2214, %v2232
  %v2235 = vadd.f32 %v2215, %v2232
  %v2236 = vadd.f32 %v2216, %v2232
  %v2237 = vadd.f32 %v2217, %v2232
  %v2238 = vadd.f32 %v2218, %v2232
  %v2239 = vadd.f32 %v2219, %v2232
  %v2240 = vadd.f32 %v2220, %v2232
  %v2241 = vadd.f32 %v2221, %v2232
  %v2242 = vadd.f32 %v2222, %v2232
  %v2243 = vadd.f32 %v2223, %v2232
  %v2244 = vadd.f32 %v2224, %v2232
  %v2245 = vadd.f32 %v2225, %v2232
  %v2246 = vadd.f32 %v2226, %v2232
  %v2247 = vadd.f32 %v2227, %v2232
  %v2248 = vadd.f32 %v2228, %v2232
  %v2249 = vmax.f32 %v2233, 0.0
  %v2250 = vmax.f32 %v2234, 0.0
  %v2251 = vmax.f32 %v2235, 0.0
  %v2252 = vmax.f32 %v2236, 0.0
  %v2253 = vmax.f32 %v2237, 0.0
  %v2254 = vmax.f32 %v2238, 0.0
  %v2255 = vmax.f32 %v2239, 0.0
  %v2256 = vmax.f32 %v2240, 0.0
  %v2257 = vmax.f32 %v2241, 0.0
  %v2258 = vmax.f32 %v2242, 0.0
  %v2259 = vmax.f32 %v2243, 0.0
  %v2260 = vmax.f32 %v2244, 0.0
  %v2261 = vmax.f32 %v2245, 0.0
  %v2262 = vmax.f32 %v2246, 0.0
  %v2263 = vmax.f32 %v2247, 0.0
  %v2264 = vmax.f32 %v2248, 0.0
  %2265 = vst [vmem:[#allocation2] sm:$0xf] 0
  %2266 = vst [vmem:[#allocation2 + $0x4] sm:$0x1] 0
  %2267 = vst [vmem:[#allocation2 + $0x50] sm:$0xf] 0
  %2268 = vst [vmem:[#allocation2 + $0x54] sm:$0x1] 0
  %s2269 = scalar_lea.vmem [#allocation2], 72
  %2270 = vst [vmem:[%s2269] sm:$0xf] 0
  %2271 = vst [vmem:[%s2269 + $0x4] sm:$0x1] 0
  %2272 = vst [vmem:[%s2269 + $0x50] sm:$0xf] 0
  %2273 = vst [vmem:[%s2269 + $0x54] sm:$0x1] 0
  %vm2274 = vcmask 1040384
  %vm2275 = vsmask.f32 256
  %vm2276 = vmand %vm2274, %vm2275
  %v2277 = vld [vmem:[#allocation2] sm:$0x1]
  %v2278 = vsel %vm2276, 0, %v2277
  %2279 = vst [vmem:[#allocation2] sm:$0x1] %v2278
  %v2280 = vld [vmem:[#allocation2 + $0x8] sm:$0x1]
  %v2281 = vsel %vm2276, 0, %v2280
  %2282 = vst [vmem:[#allocation2 + $0x8] sm:$0x1] %v2281
  %v2283 = vld [vmem:[#allocation2 + $0x10] sm:$0x1]
  %v2284 = vsel %vm2276, 0, %v2283
  %2285 = vst [vmem:[#allocation2 + $0x10] sm:$0x1] %v2284
  %v2286 = vld [vmem:[#allocation2 + $0x18] sm:$0x1]
  %v2287 = vsel %vm2276, 0, %v2286
  %2288 = vst [vmem:[#allocation2 + $0x18] sm:$0x1] %v2287
  %v2289 = vld [vmem:[#allocation2 + $0x20] sm:$0x1]
  %v2290 = vsel %vm2276, 0, %v2289
  %2291 = vst [vmem:[#allocation2 + $0x20] sm:$0x1] %v2290
  %v2292 = vld [vmem:[#allocation2 + $0x28] sm:$0x1]
  %v2293 = vsel %vm2276, 0, %v2292
  %2294 = vst [vmem:[#allocation2 + $0x28] sm:$0x1] %v2293
  %v2295 = vld [vmem:[#allocation2 + $0x30] sm:$0x1]
  %v2296 = vsel %vm2276, 0, %v2295
  %2297 = vst [vmem:[#allocation2 + $0x30] sm:$0x1] %v2296
  %v2298 = vld [vmem:[#allocation2 + $0x38] sm:$0x1]
  %v2299 = vsel %vm2276, 0, %v2298
  %2300 = vst [vmem:[#allocation2 + $0x38] sm:$0x1] %v2299
  %v2301 = vld [vmem:[#allocation2 + $0x40] sm:$0x1]
  %v2302 = vsel %vm2276, 0, %v2301
  %2303 = vst [vmem:[#allocation2 + $0x40] sm:$0x1] %v2302
  %v2304 = vld [vmem:[#allocation2 + $0x48] sm:$0x1]
  %v2305 = vsel %vm2276, 0, %v2304
  %2306 = vst [vmem:[#allocation2 + $0x48] sm:$0x1] %v2305
  %v2307 = vld [vmem:[#allocation2 + $0x50] sm:$0x1]
  %v2308 = vsel %vm2276, 0, %v2307
  %2309 = vst [vmem:[#allocation2 + $0x50] sm:$0x1] %v2308
  %v2310 = vld [vmem:[#allocation2 + $0x58] sm:$0x1]
  %v2311 = vsel %vm2276, 0, %v2310
  %2312 = vst [vmem:[#allocation2 + $0x58] sm:$0x1] %v2311
  %v2313 = vld [vmem:[#allocation2 + $0x60] sm:$0x1]
  %v2314 = vsel %vm2276, 0, %v2313
  %2315 = vst [vmem:[#allocation2 + $0x60] sm:$0x1] %v2314
  %v2316 = vld [vmem:[#allocation2 + $0x68] sm:$0x1]
  %v2317 = vsel %vm2276, 0, %v2316
  %2318 = vst [vmem:[#allocation2 + $0x68] sm:$0x1] %v2317
  %v2319 = vld [vmem:[#allocation2 + $0x70] sm:$0x1]
  %v2320 = vsel %vm2276, 0, %v2319
  %2321 = vst [vmem:[#allocation2 + $0x70] sm:$0x1] %v2320
  %v2322 = vld [vmem:[#allocation2 + $0x78] sm:$0x1]
  %v2323 = vsel %vm2276, 0, %v2322
  %2324 = vst [vmem:[#allocation2 + $0x78] sm:$0x1] %v2323
  %v2325 = vld [vmem:[#allocation2 + $0x80] sm:$0x1]
  %v2326 = vsel %vm2276, 0, %v2325
  %2327 = vst [vmem:[#allocation2 + $0x80] sm:$0x1] %v2326
  %v2328 = vld [vmem:[#allocation2 + $0x88] sm:$0x1]
  %v2329 = vsel %vm2276, 0, %v2328
  %2330 = vst [vmem:[#allocation2 + $0x88] sm:$0x1] %v2329
  %v2331 = vld [vmem:[#allocation2 + $0x90] sm:$0x1]
  %v2332 = vsel %vm2276, 0, %v2331
  %2333 = vst [vmem:[#allocation2 + $0x90] sm:$0x1] %v2332
  %v2334 = vld [vmem:[#allocation2 + $0x98] sm:$0x1]
  %v2335 = vsel %vm2276, 0, %v2334
  %2336 = vst [vmem:[#allocation2 + $0x98] sm:$0x1] %v2335
  %vm2337 = vsmask.f32 7938
  %vm2338 = vmand %vm2274, %vm2337
  %v2339 = vld [vmem:[#allocation2 + $0x4] sm:$0x1]
  %v2340 = vsel %vm2338, 0, %v2339
  %2341 = vst [vmem:[#allocation2 + $0x4] sm:$0x1] %v2340
  %v2342 = vld [vmem:[#allocation2 + $0xc] sm:$0x1]
  %v2343 = vsel %vm2338, 0, %v2342
  %2344 = vst [vmem:[#allocation2 + $0xc] sm:$0x1] %v2343
  %v2345 = vld [vmem:[#allocation2 + $0x14] sm:$0x1]
  %v2346 = vsel %vm2338, 0, %v2345
  %2347 = vst [vmem:[#allocation2 + $0x14] sm:$0x1] %v2346
  %v2348 = vld [vmem:[#allocation2 + $0x1c] sm:$0x1]
  %v2349 = vsel %vm2338, 0, %v2348
  %2350 = vst [vmem:[#allocation2 + $0x1c] sm:$0x1] %v2349
  %v2351 = vld [vmem:[#allocation2 + $0x24] sm:$0x1]
  %v2352 = vsel %vm2338, 0, %v2351
  %2353 = vst [vmem:[#allocation2 + $0x24] sm:$0x1] %v2352
  %v2354 = vld [vmem:[#allocation2 + $0x2c] sm:$0x1]
  %v2355 = vsel %vm2338, 0, %v2354
  %2356 = vst [vmem:[#allocation2 + $0x2c] sm:$0x1] %v2355
  %v2357 = vld [vmem:[#allocation2 + $0x34] sm:$0x1]
  %v2358 = vsel %vm2338, 0, %v2357
  %2359 = vst [vmem:[#allocation2 + $0x34] sm:$0x1] %v2358
  %v2360 = vld [vmem:[#allocation2 + $0x3c] sm:$0x1]
  %v2361 = vsel %vm2338, 0, %v2360
  %2362 = vst [vmem:[#allocation2 + $0x3c] sm:$0x1] %v2361
  %v2363 = vld [vmem:[#allocation2 + $0x44] sm:$0x1]
  %v2364 = vsel %vm2338, 0, %v2363
  %2365 = vst [vmem:[#allocation2 + $0x44] sm:$0x1] %v2364
  %v2366 = vld [vmem:[#allocation2 + $0x4c] sm:$0x1]
  %v2367 = vsel %vm2338, 0, %v2366
  %2368 = vst [vmem:[#allocation2 + $0x4c] sm:$0x1] %v2367
  %v2369 = vld [vmem:[#allocation2 + $0x54] sm:$0x1]
  %v2370 = vsel %vm2338, 0, %v2369
  %2371 = vst [vmem:[#allocation2 + $0x54] sm:$0x1] %v2370
  %v2372 = vld [vmem:[#allocation2 + $0x5c] sm:$0x1]
  %v2373 = vsel %vm2338, 0, %v2372
  %2374 = vst [vmem:[#allocation2 + $0x5c] sm:$0x1] %v2373
  %v2375 = vld [vmem:[#allocation2 + $0x64] sm:$0x1]
  %v2376 = vsel %vm2338, 0, %v2375
  %2377 = vst [vmem:[#allocation2 + $0x64] sm:$0x1] %v2376
  %v2378 = vld [vmem:[#allocation2 + $0x6c] sm:$0x1]
  %v2379 = vsel %vm2338, 0, %v2378
  %2380 = vst [vmem:[#allocation2 + $0x6c] sm:$0x1] %v2379
  %v2381 = vld [vmem:[#allocation2 + $0x74] sm:$0x1]
  %v2382 = vsel %vm2338, 0, %v2381
  %2383 = vst [vmem:[#allocation2 + $0x74] sm:$0x1] %v2382
  %v2384 = vld [vmem:[#allocation2 + $0x7c] sm:$0x1]
  %v2385 = vsel %vm2338, 0, %v2384
  %2386 = vst [vmem:[#allocation2 + $0x7c] sm:$0x1] %v2385
  %v2387 = vld [vmem:[#allocation2 + $0x84] sm:$0x1]
  %v2388 = vsel %vm2338, 0, %v2387
  %2389 = vst [vmem:[#allocation2 + $0x84] sm:$0x1] %v2388
  %v2390 = vld [vmem:[#allocation2 + $0x8c] sm:$0x1]
  %v2391 = vsel %vm2338, 0, %v2390
  %2392 = vst [vmem:[#allocation2 + $0x8c] sm:$0x1] %v2391
  %v2393 = vld [vmem:[#allocation2 + $0x94] sm:$0x1]
  %v2394 = vsel %vm2338, 0, %v2393
  %2395 = vst [vmem:[#allocation2 + $0x94] sm:$0x1] %v2394
  %v2396 = vld [vmem:[#allocation2 + $0x9c] sm:$0x1]
  %v2397 = vsel %vm2338, 0, %v2396
  %2398 = vst [vmem:[#allocation2 + $0x9c] sm:$0x1] %v2397
  %v2399 = vpack.c.bf16 %v2250, %v2249
  %v2400 = vpack.c.bf16 %v2252, %v2251
  %v2401 = vpack.c.bf16 %v2254, %v2253
  %v2402 = vpack.c.bf16 %v2256, %v2255
  %v2403 = vpack.c.bf16 %v2258, %v2257
  %v2404 = vpack.c.bf16 %v2260, %v2259
  %v2405 = vpack.c.bf16 %v2262, %v2261
  %v2406 = vpack.c.bf16 %v2264, %v2263
  %v2415 = vunpack.c.l.b16 %v2399
  %v2416 = vunpack.c.h.b16 %v2399
  %v2417 = vunpack.c.l.b16 %v2400
  %v2418 = vunpack.c.h.b16 %v2400
  %v2419 = vunpack.c.l.b16 %v2401
  %v2420 = vunpack.c.h.b16 %v2401
  %v2421 = vunpack.c.l.b16 %v2402
  %v2422 = vunpack.c.h.b16 %v2402
  %v2423 = vunpack.c.l.b16 %v2403
  %v2424 = vunpack.c.h.b16 %v2403
  %v2425 = vunpack.c.l.b16 %v2404
  %v2426 = vunpack.c.h.b16 %v2404
  %v2427 = vunpack.c.l.b16 %v2405
  %v2428 = vunpack.c.h.b16 %v2405
  %v2429 = vunpack.c.l.b16 %v2406
  %v2430 = vunpack.c.h.b16 %v2406
  %v2431 = vpack.c.b16 %v2415, %v2415
  %v2432 = vpack.c.b16 %v2416, %v2416
  %v2433 = vpack.c.b16 %v2417, %v2417
  %v2434 = vpack.c.b16 %v2418, %v2418
  %v2435 = vpack.c.b16 %v2419, %v2419
  %v2436 = vpack.c.b16 %v2420, %v2420
  %v2437 = vpack.c.b16 %v2421, %v2421
  %v2438 = vpack.c.b16 %v2422, %v2422
  %v2439 = vpack.c.b16 %v2423, %v2423
  %v2440 = vpack.c.b16 %v2424, %v2424
  %v2441 = vpack.c.b16 %v2425, %v2425
  %v2442 = vpack.c.b16 %v2426, %v2426
  %v2443 = vpack.c.b16 %v2427, %v2427
  %v2444 = vpack.c.b16 %v2428, %v2428
  %v2445 = vpack.c.b16 %v2429, %v2429
  %v2446 = vpack.c.b16 %v2430, %v2430
  %v2448 = vshrl.u32 %v2431, 16
  %v2450 = vrot.slane %v2448, 7
  %v2451 = vshll.u32 %v2431, 16
  %v2453 = vor.u32 %v2450, %v2451
  %v2454 = vrot.slane %v2450, 4
  %v2456 = vshrl.u32 %v2432, 16
  %v2458 = vrot.slane %v2456, 7
  %v2459 = vshll.u32 %v2432, 16
  %v2461 = vor.u32 %v2458, %v2459
  %v2462 = vrot.slane %v2458, 4
  %v2464 = vshrl.u32 %v2433, 16
  %v2466 = vrot.slane %v2464, 7
  %v2467 = vshll.u32 %v2433, 16
  %v2469 = vor.u32 %v2466, %v2467
  %v2470 = vrot.slane %v2466, 4
  %v2472 = vshrl.u32 %v2434, 16
  %v2474 = vrot.slane %v2472, 7
  %v2475 = vshll.u32 %v2434, 16
  %v2477 = vor.u32 %v2474, %v2475
  %v2478 = vrot.slane %v2474, 4
  %v2480 = vshrl.u32 %v2435, 16
  %v2482 = vrot.slane %v2480, 7
  %v2483 = vshll.u32 %v2435, 16
  %v2485 = vor.u32 %v2482, %v2483
  %v2486 = vrot.slane %v2482, 4
  %v2488 = vshrl.u32 %v2436, 16
  %v2490 = vrot.slane %v2488, 7
  %v2491 = vshll.u32 %v2436, 16
  %v2493 = vor.u32 %v2490, %v2491
  %v2494 = vrot.slane %v2490, 4
  %v2496 = vshrl.u32 %v2437, 16
  %v2498 = vrot.slane %v2496, 7
  %v2499 = vshll.u32 %v2437, 16
  %v2501 = vor.u32 %v2498, %v2499
  %v2502 = vrot.slane %v2498, 4
  %v2504 = vshrl.u32 %v2438, 16
  %v2506 = vrot.slane %v2504, 7
  %v2507 = vshll.u32 %v2438, 16
  %v2509 = vor.u32 %v2506, %v2507
  %v2510 = vrot.slane %v2506, 4
  %v2512 = vshrl.u32 %v2439, 16
  %v2514 = vrot.slane %v2512, 7
  %v2515 = vshll.u32 %v2439, 16
  %v2517 = vor.u32 %v2514, %v2515
  %v2518 = vrot.slane %v2514, 4
  %v2520 = vshrl.u32 %v2440, 16
  %v2522 = vrot.slane %v2520, 7
  %v2523 = vshll.u32 %v2440, 16
  %v2525 = vor.u32 %v2522, %v2523
  %v2526 = vrot.slane %v2522, 4
  %v2528 = vshrl.u32 %v2441, 16
  %v2530 = vrot.slane %v2528, 7
  %v2531 = vshll.u32 %v2441, 16
  %v2533 = vor.u32 %v2530, %v2531
  %v2534 = vrot.slane %v2530, 4
  %v2536 = vshrl.u32 %v2442, 16
  %v2538 = vrot.slane %v2536, 7
  %v2539 = vshll.u32 %v2442, 16
  %v2541 = vor.u32 %v2538, %v2539
  %v2542 = vrot.slane %v2538, 4
  %v2544 = vshrl.u32 %v2443, 16
  %v2546 = vrot.slane %v2544, 7
  %v2547 = vshll.u32 %v2443, 16
  %v2549 = vor.u32 %v2546, %v2547
  %v2550 = vrot.slane %v2546, 4
  %v2552 = vshrl.u32 %v2444, 16
  %v2554 = vrot.slane %v2552, 7
  %v2555 = vshll.u32 %v2444, 16
  %v2557 = vor.u32 %v2554, %v2555
  %v2558 = vrot.slane %v2554, 4
  %v2560 = vshrl.u32 %v2445, 16
  %v2562 = vrot.slane %v2560, 7
  %v2563 = vshll.u32 %v2445, 16
  %v2565 = vor.u32 %v2562, %v2563
  %v2566 = vrot.slane %v2562, 4
  %v2568 = vshrl.u32 %v2446, 16
  %v2570 = vrot.slane %v2568, 7
  %v2571 = vshll.u32 %v2446, 16
  %v2573 = vor.u32 %v2570, %v2571
  %v2574 = vrot.slane %v2570, 4
  %s2607 = scalar_lea.vmem [#allocation2], 8
  %vm2608 = vcmask 1043456
  %vm2609 = vmand %vm2608, %vm2337
  %v2610 = vld [vmem:[%s2607] sm:$0xf]
  %v2611 = vsel %vm2609, %v2453, %v2610
  %2612 = vst [vmem:[%s2607] sm:$0xf] %v2611
  %v2613 = vld [vmem:[%s2607 + $0x4] sm:$0x1]
  %v2614 = vsel %vm2276, %v2454, %v2613
  %2615 = vst [vmem:[%s2607 + $0x4] sm:$0x1] %v2614
  %v2616 = vld [vmem:[%s2607 + $0x8] sm:$0xf]
  %v2617 = vsel %vm2609, %v2461, %v2616
  %2618 = vst [vmem:[%s2607 + $0x8] sm:$0xf] %v2617
  %v2619 = vld [vmem:[%s2607 + $0xc] sm:$0x1]
  %v2620 = vsel %vm2276, %v2462, %v2619
  %2621 = vst [vmem:[%s2607 + $0xc] sm:$0x1] %v2620
  %v2622 = vld [vmem:[%s2607 + $0x10] sm:$0xf]
  %v2623 = vsel %vm2609, %v2469, %v2622
  %2624 = vst [vmem:[%s2607 + $0x10] sm:$0xf] %v2623
  %v2625 = vld [vmem:[%s2607 + $0x14] sm:$0x1]
  %v2626 = vsel %vm2276, %v2470, %v2625
  %2627 = vst [vmem:[%s2607 + $0x14] sm:$0x1] %v2626
  %v2628 = vld [vmem:[%s2607 + $0x18] sm:$0xf]
  %v2629 = vsel %vm2609, %v2477, %v2628
  %2630 = vst [vmem:[%s2607 + $0x18] sm:$0xf] %v2629
  %v2631 = vld [vmem:[%s2607 + $0x1c] sm:$0x1]
  %v2632 = vsel %vm2276, %v2478, %v2631
  %2633 = vst [vmem:[%s2607 + $0x1c] sm:$0x1] %v2632
  %v2634 = vld [vmem:[%s2607 + $0x20] sm:$0xf]
  %v2635 = vsel %vm2609, %v2485, %v2634
  %2636 = vst [vmem:[%s2607 + $0x20] sm:$0xf] %v2635
  %v2637 = vld [vmem:[%s2607 + $0x24] sm:$0x1]
  %v2638 = vsel %vm2276, %v2486, %v2637
  %2639 = vst [vmem:[%s2607 + $0x24] sm:$0x1] %v2638
  %v2640 = vld [vmem:[%s2607 + $0x28] sm:$0xf]
  %v2641 = vsel %vm2609, %v2493, %v2640
  %2642 = vst [vmem:[%s2607 + $0x28] sm:$0xf] %v2641
  %v2643 = vld [vmem:[%s2607 + $0x2c] sm:$0x1]
  %v2644 = vsel %vm2276, %v2494, %v2643
  %2645 = vst [vmem:[%s2607 + $0x2c] sm:$0x1] %v2644
  %v2646 = vld [vmem:[%s2607 + $0x30] sm:$0xf]
  %v2647 = vsel %vm2609, %v2501, %v2646
  %2648 = vst [vmem:[%s2607 + $0x30] sm:$0xf] %v2647
  %v2649 = vld [vmem:[%s2607 + $0x34] sm:$0x1]
  %v2650 = vsel %vm2276, %v2502, %v2649
  %2651 = vst [vmem:[%s2607 + $0x34] sm:$0x1] %v2650
  %v2652 = vld [vmem:[%s2607 + $0x38] sm:$0xf]
  %v2653 = vsel %vm2609, %v2509, %v2652
  %2654 = vst [vmem:[%s2607 + $0x38] sm:$0xf] %v2653
  %v2655 = vld [vmem:[%s2607 + $0x3c] sm:$0x1]
  %v2656 = vsel %vm2276, %v2510, %v2655
  %2657 = vst [vmem:[%s2607 + $0x3c] sm:$0x1] %v2656
  %v2658 = vld [vmem:[%s2607 + $0x50] sm:$0xf]
  %v2659 = vsel %vm2609, %v2517, %v2658
  %2660 = vst [vmem:[%s2607 + $0x50] sm:$0xf] %v2659
  %v2661 = vld [vmem:[%s2607 + $0x54] sm:$0x1]
  %v2662 = vsel %vm2276, %v2518, %v2661
  %2663 = vst [vmem:[%s2607 + $0x54] sm:$0x1] %v2662
  %v2664 = vld [vmem:[%s2607 + $0x58] sm:$0xf]
  %v2665 = vsel %vm2609, %v2525, %v2664
  %2666 = vst [vmem:[%s2607 + $0x58] sm:$0xf] %v2665
  %v2667 = vld [vmem:[%s2607 + $0x5c] sm:$0x1]
  %v2668 = vsel %vm2276, %v2526, %v2667
  %2669 = vst [vmem:[%s2607 + $0x5c] sm:$0x1] %v2668
  %v2670 = vld [vmem:[%s2607 + $0x60] sm:$0xf]
  %v2671 = vsel %vm2609, %v2533, %v2670
  %2672 = vst [vmem:[%s2607 + $0x60] sm:$0xf] %v2671
  %v2673 = vld [vmem:[%s2607 + $0x64] sm:$0x1]
  %v2674 = vsel %vm2276, %v2534, %v2673
  %2675 = vst [vmem:[%s2607 + $0x64] sm:$0x1] %v2674
  %v2676 = vld [vmem:[%s2607 + $0x68] sm:$0xf]
  %v2677 = vsel %vm2609, %v2541, %v2676
  %2678 = vst [vmem:[%s2607 + $0x68] sm:$0xf] %v2677
  %v2679 = vld [vmem:[%s2607 + $0x6c] sm:$0x1]
  %v2680 = vsel %vm2276, %v2542, %v2679
  %2681 = vst [vmem:[%s2607 + $0x6c] sm:$0x1] %v2680
  %v2682 = vld [vmem:[%s2607 + $0x70] sm:$0xf]
  %v2683 = vsel %vm2609, %v2549, %v2682
  %2684 = vst [vmem:[%s2607 + $0x70] sm:$0xf] %v2683
  %v2685 = vld [vmem:[%s2607 + $0x74] sm:$0x1]
  %v2686 = vsel %vm2276, %v2550, %v2685
  %2687 = vst [vmem:[%s2607 + $0x74] sm:$0x1] %v2686
  %v2688 = vld [vmem:[%s2607 + $0x78] sm:$0xf]
  %v2689 = vsel %vm2609, %v2557, %v2688
  %2690 = vst [vmem:[%s2607 + $0x78] sm:$0xf] %v2689
  %v2691 = vld [vmem:[%s2607 + $0x7c] sm:$0x1]
  %v2692 = vsel %vm2276, %v2558, %v2691
  %2693 = vst [vmem:[%s2607 + $0x7c] sm:$0x1] %v2692
  %v2694 = vld [vmem:[%s2607 + $0x80] sm:$0xf]
  %v2695 = vsel %vm2609, %v2565, %v2694
  %2696 = vst [vmem:[%s2607 + $0x80] sm:$0xf] %v2695
  %v2697 = vld [vmem:[%s2607 + $0x84] sm:$0x1]
  %v2698 = vsel %vm2276, %v2566, %v2697
  %2699 = vst [vmem:[%s2607 + $0x84] sm:$0x1] %v2698
  %v2700 = vld [vmem:[%s2607 + $0x88] sm:$0xf]
  %v2701 = vsel %vm2609, %v2573, %v2700
  %2702 = vst [vmem:[%s2607 + $0x88] sm:$0xf] %v2701
  %v2703 = vld [vmem:[%s2607 + $0x8c] sm:$0x1]
  %v2704 = vsel %vm2276, %v2574, %v2703
  %2705 = vst [vmem:[%s2607 + $0x8c] sm:$0x1] %v2704
  %v2706 = vld [vmem:[#allocation2] sm:$0xf]
  %v2707 = vld [vmem:[#allocation2 + $0x8] sm:$0xf]
  %v2708 = vld [vmem:[#allocation2 + $0x10] sm:$0xf]
  %v2709 = vld [vmem:[#allocation2 + $0x18] sm:$0xf]
  %v2710 = vld [vmem:[#allocation2 + $0x20] sm:$0xf]
  %v2711 = vld [vmem:[#allocation2 + $0x28] sm:$0xf]
  %v2712 = vld [vmem:[#allocation2 + $0x30] sm:$0xf]
  %v2713 = vld [vmem:[#allocation2 + $0x38] sm:$0xf]
  %v2714 = vld [vmem:[#allocation2 + $0x50] sm:$0xf]
  %v2715 = vld [vmem:[#allocation2 + $0x58] sm:$0xf]
  %v2716 = vld [vmem:[#allocation2 + $0x60] sm:$0xf]
  %v2717 = vld [vmem:[#allocation2 + $0x68] sm:$0xf]
  %v2718 = vld [vmem:[#allocation2 + $0x70] sm:$0xf]
  %v2719 = vld [vmem:[#allocation2 + $0x78] sm:$0xf]
  %v2720 = vld [vmem:[#allocation2 + $0x80] sm:$0xf]
  %v2721 = vld [vmem:[#allocation2 + $0x88] sm:$0xf]
  %v2722 = vld [vmem:[%s2] sm:$0xf]
  %v2723 = vld [vmem:[%s2 + $0x4] sm:$0xf]
  %v2724 = vld [vmem:[%s2 + $0x8] sm:$0xf]
  %v2725 = vld [vmem:[%s2 + $0xc] sm:$0xf]
  %v2726 = vld [vmem:[%s2 + $0x10] sm:$0xf]
  %v2727 = vld [vmem:[%s2 + $0x14] sm:$0xf]
  %v2728 = vld [vmem:[%s2 + $0x18] sm:$0xf]
  %v2729 = vld [vmem:[%s2 + $0x1c] sm:$0xf]
  %v2730 = vld [vmem:[%s2 + $0x20] sm:$0xf]
  %v2731 = vld [vmem:[%s2 + $0x24] sm:$0xf]
  %v2732 = vld [vmem:[%s2 + $0x28] sm:$0xf]
  %v2733 = vld [vmem:[%s2 + $0x2c] sm:$0xf]
  %v2734 = vld [vmem:[%s2 + $0x30] sm:$0xf]
  %v2735 = vld [vmem:[%s2 + $0x34] sm:$0xf]
  %v2736 = vld [vmem:[%s2 + $0x38] sm:$0xf]
  %v2737 = vld [vmem:[%s2 + $0x3c] sm:$0xf]
  %v2738 = vld [vmem:[#allocation2 + $0x4] sm:$0x1]
  %v2739 = vld [vmem:[#allocation2 + $0xc] sm:$0x1]
  %v2740 = vld [vmem:[#allocation2 + $0x14] sm:$0x1]
  %v2741 = vld [vmem:[#allocation2 + $0x1c] sm:$0x1]
  %v2742 = vld [vmem:[#allocation2 + $0x24] sm:$0x1]
  %v2743 = vld [vmem:[#allocation2 + $0x2c] sm:$0x1]
  %v2744 = vld [vmem:[#allocation2 + $0x34] sm:$0x1]
  %v2745 = vld [vmem:[#allocation2 + $0x3c] sm:$0x1]
  %v2746 = vld [vmem:[#allocation2 + $0x54] sm:$0x1]
  %v2747 = vld [vmem:[#allocation2 + $0x5c] sm:$0x1]
  %v2748 = vld [vmem:[#allocation2 + $0x64] sm:$0x1]
  %v2749 = vld [vmem:[#allocation2 + $0x6c] sm:$0x1]
  %v2750 = vld [vmem:[#allocation2 + $0x74] sm:$0x1]
  %v2751 = vld [vmem:[#allocation2 + $0x7c] sm:$0x1]
  %v2752 = vld [vmem:[#allocation2 + $0x84] sm:$0x1]
  %v2753 = vld [vmem:[#allocation2 + $0x8c] sm:$0x1]
  %v2755 = vshrl.u32 %v2706, 16
  %v2757 = vrot.slane %v2755, 4
  %v2758 = vshll.u32 %v2706, 16
  %v2760 = vrot.slane %v2758, 5
  %v2761 = vor.u32 %v2757, %v2760
  %v2762 = vrot.slane %v2761, 4
  %v2764 = vshll.u32 %v2738, 16
  %v2766 = vrot.slane %v2764, 5
  %v2767 = vsel %vm462, %v2762, %v2766
  %v2769 = vshrl.u32 %v2707, 16
  %v2771 = vrot.slane %v2769, 4
  %v2772 = vshll.u32 %v2707, 16
  %v2774 = vrot.slane %v2772, 5
  %v2775 = vor.u32 %v2771, %v2774
  %v2776 = vrot.slane %v2775, 4
  %v2778 = vshll.u32 %v2739, 16
  %v2780 = vrot.slane %v2778, 5
  %v2781 = vsel %vm462, %v2776, %v2780
  %v2783 = vshrl.u32 %v2708, 16
  %v2785 = vrot.slane %v2783, 4
  %v2786 = vshll.u32 %v2708, 16
  %v2788 = vrot.slane %v2786, 5
  %v2789 = vor.u32 %v2785, %v2788
  %v2790 = vrot.slane %v2789, 4
  %v2792 = vshll.u32 %v2740, 16
  %v2794 = vrot.slane %v2792, 5
  %v2795 = vsel %vm462, %v2790, %v2794
  %v2797 = vshrl.u32 %v2709, 16
  %v2799 = vrot.slane %v2797, 4
  %v2800 = vshll.u32 %v2709, 16
  %v2802 = vrot.slane %v2800, 5
  %v2803 = vor.u32 %v2799, %v2802
  %v2804 = vrot.slane %v2803, 4
  %v2806 = vshll.u32 %v2741, 16
  %v2808 = vrot.slane %v2806, 5
  %v2809 = vsel %vm462, %v2804, %v2808
  %v2811 = vshrl.u32 %v2710, 16
  %v2813 = vrot.slane %v2811, 4
  %v2814 = vshll.u32 %v2710, 16
  %v2816 = vrot.slane %v2814, 5
  %v2817 = vor.u32 %v2813, %v2816
  %v2818 = vrot.slane %v2817, 4
  %v2820 = vshll.u32 %v2742, 16
  %v2822 = vrot.slane %v2820, 5
  %v2823 = vsel %vm462, %v2818, %v2822
  %v2825 = vshrl.u32 %v2711, 16
  %v2827 = vrot.slane %v2825, 4
  %v2828 = vshll.u32 %v2711, 16
  %v2830 = vrot.slane %v2828, 5
  %v2831 = vor.u32 %v2827, %v2830
  %v2832 = vrot.slane %v2831, 4
  %v2834 = vshll.u32 %v2743, 16
  %v2836 = vrot.slane %v2834, 5
  %v2837 = vsel %vm462, %v2832, %v2836
  %v2839 = vshrl.u32 %v2712, 16
  %v2841 = vrot.slane %v2839, 4
  %v2842 = vshll.u32 %v2712, 16
  %v2844 = vrot.slane %v2842, 5
  %v2845 = vor.u32 %v2841, %v2844
  %v2846 = vrot.slane %v2845, 4
  %v2848 = vshll.u32 %v2744, 16
  %v2850 = vrot.slane %v2848, 5
  %v2851 = vsel %vm462, %v2846, %v2850
  %v2853 = vshrl.u32 %v2713, 16
  %v2855 = vrot.slane %v2853, 4
  %v2856 = vshll.u32 %v2713, 16
  %v2858 = vrot.slane %v2856, 5
  %v2859 = vor.u32 %v2855, %v2858
  %v2860 = vrot.slane %v2859, 4
  %v2862 = vshll.u32 %v2745, 16
  %v2864 = vrot.slane %v2862, 5
  %v2865 = vsel %vm462, %v2860, %v2864
  %v2867 = vshrl.u32 %v2714, 16
  %v2869 = vrot.slane %v2867, 4
  %v2870 = vshll.u32 %v2714, 16
  %v2872 = vrot.slane %v2870, 5
  %v2873 = vor.u32 %v2869, %v2872
  %v2874 = vrot.slane %v2873, 4
  %v2876 = vshll.u32 %v2746, 16
  %v2878 = vrot.slane %v2876, 5
  %v2879 = vsel %vm462, %v2874, %v2878
  %v2881 = vshrl.u32 %v2715, 16
  %v2883 = vrot.slane %v2881, 4
  %v2884 = vshll.u32 %v2715, 16
  %v2886 = vrot.slane %v2884, 5
  %v2887 = vor.u32 %v2883, %v2886
  %v2888 = vrot.slane %v2887, 4
  %v2890 = vshll.u32 %v2747, 16
  %v2892 = vrot.slane %v2890, 5
  %v2893 = vsel %vm462, %v2888, %v2892
  %v2895 = vshrl.u32 %v2716, 16
  %v2897 = vrot.slane %v2895, 4
  %v2898 = vshll.u32 %v2716, 16
  %v2900 = vrot.slane %v2898, 5
  %v2901 = vor.u32 %v2897, %v2900
  %v2902 = vrot.slane %v2901, 4
  %v2904 = vshll.u32 %v2748, 16
  %v2906 = vrot.slane %v2904, 5
  %v2907 = vsel %vm462, %v2902, %v2906
  %v2909 = vshrl.u32 %v2717, 16
  %v2911 = vrot.slane %v2909, 4
  %v2912 = vshll.u32 %v2717, 16
  %v2914 = vrot.slane %v2912, 5
  %v2915 = vor.u32 %v2911, %v2914
  %v2916 = vrot.slane %v2915, 4
  %v2918 = vshll.u32 %v2749, 16
  %v2920 = vrot.slane %v2918, 5
  %v2921 = vsel %vm462, %v2916, %v2920
  %v2923 = vshrl.u32 %v2718, 16
  %v2925 = vrot.slane %v2923, 4
  %v2926 = vshll.u32 %v2718, 16
  %v2928 = vrot.slane %v2926, 5
  %v2929 = vor.u32 %v2925, %v2928
  %v2930 = vrot.slane %v2929, 4
  %v2932 = vshll.u32 %v2750, 16
  %v2934 = vrot.slane %v2932, 5
  %v2935 = vsel %vm462, %v2930, %v2934
  %v2937 = vshrl.u32 %v2719, 16
  %v2939 = vrot.slane %v2937, 4
  %v2940 = vshll.u32 %v2719, 16
  %v2942 = vrot.slane %v2940, 5
  %v2943 = vor.u32 %v2939, %v2942
  %v2944 = vrot.slane %v2943, 4
  %v2946 = vshll.u32 %v2751, 16
  %v2948 = vrot.slane %v2946, 5
  %v2949 = vsel %vm462, %v2944, %v2948
  %v2951 = vshrl.u32 %v2720, 16
  %v2953 = vrot.slane %v2951, 4
  %v2954 = vshll.u32 %v2720, 16
  %v2956 = vrot.slane %v2954, 5
  %v2957 = vor.u32 %v2953, %v2956
  %v2958 = vrot.slane %v2957, 4
  %v2960 = vshll.u32 %v2752, 16
  %v2962 = vrot.slane %v2960, 5
  %v2963 = vsel %vm462, %v2958, %v2962
  %v2965 = vshrl.u32 %v2721, 16
  %v2967 = vrot.slane %v2965, 4
  %v2968 = vshll.u32 %v2721, 16
  %v2970 = vrot.slane %v2968, 5
  %v2971 = vor.u32 %v2967, %v2970
  %v2972 = vrot.slane %v2971, 4
  %v2974 = vshll.u32 %v2753, 16
  %v2976 = vrot.slane %v2974, 5
  %v2977 = vsel %vm462, %v2972, %v2976
  %s2978 = scalar_lea.vmem %s2, 64
  %v2979 = vld [vmem:[%s2978] sm:$0xf]
  %v2980 = vld [vmem:[%s2978 + $0x4] sm:$0xf]
  %v2981 = vld [vmem:[%s2978 + $0x8] sm:$0xf]
  %v2982 = vld [vmem:[%s2978 + $0xc] sm:$0xf]
  %v2983 = vld [vmem:[%s2978 + $0x10] sm:$0xf]
  %v2984 = vld [vmem:[%s2978 + $0x14] sm:$0xf]
  %v2985 = vld [vmem:[%s2978 + $0x18] sm:$0xf]
  %v2986 = vld [vmem:[%s2978 + $0x1c] sm:$0xf]
  %v2987 = vld [vmem:[%s2978 + $0x20] sm:$0xf]
  %v2988 = vld [vmem:[%s2978 + $0x24] sm:$0xf]
  %v2989 = vld [vmem:[%s2978 + $0x28] sm:$0xf]
  %v2990 = vld [vmem:[%s2978 + $0x2c] sm:$0xf]
  %v2991 = vld [vmem:[%s2978 + $0x30] sm:$0xf]
  %v2992 = vld [vmem:[%s2978 + $0x34] sm:$0xf]
  %v2993 = vld [vmem:[%s2978 + $0x38] sm:$0xf]
  %v2994 = vld [vmem:[%s2978 + $0x3c] sm:$0xf]
  %v2995 = vunpack.c.l.b16 %v2767
  %v2996 = vunpack.c.l.b16 %v2781
  %v2997 = vunpack.c.l.b16 %v2795
  %v2998 = vunpack.c.l.b16 %v2809
  %v2999 = vunpack.c.l.b16 %v2823
  %v3000 = vunpack.c.l.b16 %v2837
  %v3001 = vunpack.c.l.b16 %v2851
  %v3002 = vunpack.c.l.b16 %v2865
  %v3003 = vunpack.c.l.b16 %v2879
  %v3004 = vunpack.c.l.b16 %v2893
  %v3005 = vunpack.c.l.b16 %v2907
  %v3006 = vunpack.c.l.b16 %v2921
  %v3007 = vunpack.c.l.b16 %v2935
  %v3008 = vunpack.c.l.b16 %v2949
  %v3009 = vunpack.c.l.b16 %v2963
  %v3010 = vunpack.c.l.b16 %v2977
  %v3011 = vpack.c.b16 %v2996, %v2995
  %v3012 = vpack.c.b16 %v2998, %v2997
  %v3013 = vpack.c.b16 %v3000, %v2999
  %v3014 = vpack.c.b16 %v3002, %v3001
  %v3015 = vpack.c.b16 %v3004, %v3003
  %v3016 = vpack.c.b16 %v3006, %v3005
  %v3017 = vpack.c.b16 %v3008, %v3007
  %v3018 = vpack.c.b16 %v3010, %v3009
  %v3043 = vunpack.c.l.b16 %v2979
  %v3044 = vunpack.c.l.b16 %v2980
  %v3045 = vunpack.c.l.b16 %v2981
  %v3046 = vunpack.c.l.b16 %v2982
  %v3047 = vunpack.c.l.b16 %v2983
  %v3048 = vunpack.c.l.b16 %v2984
  %v3049 = vunpack.c.l.b16 %v2985
  %v3050 = vunpack.c.l.b16 %v2986
  %v3051 = vunpack.c.l.b16 %v2987
  %v3052 = vunpack.c.l.b16 %v2988
  %v3053 = vunpack.c.l.b16 %v2989
  %v3054 = vunpack.c.l.b16 %v2990
  %v3055 = vunpack.c.l.b16 %v2991
  %v3056 = vunpack.c.l.b16 %v2992
  %v3057 = vunpack.c.l.b16 %v2993
  %v3058 = vunpack.c.l.b16 %v2994
  %v3059 = vpack.c.b16 %v3044, %v3043
  %v3060 = vpack.c.b16 %v3046, %v3045
  %v3061 = vpack.c.b16 %v3048, %v3047
  %v3062 = vpack.c.b16 %v3050, %v3049
  %v3063 = vpack.c.b16 %v3052, %v3051
  %v3064 = vpack.c.b16 %v3054, %v3053
  %v3065 = vpack.c.b16 %v3056, %v3055
  %v3066 = vpack.c.b16 %v3058, %v3057
  %3075 = vmatprep.subr.bf16.mxu0 0
  %3076 = vmatpush1.bf16.msra.mxu0 %v3066
  %3077 = vmatprep.subr.bf16.mxu0 0
  %3078 = vmatpush1.bf16.msra.mxu0 %v3065
  %3079 = vmatprep.subr.bf16.mxu0 0
  %3080 = vmatpush1.bf16.msra.mxu0 %v3064
  %3081 = vmatprep.subr.bf16.mxu0 0
  %3082 = vmatpush1.bf16.msra.mxu0 %v3063
  %3083 = vmatprep.subr.bf16.mxu0 0
  %3084 = vmatpush1.bf16.msra.mxu0 %v3062
  %3085 = vmatprep.subr.bf16.mxu0 0
  %3086 = vmatpush1.bf16.msra.mxu0 %v3061
  %3087 = vmatprep.subr.bf16.mxu0 0
  %3088 = vmatpush1.bf16.msra.mxu0 %v3060
  %3089 = vmatprep.subr.bf16.mxu0 0
  %3090 = vmatpush1.bf16.msra.mxu0 %v3059
  %3091 = vmatprep.subr.bf16.mxu0 0
  %3092 = vmatpush2.bf16.msra.mxu0 0
  %3093 = vmatprep.subr.bf16.mxu0 0
  %3094 = vmatpush2.bf16.msra.mxu0 0
  %3095 = vmatprep.subr.bf16.mxu0 0
  %3096 = vmatpush2.bf16.msra.mxu0 0
  %3097 = vmatprep.subr.bf16.mxu0 0
  %3098 = vmatpush2.bf16.msra.mxu0 0
  %3099 = vmatprep.subr.bf16.mxu0 0
  %3100 = vmatpush2.bf16.msra.mxu0 0
  %3101 = vmatprep.subr.bf16.mxu0 0
  %3102 = vmatpush2.bf16.msra.mxu0 0
  %3103 = vmatprep.subr.bf16.mxu0 0
  %3104 = vmatpush2.bf16.msra.mxu0 0
  %3105 = vmatprep.subr.bf16.mxu0 0
  %3106 = vmatpush2.bf16.msra.mxu0 0
  %3107 = vmatprep.mubr.bf16.mxu0 0
  %3108 = vmatmul.mubr.bf16.gmra.mxu0 %v3011
  %v3109 = vpop.f32.mrf.mxu0
  %v3110 = vadd.f32 0.0, %v3109
  %v3111 = vpop.f32.mrf.mxu0
  %v3112 = vpop.f32.mrf.mxu0
  %v3113 = vadd.f32 0.0, %v3112
  %v3114 = vpop.f32.mrf.mxu0
  %3115 = vmatprep.mubr.bf16.mxu0 0
  %3116 = vmatmul.mubr.bf16.gmra.mxu0 %v3012
  %v3117 = vpop.f32.mrf.mxu0
  %v3118 = vadd.f32 0.0, %v3117
  %v3119 = vpop.f32.mrf.mxu0
  %v3120 = vpop.f32.mrf.mxu0
  %v3121 = vadd.f32 0.0, %v3120
  %v3122 = vpop.f32.mrf.mxu0
  %3123 = vmatprep.mubr.bf16.mxu0 0
  %3124 = vmatmul.mubr.bf16.gmra.mxu0 %v3013
  %v3125 = vpop.f32.mrf.mxu0
  %v3126 = vadd.f32 0.0, %v3125
  %v3127 = vpop.f32.mrf.mxu0
  %v3128 = vpop.f32.mrf.mxu0
  %v3129 = vadd.f32 0.0, %v3128
  %v3130 = vpop.f32.mrf.mxu0
  %3131 = vmatprep.mubr.bf16.mxu0 0
  %3132 = vmatmul.mubr.bf16.gmra.mxu0 %v3014
  %v3133 = vpop.f32.mrf.mxu0
  %v3134 = vadd.f32 0.0, %v3133
  %v3135 = vpop.f32.mrf.mxu0
  %v3136 = vpop.f32.mrf.mxu0
  %v3137 = vadd.f32 0.0, %v3136
  %v3138 = vpop.f32.mrf.mxu0
  %3139 = vmatprep.mubr.bf16.mxu0 0
  %3140 = vmatmul.mubr.bf16.gmra.mxu0 %v3015
  %v3141 = vpop.f32.mrf.mxu0
  %v3142 = vadd.f32 0.0, %v3141
  %v3143 = vpop.f32.mrf.mxu0
  %v3144 = vpop.f32.mrf.mxu0
  %v3145 = vadd.f32 0.0, %v3144
  %v3146 = vpop.f32.mrf.mxu0
  %3147 = vmatprep.mubr.bf16.mxu0 0
  %3148 = vmatmul.mubr.bf16.gmra.mxu0 %v3016
  %v3149 = vpop.f32.mrf.mxu0
  %v3150 = vadd.f32 0.0, %v3149
  %v3151 = vpop.f32.mrf.mxu0
  %v3152 = vpop.f32.mrf.mxu0
  %v3153 = vadd.f32 0.0, %v3152
  %v3154 = vpop.f32.mrf.mxu0
  %3155 = vmatprep.mubr.bf16.mxu0 0
  %3156 = vmatmul.mubr.bf16.gmra.mxu0 %v3017
  %v3157 = vpop.f32.mrf.mxu0
  %v3158 = vadd.f32 0.0, %v3157
  %v3159 = vpop.f32.mrf.mxu0
  %v3160 = vpop.f32.mrf.mxu0
  %v3161 = vadd.f32 0.0, %v3160
  %v3162 = vpop.f32.mrf.mxu0
  %3163 = vmatprep.mubr.bf16.mxu0 0
  %3164 = vmatmul.mubr.bf16.gmra.mxu0 %v3018
  %v3165 = vpop.f32.mrf.mxu0
  %v3166 = vadd.f32 0.0, %v3165
  %v3167 = vpop.f32.mrf.mxu0
  %v3168 = vpop.f32.mrf.mxu0
  %v3169 = vadd.f32 0.0, %v3168
  %v3170 = vpop.f32.mrf.mxu0
  %3171 = vdwg.mxu0
  %v3188 = vunpack.c.l.b16 %v2706
  %v3189 = vunpack.c.l.b16 %v2707
  %v3190 = vunpack.c.l.b16 %v2708
  %v3191 = vunpack.c.l.b16 %v2709
  %v3192 = vunpack.c.l.b16 %v2710
  %v3193 = vunpack.c.l.b16 %v2711
  %v3194 = vunpack.c.l.b16 %v2712
  %v3195 = vunpack.c.l.b16 %v2713
  %v3196 = vunpack.c.l.b16 %v2714
  %v3197 = vunpack.c.l.b16 %v2715
  %v3198 = vunpack.c.l.b16 %v2716
  %v3199 = vunpack.c.l.b16 %v2717
  %v3200 = vunpack.c.l.b16 %v2718
  %v3201 = vunpack.c.l.b16 %v2719
  %v3202 = vunpack.c.l.b16 %v2720
  %v3203 = vunpack.c.l.b16 %v2721
  %v3204 = vpack.c.b16 %v3189, %v3188
  %v3205 = vpack.c.b16 %v3191, %v3190
  %v3206 = vpack.c.b16 %v3193, %v3192
  %v3207 = vpack.c.b16 %v3195, %v3194
  %v3208 = vpack.c.b16 %v3197, %v3196
  %v3209 = vpack.c.b16 %v3199, %v3198
  %v3210 = vpack.c.b16 %v3201, %v3200
  %v3211 = vpack.c.b16 %v3203, %v3202
  %v3236 = vunpack.c.l.b16 %v2722
  %v3237 = vunpack.c.l.b16 %v2723
  %v3238 = vunpack.c.l.b16 %v2724
  %v3239 = vunpack.c.l.b16 %v2725
  %v3240 = vunpack.c.l.b16 %v2726
  %v3241 = vunpack.c.l.b16 %v2727
  %v3242 = vunpack.c.l.b16 %v2728
  %v3243 = vunpack.c.l.b16 %v2729
  %v3244 = vunpack.c.l.b16 %v2730
  %v3245 = vunpack.c.l.b16 %v2731
  %v3246 = vunpack.c.l.b16 %v2732
  %v3247 = vunpack.c.l.b16 %v2733
  %v3248 = vunpack.c.l.b16 %v2734
  %v3249 = vunpack.c.l.b16 %v2735
  %v3250 = vunpack.c.l.b16 %v2736
  %v3251 = vunpack.c.l.b16 %v2737
  %v3252 = vpack.c.b16 %v3237, %v3236
  %v3253 = vpack.c.b16 %v3239, %v3238
  %v3254 = vpack.c.b16 %v3241, %v3240
  %v3255 = vpack.c.b16 %v3243, %v3242
  %v3256 = vpack.c.b16 %v3245, %v3244
  %v3257 = vpack.c.b16 %v3247, %v3246
  %v3258 = vpack.c.b16 %v3249, %v3248
  %v3259 = vpack.c.b16 %v3251, %v3250
  %3268 = vmatprep.subr.bf16.mxu0 0
  %3269 = vmatpush1.bf16.msra.mxu0 %v3259
  %3270 = vmatprep.subr.bf16.mxu0 0
  %3271 = vmatpush1.bf16.msra.mxu0 %v3258
  %3272 = vmatprep.subr.bf16.mxu0 0
  %3273 = vmatpush1.bf16.msra.mxu0 %v3257
  %3274 = vmatprep.subr.bf16.mxu0 0
  %3275 = vmatpush1.bf16.msra.mxu0 %v3256
  %3276 = vmatprep.subr.bf16.mxu0 0
  %3277 = vmatpush1.bf16.msra.mxu0 %v3255
  %3278 = vmatprep.subr.bf16.mxu0 0
  %3279 = vmatpush1.bf16.msra.mxu0 %v3254
  %3280 = vmatprep.subr.bf16.mxu0 0
  %3281 = vmatpush1.bf16.msra.mxu0 %v3253
  %3282 = vmatprep.subr.bf16.mxu0 0
  %3283 = vmatpush1.bf16.msra.mxu0 %v3252
  %3284 = vmatprep.subr.bf16.mxu0 0
  %3285 = vmatpush2.bf16.msra.mxu0 0
  %3286 = vmatprep.subr.bf16.mxu0 0
  %3287 = vmatpush2.bf16.msra.mxu0 0
  %3288 = vmatprep.subr.bf16.mxu0 0
  %3289 = vmatpush2.bf16.msra.mxu0 0
  %3290 = vmatprep.subr.bf16.mxu0 0
  %3291 = vmatpush2.bf16.msra.mxu0 0
  %3292 = vmatprep.subr.bf16.mxu0 0
  %3293 = vmatpush2.bf16.msra.mxu0 0
  %3294 = vmatprep.subr.bf16.mxu0 0
  %3295 = vmatpush2.bf16.msra.mxu0 0
  %3296 = vmatprep.subr.bf16.mxu0 0
  %3297 = vmatpush2.bf16.msra.mxu0 0
  %3298 = vmatprep.subr.bf16.mxu0 0
  %3299 = vmatpush2.bf16.msra.mxu0 0
  %3300 = vmatprep.mubr.bf16.mxu0 0
  %3301 = vmatmul.mubr.bf16.gmra.mxu0 %v3204
  %v3302 = vpop.f32.mrf.mxu0
  %v3303 = vadd.f32 %v3110, %v3302
  %v3304 = vpop.f32.mrf.mxu0
  %v3305 = vpop.f32.mrf.mxu0
  %v3306 = vadd.f32 %v3113, %v3305
  %v3307 = vpop.f32.mrf.mxu0
  %3308 = vmatprep.mubr.bf16.mxu0 0
  %3309 = vmatmul.mubr.bf16.gmra.mxu0 %v3205
  %v3310 = vpop.f32.mrf.mxu0
  %v3311 = vadd.f32 %v3118, %v3310
  %v3312 = vpop.f32.mrf.mxu0
  %v3313 = vpop.f32.mrf.mxu0
  %v3314 = vadd.f32 %v3121, %v3313
  %v3315 = vpop.f32.mrf.mxu0
  %3316 = vmatprep.mubr.bf16.mxu0 0
  %3317 = vmatmul.mubr.bf16.gmra.mxu0 %v3206
  %v3318 = vpop.f32.mrf.mxu0
  %v3319 = vadd.f32 %v3126, %v3318
  %v3320 = vpop.f32.mrf.mxu0
  %v3321 = vpop.f32.mrf.mxu0
  %v3322 = vadd.f32 %v3129, %v3321
  %v3323 = vpop.f32.mrf.mxu0
  %3324 = vmatprep.mubr.bf16.mxu0 0
  %3325 = vmatmul.mubr.bf16.gmra.mxu0 %v3207
  %v3326 = vpop.f32.mrf.mxu0
  %v3327 = vadd.f32 %v3134, %v3326
  %v3328 = vpop.f32.mrf.mxu0
  %v3329 = vpop.f32.mrf.mxu0
  %v3330 = vadd.f32 %v3137, %v3329
  %v3331 = vpop.f32.mrf.mxu0
  %3332 = vmatprep.mubr.bf16.mxu0 0
  %3333 = vmatmul.mubr.bf16.gmra.mxu0 %v3208
  %v3334 = vpop.f32.mrf.mxu0
  %v3335 = vadd.f32 %v3142, %v3334
  %v3336 = vpop.f32.mrf.mxu0
  %v3337 = vpop.f32.mrf.mxu0
  %v3338 = vadd.f32 %v3145, %v3337
  %v3339 = vpop.f32.mrf.mxu0
  %3340 = vmatprep.mubr.bf16.mxu0 0
  %3341 = vmatmul.mubr.bf16.gmra.mxu0 %v3209
  %v3342 = vpop.f32.mrf.mxu0
  %v3343 = vadd.f32 %v3150, %v3342
  %v3344 = vpop.f32.mrf.mxu0
  %v3345 = vpop.f32.mrf.mxu0
  %v3346 = vadd.f32 %v3153, %v3345
  %v3347 = vpop.f32.mrf.mxu0
  %3348 = vmatprep.mubr.bf16.mxu0 0
  %3349 = vmatmul.mubr.bf16.gmra.mxu0 %v3210
  %v3350 = vpop.f32.mrf.mxu0
  %v3351 = vadd.f32 %v3158, %v3350
  %v3352 = vpop.f32.mrf.mxu0
  %v3353 = vpop.f32.mrf.mxu0
  %v3354 = vadd.f32 %v3161, %v3353
  %v3355 = vpop.f32.mrf.mxu0
  %3356 = vmatprep.mubr.bf16.mxu0 0
  %3357 = vmatmul.mubr.bf16.gmra.mxu0 %v3211
  %v3358 = vpop.f32.mrf.mxu0
  %v3359 = vadd.f32 %v3166, %v3358
  %v3360 = vpop.f32.mrf.mxu0
  %v3361 = vpop.f32.mrf.mxu0
  %v3362 = vadd.f32 %v3169, %v3361
  %v3363 = vpop.f32.mrf.mxu0
  %3364 = vdwg.mxu0
  %v3365 = vld [vmem:[#allocation2] sm:$0xe]
  %v3366 = vld [vmem:[#allocation2 + $0x8] sm:$0xe]
  %v3367 = vld [vmem:[#allocation2 + $0x10] sm:$0xe]
  %v3368 = vld [vmem:[#allocation2 + $0x18] sm:$0xe]
  %v3369 = vld [vmem:[#allocation2 + $0x20] sm:$0xe]
  %v3370 = vld [vmem:[#allocation2 + $0x28] sm:$0xe]
  %v3371 = vld [vmem:[#allocation2 + $0x30] sm:$0xe]
  %v3372 = vld [vmem:[#allocation2 + $0x38] sm:$0xe]
  %v3373 = vld [vmem:[#allocation2 + $0x50] sm:$0xe]
  %v3374 = vld [vmem:[#allocation2 + $0x58] sm:$0xe]
  %v3375 = vld [vmem:[#allocation2 + $0x60] sm:$0xe]
  %v3376 = vld [vmem:[#allocation2 + $0x68] sm:$0xe]
  %v3377 = vld [vmem:[#allocation2 + $0x70] sm:$0xe]
  %v3378 = vld [vmem:[#allocation2 + $0x78] sm:$0xe]
  %v3379 = vld [vmem:[#allocation2 + $0x80] sm:$0xe]
  %v3380 = vld [vmem:[#allocation2 + $0x88] sm:$0xe]
  %vm3413 = vcmask 1042432
  %vm3414 = vcmask 1046532
  %vm3415 = vmor %vm3413, %vm3414
  %v3416 = vrot.slane %v3365, 5
  %v3417 = vrot.slane %v3416, 4
  %v3418 = vrot.slane %v2738, 5
  %v3419 = vsel %vm3415, %v3417, %v3418
  %v3420 = vrot.slane %v3366, 5
  %v3421 = vrot.slane %v3420, 4
  %v3422 = vrot.slane %v2739, 5
  %v3423 = vsel %vm3415, %v3421, %v3422
  %v3424 = vrot.slane %v3367, 5
  %v3425 = vrot.slane %v3424, 4
  %v3426 = vrot.slane %v2740, 5
  %v3427 = vsel %vm3415, %v3425, %v3426
  %v3428 = vrot.slane %v3368, 5
  %v3429 = vrot.slane %v3428, 4
  %v3430 = vrot.slane %v2741, 5
  %v3431 = vsel %vm3415, %v3429, %v3430
  %v3432 = vrot.slane %v3369, 5
  %v3433 = vrot.slane %v3432, 4
  %v3434 = vrot.slane %v2742, 5
  %v3435 = vsel %vm3415, %v3433, %v3434
  %v3436 = vrot.slane %v3370, 5
  %v3437 = vrot.slane %v3436, 4
  %v3438 = vrot.slane %v2743, 5
  %v3439 = vsel %vm3415, %v3437, %v3438
  %v3440 = vrot.slane %v3371, 5
  %v3441 = vrot.slane %v3440, 4
  %v3442 = vrot.slane %v2744, 5
  %v3443 = vsel %vm3415, %v3441, %v3442
  %v3444 = vrot.slane %v3372, 5
  %v3445 = vrot.slane %v3444, 4
  %v3446 = vrot.slane %v2745, 5
  %v3447 = vsel %vm3415, %v3445, %v3446
  %v3448 = vrot.slane %v3373, 5
  %v3449 = vrot.slane %v3448, 4
  %v3450 = vrot.slane %v2746, 5
  %v3451 = vsel %vm3415, %v3449, %v3450
  %v3452 = vrot.slane %v3374, 5
  %v3453 = vrot.slane %v3452, 4
  %v3454 = vrot.slane %v2747, 5
  %v3455 = vsel %vm3415, %v3453, %v3454
  %v3456 = vrot.slane %v3375, 5
  %v3457 = vrot.slane %v3456, 4
  %v3458 = vrot.slane %v2748, 5
  %v3459 = vsel %vm3415, %v3457, %v3458
  %v3460 = vrot.slane %v3376, 5
  %v3461 = vrot.slane %v3460, 4
  %v3462 = vrot.slane %v2749, 5
  %v3463 = vsel %vm3415, %v3461, %v3462
  %v3464 = vrot.slane %v3377, 5
  %v3465 = vrot.slane %v3464, 4
  %v3466 = vrot.slane %v2750, 5
  %v3467 = vsel %vm3415, %v3465, %v3466
  %v3468 = vrot.slane %v3378, 5
  %v3469 = vrot.slane %v3468, 4
  %v3470 = vrot.slane %v2751, 5
  %v3471 = vsel %vm3415, %v3469, %v3470
  %v3472 = vrot.slane %v3379, 5
  %v3473 = vrot.slane %v3472, 4
  %v3474 = vrot.slane %v2752, 5
  %v3475 = vsel %vm3415, %v3473, %v3474
  %v3476 = vrot.slane %v3380, 5
  %v3477 = vrot.slane %v3476, 4
  %v3478 = vrot.slane %v2753, 5
  %v3479 = vsel %vm3415, %v3477, %v3478
  %s3480 = scalar_lea.vmem %s2, 128
  %v3481 = vld [vmem:[%s3480] sm:$0xf]
  %v3482 = vld [vmem:[%s3480 + $0x4] sm:$0xf]
  %v3483 = vld [vmem:[%s3480 + $0x8] sm:$0xf]
  %v3484 = vld [vmem:[%s3480 + $0xc] sm:$0xf]
  %v3485 = vld [vmem:[%s3480 + $0x10] sm:$0xf]
  %v3486 = vld [vmem:[%s3480 + $0x14] sm:$0xf]
  %v3487 = vld [vmem:[%s3480 + $0x18] sm:$0xf]
  %v3488 = vld [vmem:[%s3480 + $0x1c] sm:$0xf]
  %v3489 = vld [vmem:[%s3480 + $0x20] sm:$0xf]
  %v3490 = vld [vmem:[%s3480 + $0x24] sm:$0xf]
  %v3491 = vld [vmem:[%s3480 + $0x28] sm:$0xf]
  %v3492 = vld [vmem:[%s3480 + $0x2c] sm:$0xf]
  %v3493 = vld [vmem:[%s3480 + $0x30] sm:$0xf]
  %v3494 = vld [vmem:[%s3480 + $0x34] sm:$0xf]
  %v3495 = vld [vmem:[%s3480 + $0x38] sm:$0xf]
  %v3496 = vld [vmem:[%s3480 + $0x3c] sm:$0xf]
  %v3497 = vunpack.c.l.b16 %v3419
  %v3498 = vunpack.c.l.b16 %v3423
  %v3499 = vunpack.c.l.b16 %v3427
  %v3500 = vunpack.c.l.b16 %v3431
  %v3501 = vunpack.c.l.b16 %v3435
  %v3502 = vunpack.c.l.b16 %v3439
  %v3503 = vunpack.c.l.b16 %v3443
  %v3504 = vunpack.c.l.b16 %v3447
  %v3505 = vunpack.c.l.b16 %v3451
  %v3506 = vunpack.c.l.b16 %v3455
  %v3507 = vunpack.c.l.b16 %v3459
  %v3508 = vunpack.c.l.b16 %v3463
  %v3509 = vunpack.c.l.b16 %v3467
  %v3510 = vunpack.c.l.b16 %v3471
  %v3511 = vunpack.c.l.b16 %v3475
  %v3512 = vunpack.c.l.b16 %v3479
  %v3513 = vpack.c.b16 %v3498, %v3497
  %v3514 = vpack.c.b16 %v3500, %v3499
  %v3515 = vpack.c.b16 %v3502, %v3501
  %v3516 = vpack.c.b16 %v3504, %v3503
  %v3517 = vpack.c.b16 %v3506, %v3505
  %v3518 = vpack.c.b16 %v3508, %v3507
  %v3519 = vpack.c.b16 %v3510, %v3509
  %v3520 = vpack.c.b16 %v3512, %v3511
  %v3545 = vunpack.c.l.b16 %v3481
  %v3546 = vunpack.c.l.b16 %v3482
  %v3547 = vunpack.c.l.b16 %v3483
  %v3548 = vunpack.c.l.b16 %v3484
  %v3549 = vunpack.c.l.b16 %v3485
  %v3550 = vunpack.c.l.b16 %v3486
  %v3551 = vunpack.c.l.b16 %v3487
  %v3552 = vunpack.c.l.b16 %v3488
  %v3553 = vunpack.c.l.b16 %v3489
  %v3554 = vunpack.c.l.b16 %v3490
  %v3555 = vunpack.c.l.b16 %v3491
  %v3556 = vunpack.c.l.b16 %v3492
  %v3557 = vunpack.c.l.b16 %v3493
  %v3558 = vunpack.c.l.b16 %v3494
  %v3559 = vunpack.c.l.b16 %v3495
  %v3560 = vunpack.c.l.b16 %v3496
  %v3561 = vpack.c.b16 %v3546, %v3545
  %v3562 = vpack.c.b16 %v3548, %v3547
  %v3563 = vpack.c.b16 %v3550, %v3549
  %v3564 = vpack.c.b16 %v3552, %v3551
  %v3565 = vpack.c.b16 %v3554, %v3553
  %v3566 = vpack.c.b16 %v3556, %v3555
  %v3567 = vpack.c.b16 %v3558, %v3557
  %v3568 = vpack.c.b16 %v3560, %v3559
  %3577 = vmatprep.subr.bf16.mxu0 0
  %3578 = vmatpush1.bf16.msra.mxu0 %v3568
  %3579 = vmatprep.subr.bf16.mxu0 0
  %3580 = vmatpush1.bf16.msra.mxu0 %v3567
  %3581 = vmatprep.subr.bf16.mxu0 0
  %3582 = vmatpush1.bf16.msra.mxu0 %v3566
  %3583 = vmatprep.subr.bf16.mxu0 0
  %3584 = vmatpush1.bf16.msra.mxu0 %v3565
  %3585 = vmatprep.subr.bf16.mxu0 0
  %3586 = vmatpush1.bf16.msra.mxu0 %v3564
  %3587 = vmatprep.subr.bf16.mxu0 0
  %3588 = vmatpush1.bf16.msra.mxu0 %v3563
  %3589 = vmatprep.subr.bf16.mxu0 0
  %3590 = vmatpush1.bf16.msra.mxu0 %v3562
  %3591 = vmatprep.subr.bf16.mxu0 0
  %3592 = vmatpush1.bf16.msra.mxu0 %v3561
  %3593 = vmatprep.subr.bf16.mxu0 0
  %3594 = vmatpush2.bf16.msra.mxu0 0
  %3595 = vmatprep.subr.bf16.mxu0 0
  %3596 = vmatpush2.bf16.msra.mxu0 0
  %3597 = vmatprep.subr.bf16.mxu0 0
  %3598 = vmatpush2.bf16.msra.mxu0 0
  %3599 = vmatprep.subr.bf16.mxu0 0
  %3600 = vmatpush2.bf16.msra.mxu0 0
  %3601 = vmatprep.subr.bf16.mxu0 0
  %3602 = vmatpush2.bf16.msra.mxu0 0
  %3603 = vmatprep.subr.bf16.mxu0 0
  %3604 = vmatpush2.bf16.msra.mxu0 0
  %3605 = vmatprep.subr.bf16.mxu0 0
  %3606 = vmatpush2.bf16.msra.mxu0 0
  %3607 = vmatprep.subr.bf16.mxu0 0
  %3608 = vmatpush2.bf16.msra.mxu0 0
  %3609 = vmatprep.mubr.bf16.mxu0 0
  %3610 = vmatmul.mubr.bf16.gmra.mxu0 %v3513
  %v3611 = vpop.f32.mrf.mxu0
  %v3612 = vadd.f32 0.0, %v3611
  %v3613 = vpop.f32.mrf.mxu0
  %v3614 = vpop.f32.mrf.mxu0
  %v3615 = vadd.f32 0.0, %v3614
  %v3616 = vpop.f32.mrf.mxu0
  %3617 = vmatprep.mubr.bf16.mxu0 0
  %3618 = vmatmul.mubr.bf16.gmra.mxu0 %v3514
  %v3619 = vpop.f32.mrf.mxu0
  %v3620 = vadd.f32 0.0, %v3619
  %v3621 = vpop.f32.mrf.mxu0
  %v3622 = vpop.f32.mrf.mxu0
  %v3623 = vadd.f32 0.0, %v3622
  %v3624 = vpop.f32.mrf.mxu0
  %3625 = vmatprep.mubr.bf16.mxu0 0
  %3626 = vmatmul.mubr.bf16.gmra.mxu0 %v3515
  %v3627 = vpop.f32.mrf.mxu0
  %v3628 = vadd.f32 0.0, %v3627
  %v3629 = vpop.f32.mrf.mxu0
  %v3630 = vpop.f32.mrf.mxu0
  %v3631 = vadd.f32 0.0, %v3630
  %v3632 = vpop.f32.mrf.mxu0
  %3633 = vmatprep.mubr.bf16.mxu0 0
  %3634 = vmatmul.mubr.bf16.gmra.mxu0 %v3516
  %v3635 = vpop.f32.mrf.mxu0
  %v3636 = vadd.f32 0.0, %v3635
  %v3637 = vpop.f32.mrf.mxu0
  %v3638 = vpop.f32.mrf.mxu0
  %v3639 = vadd.f32 0.0, %v3638
  %v3640 = vpop.f32.mrf.mxu0
  %3641 = vmatprep.mubr.bf16.mxu0 0
  %3642 = vmatmul.mubr.bf16.gmra.mxu0 %v3517
  %v3643 = vpop.f32.mrf.mxu0
  %v3644 = vadd.f32 0.0, %v3643
  %v3645 = vpop.f32.mrf.mxu0
  %v3646 = vpop.f32.mrf.mxu0
  %v3647 = vadd.f32 0.0, %v3646
  %v3648 = vpop.f32.mrf.mxu0
  %3649 = vmatprep.mubr.bf16.mxu0 0
  %3650 = vmatmul.mubr.bf16.gmra.mxu0 %v3518
  %v3651 = vpop.f32.mrf.mxu0
  %v3652 = vadd.f32 0.0, %v3651
  %v3653 = vpop.f32.mrf.mxu0
  %v3654 = vpop.f32.mrf.mxu0
  %v3655 = vadd.f32 0.0, %v3654
  %v3656 = vpop.f32.mrf.mxu0
  %3657 = vmatprep.mubr.bf16.mxu0 0
  %3658 = vmatmul.mubr.bf16.gmra.mxu0 %v3519
  %v3659 = vpop.f32.mrf.mxu0
  %v3660 = vadd.f32 0.0, %v3659
  %v3661 = vpop.f32.mrf.mxu0
  %v3662 = vpop.f32.mrf.mxu0
  %v3663 = vadd.f32 0.0, %v3662
  %v3664 = vpop.f32.mrf.mxu0
  %3665 = vmatprep.mubr.bf16.mxu0 0
  %3666 = vmatmul.mubr.bf16.gmra.mxu0 %v3520
  %v3667 = vpop.f32.mrf.mxu0
  %v3668 = vadd.f32 0.0, %v3667
  %v3669 = vpop.f32.mrf.mxu0
  %v3670 = vpop.f32.mrf.mxu0
  %v3671 = vadd.f32 0.0, %v3670
  %v3672 = vpop.f32.mrf.mxu0
  %3673 = vdwg.mxu0
  %v3674 = vadd.f32 %v3303, %v3612
  %v3675 = vadd.f32 %v3306, %v3615
  %v3676 = vadd.f32 %v3311, %v3620
  %v3677 = vadd.f32 %v3314, %v3623
  %v3678 = vadd.f32 %v3319, %v3628
  %v3679 = vadd.f32 %v3322, %v3631
  %v3680 = vadd.f32 %v3327, %v3636
  %v3681 = vadd.f32 %v3330, %v3639
  %v3682 = vadd.f32 %v3335, %v3644
  %v3683 = vadd.f32 %v3338, %v3647
  %v3684 = vadd.f32 %v3343, %v3652
  %v3685 = vadd.f32 %v3346, %v3655
  %v3686 = vadd.f32 %v3351, %v3660
  %v3687 = vadd.f32 %v3354, %v3663
  %v3688 = vadd.f32 %v3359, %v3668
  %v3689 = vadd.f32 %v3362, %v3671
  %v3690 = vld [vmem:[%s2607] sm:$0xf]
  %v3691 = vld [vmem:[%s2607 + $0x8] sm:$0xf]
  %v3692 = vld [vmem:[%s2607 + $0x10] sm:$0xf]
  %v3693 = vld [vmem:[%s2607 + $0x18] sm:$0xf]
  %v3694 = vld [vmem:[%s2607 + $0x20] sm:$0xf]
  %v3695 = vld [vmem:[%s2607 + $0x28] sm:$0xf]
  %v3696 = vld [vmem:[%s2607 + $0x30] sm:$0xf]
  %v3697 = vld [vmem:[%s2607 + $0x38] sm:$0xf]
  %v3698 = vld [vmem:[%s2607 + $0x50] sm:$0xf]
  %v3699 = vld [vmem:[%s2607 + $0x58] sm:$0xf]
  %v3700 = vld [vmem:[%s2607 + $0x60] sm:$0xf]
  %v3701 = vld [vmem:[%s2607 + $0x68] sm:$0xf]
  %v3702 = vld [vmem:[%s2607 + $0x70] sm:$0xf]
  %v3703 = vld [vmem:[%s2607 + $0x78] sm:$0xf]
  %v3704 = vld [vmem:[%s2607 + $0x80] sm:$0xf]
  %v3705 = vld [vmem:[%s2607 + $0x88] sm:$0xf]
  %s3706 = scalar_lea.vmem %s2, 192
  %v3707 = vld [vmem:[%s3706] sm:$0xf]
  %v3708 = vld [vmem:[%s3706 + $0x4] sm:$0xf]
  %v3709 = vld [vmem:[%s3706 + $0x8] sm:$0xf]
  %v3710 = vld [vmem:[%s3706 + $0xc] sm:$0xf]
  %v3711 = vld [vmem:[%s3706 + $0x10] sm:$0xf]
  %v3712 = vld [vmem:[%s3706 + $0x14] sm:$0xf]
  %v3713 = vld [vmem:[%s3706 + $0x18] sm:$0xf]
  %v3714 = vld [vmem:[%s3706 + $0x1c] sm:$0xf]
  %v3715 = vld [vmem:[%s3706 + $0x20] sm:$0xf]
  %v3716 = vld [vmem:[%s3706 + $0x24] sm:$0xf]
  %v3717 = vld [vmem:[%s3706 + $0x28] sm:$0xf]
  %v3718 = vld [vmem:[%s3706 + $0x2c] sm:$0xf]
  %v3719 = vld [vmem:[%s3706 + $0x30] sm:$0xf]
  %v3720 = vld [vmem:[%s3706 + $0x34] sm:$0xf]
  %v3721 = vld [vmem:[%s3706 + $0x38] sm:$0xf]
  %v3722 = vld [vmem:[%s3706 + $0x3c] sm:$0xf]
  %v3739 = vunpack.c.l.b16 %v3690
  %v3740 = vunpack.c.l.b16 %v3691
  %v3741 = vunpack.c.l.b16 %v3692
  %v3742 = vunpack.c.l.b16 %v3693
  %v3743 = vunpack.c.l.b16 %v3694
  %v3744 = vunpack.c.l.b16 %v3695
  %v3745 = vunpack.c.l.b16 %v3696
  %v3746 = vunpack.c.l.b16 %v3697
  %v3747 = vunpack.c.l.b16 %v3698
  %v3748 = vunpack.c.l.b16 %v3699
  %v3749 = vunpack.c.l.b16 %v3700
  %v3750 = vunpack.c.l.b16 %v3701
  %v3751 = vunpack.c.l.b16 %v3702
  %v3752 = vunpack.c.l.b16 %v3703
  %v3753 = vunpack.c.l.b16 %v3704
  %v3754 = vunpack.c.l.b16 %v3705
  %v3755 = vpack.c.b16 %v3740, %v3739
  %v3756 = vpack.c.b16 %v3742, %v3741
  %v3757 = vpack.c.b16 %v3744, %v3743
  %v3758 = vpack.c.b16 %v3746, %v3745
  %v3759 = vpack.c.b16 %v3748, %v3747
  %v3760 = vpack.c.b16 %v3750, %v3749
  %v3761 = vpack.c.b16 %v3752, %v3751
  %v3762 = vpack.c.b16 %v3754, %v3753
  %v3787 = vunpack.c.l.b16 %v3707
  %v3788 = vunpack.c.l.b16 %v3708
  %v3789 = vunpack.c.l.b16 %v3709
  %v3790 = vunpack.c.l.b16 %v3710
  %v3791 = vunpack.c.l.b16 %v3711
  %v3792 = vunpack.c.l.b16 %v3712
  %v3793 = vunpack.c.l.b16 %v3713
  %v3794 = vunpack.c.l.b16 %v3714
  %v3795 = vunpack.c.l.b16 %v3715
  %v3796 = vunpack.c.l.b16 %v3716
  %v3797 = vunpack.c.l.b16 %v3717
  %v3798 = vunpack.c.l.b16 %v3718
  %v3799 = vunpack.c.l.b16 %v3719
  %v3800 = vunpack.c.l.b16 %v3720
  %v3801 = vunpack.c.l.b16 %v3721
  %v3802 = vunpack.c.l.b16 %v3722
  %v3803 = vpack.c.b16 %v3788, %v3787
  %v3804 = vpack.c.b16 %v3790, %v3789
  %v3805 = vpack.c.b16 %v3792, %v3791
  %v3806 = vpack.c.b16 %v3794, %v3793
  %v3807 = vpack.c.b16 %v3796, %v3795
  %v3808 = vpack.c.b16 %v3798, %v3797
  %v3809 = vpack.c.b16 %v3800, %v3799
  %v3810 = vpack.c.b16 %v3802, %v3801
  %3819 = vmatprep.subr.bf16.mxu0 0
  %3820 = vmatpush1.bf16.msra.mxu0 %v3810
  %3821 = vmatprep.subr.bf16.mxu0 0
  %3822 = vmatpush1.bf16.msra.mxu0 %v3809
  %3823 = vmatprep.subr.bf16.mxu0 0
  %3824 = vmatpush1.bf16.msra.mxu0 %v3808
  %3825 = vmatprep.subr.bf16.mxu0 0
  %3826 = vmatpush1.bf16.msra.mxu0 %v3807
  %3827 = vmatprep.subr.bf16.mxu0 0
  %3828 = vmatpush1.bf16.msra.mxu0 %v3806
  %3829 = vmatprep.subr.bf16.mxu0 0
  %3830 = vmatpush1.bf16.msra.mxu0 %v3805
  %3831 = vmatprep.subr.bf16.mxu0 0
  %3832 = vmatpush1.bf16.msra.mxu0 %v3804
  %3833 = vmatprep.subr.bf16.mxu0 0
  %3834 = vmatpush1.bf16.msra.mxu0 %v3803
  %3835 = vmatprep.subr.bf16.mxu0 0
  %3836 = vmatpush2.bf16.msra.mxu0 0
  %3837 = vmatprep.subr.bf16.mxu0 0
  %3838 = vmatpush2.bf16.msra.mxu0 0
  %3839 = vmatprep.subr.bf16.mxu0 0
  %3840 = vmatpush2.bf16.msra.mxu0 0
  %3841 = vmatprep.subr.bf16.mxu0 0
  %3842 = vmatpush2.bf16.msra.mxu0 0
  %3843 = vmatprep.subr.bf16.mxu0 0
  %3844 = vmatpush2.bf16.msra.mxu0 0
  %3845 = vmatprep.subr.bf16.mxu0 0
  %3846 = vmatpush2.bf16.msra.mxu0 0
  %3847 = vmatprep.subr.bf16.mxu0 0
  %3848 = vmatpush2.bf16.msra.mxu0 0
  %3849 = vmatprep.subr.bf16.mxu0 0
  %3850 = vmatpush2.bf16.msra.mxu0 0
  %3851 = vmatprep.mubr.bf16.mxu0 0
  %3852 = vmatmul.mubr.bf16.gmra.mxu0 %v3755
  %v3853 = vpop.f32.mrf.mxu0
  %v3854 = vadd.f32 0.0, %v3853
  %v3855 = vpop.f32.mrf.mxu0
  %v3856 = vpop.f32.mrf.mxu0
  %v3857 = vadd.f32 0.0, %v3856
  %v3858 = vpop.f32.mrf.mxu0
  %3859 = vmatprep.mubr.bf16.mxu0 0
  %3860 = vmatmul.mubr.bf16.gmra.mxu0 %v3756
  %v3861 = vpop.f32.mrf.mxu0
  %v3862 = vadd.f32 0.0, %v3861
  %v3863 = vpop.f32.mrf.mxu0
  %v3864 = vpop.f32.mrf.mxu0
  %v3865 = vadd.f32 0.0, %v3864
  %v3866 = vpop.f32.mrf.mxu0
  %3867 = vmatprep.mubr.bf16.mxu0 0
  %3868 = vmatmul.mubr.bf16.gmra.mxu0 %v3757
  %v3869 = vpop.f32.mrf.mxu0
  %v3870 = vadd.f32 0.0, %v3869
  %v3871 = vpop.f32.mrf.mxu0
  %v3872 = vpop.f32.mrf.mxu0
  %v3873 = vadd.f32 0.0, %v3872
  %v3874 = vpop.f32.mrf.mxu0
  %3875 = vmatprep.mubr.bf16.mxu0 0
  %3876 = vmatmul.mubr.bf16.gmra.mxu0 %v3758
  %v3877 = vpop.f32.mrf.mxu0
  %v3878 = vadd.f32 0.0, %v3877
  %v3879 = vpop.f32.mrf.mxu0
  %v3880 = vpop.f32.mrf.mxu0
  %v3881 = vadd.f32 0.0, %v3880
  %v3882 = vpop.f32.mrf.mxu0
  %3883 = vmatprep.mubr.bf16.mxu0 0
  %3884 = vmatmul.mubr.bf16.gmra.mxu0 %v3759
  %v3885 = vpop.f32.mrf.mxu0
  %v3886 = vadd.f32 0.0, %v3885
  %v3887 = vpop.f32.mrf.mxu0
  %v3888 = vpop.f32.mrf.mxu0
  %v3889 = vadd.f32 0.0, %v3888
  %v3890 = vpop.f32.mrf.mxu0
  %3891 = vmatprep.mubr.bf16.mxu0 0
  %3892 = vmatmul.mubr.bf16.gmra.mxu0 %v3760
  %v3893 = vpop.f32.mrf.mxu0
  %v3894 = vadd.f32 0.0, %v3893
  %v3895 = vpop.f32.mrf.mxu0
  %v3896 = vpop.f32.mrf.mxu0
  %v3897 = vadd.f32 0.0, %v3896
  %v3898 = vpop.f32.mrf.mxu0
  %3899 = vmatprep.mubr.bf16.mxu0 0
  %3900 = vmatmul.mubr.bf16.gmra.mxu0 %v3761
  %v3901 = vpop.f32.mrf.mxu0
  %v3902 = vadd.f32 0.0, %v3901
  %v3903 = vpop.f32.mrf.mxu0
  %v3904 = vpop.f32.mrf.mxu0
  %v3905 = vadd.f32 0.0, %v3904
  %v3906 = vpop.f32.mrf.mxu0
  %3907 = vmatprep.mubr.bf16.mxu0 0
  %3908 = vmatmul.mubr.bf16.gmra.mxu0 %v3762
  %v3909 = vpop.f32.mrf.mxu0
  %v3910 = vadd.f32 0.0, %v3909
  %v3911 = vpop.f32.mrf.mxu0
  %v3912 = vpop.f32.mrf.mxu0
  %v3913 = vadd.f32 0.0, %v3912
  %v3914 = vpop.f32.mrf.mxu0
  %3915 = vdwg.mxu0
  %v3916 = vadd.f32 %v3674, %v3854
  %v3917 = vadd.f32 %v3675, %v3857
  %v3918 = vadd.f32 %v3676, %v3862
  %v3919 = vadd.f32 %v3677, %v3865
  %v3920 = vadd.f32 %v3678, %v3870
  %v3921 = vadd.f32 %v3679, %v3873
  %v3922 = vadd.f32 %v3680, %v3878
  %v3923 = vadd.f32 %v3681, %v3881
  %v3924 = vadd.f32 %v3682, %v3886
  %v3925 = vadd.f32 %v3683, %v3889
  %v3926 = vadd.f32 %v3684, %v3894
  %v3927 = vadd.f32 %v3685, %v3897
  %v3928 = vadd.f32 %v3686, %v3902
  %v3929 = vadd.f32 %v3687, %v3905
  %v3930 = vadd.f32 %v3688, %v3910
  %v3931 = vadd.f32 %v3689, %v3913
  %v3932 = vld [vmem:[%s2607] sm:$0xf]
  %v3933 = vld [vmem:[%s2607 + $0x4] sm:$0x1]
  %v3934 = vld [vmem:[%s2607 + $0x8] sm:$0xf]
  %v3935 = vld [vmem:[%s2607 + $0xc] sm:$0x1]
  %v3936 = vld [vmem:[%s2607 + $0x10] sm:$0xf]
  %v3937 = vld [vmem:[%s2607 + $0x14] sm:$0x1]
  %v3938 = vld [vmem:[%s2607 + $0x18] sm:$0xf]
  %v3939 = vld [vmem:[%s2607 + $0x1c] sm:$0x1]
  %v3940 = vld [vmem:[%s2607 + $0x20] sm:$0xf]
  %v3941 = vld [vmem:[%s2607 + $0x24] sm:$0x1]
  %v3942 = vld [vmem:[%s2607 + $0x28] sm:$0xf]
  %v3943 = vld [vmem:[%s2607 + $0x2c] sm:$0x1]
  %v3944 = vld [vmem:[%s2607 + $0x30] sm:$0xf]
  %v3945 = vld [vmem:[%s2607 + $0x34] sm:$0x1]
  %v3946 = vld [vmem:[%s2607 + $0x38] sm:$0xf]
  %v3947 = vld [vmem:[%s2607 + $0x3c] sm:$0x1]
  %v3948 = vld [vmem:[%s2607 + $0x50] sm:$0xf]
  %v3949 = vld [vmem:[%s2607 + $0x54] sm:$0x1]
  %v3950 = vld [vmem:[%s2607 + $0x58] sm:$0xf]
  %v3951 = vld [vmem:[%s2607 + $0x5c] sm:$0x1]
  %v3952 = vld [vmem:[%s2607 + $0x60] sm:$0xf]
  %v3953 = vld [vmem:[%s2607 + $0x64] sm:$0x1]
  %v3954 = vld [vmem:[%s2607 + $0x68] sm:$0xf]
  %v3955 = vld [vmem:[%s2607 + $0x6c] sm:$0x1]
  %v3956 = vld [vmem:[%s2607 + $0x70] sm:$0xf]
  %v3957 = vld [vmem:[%s2607 + $0x74] sm:$0x1]
  %v3958 = vld [vmem:[%s2607 + $0x78] sm:$0xf]
  %v3959 = vld [vmem:[%s2607 + $0x7c] sm:$0x1]
  %v3960 = vld [vmem:[%s2607 + $0x80] sm:$0xf]
  %v3961 = vld [vmem:[%s2607 + $0x84] sm:$0x1]
  %v3962 = vld [vmem:[%s2607 + $0x88] sm:$0xf]
  %v3963 = vld [vmem:[%s2607 + $0x8c] sm:$0x1]
  %v3965 = vshrl.u32 %v3932, 16
  %v3967 = vrot.slane %v3965, 4
  %v3968 = vshll.u32 %v3932, 16
  %v3970 = vrot.slane %v3968, 5
  %v3971 = vor.u32 %v3967, %v3970
  %v3972 = vrot.slane %v3971, 4
  %v3974 = vshll.u32 %v3933, 16
  %v3976 = vrot.slane %v3974, 5
  %v3977 = vsel %vm462, %v3972, %v3976
  %v3979 = vshrl.u32 %v3934, 16
  %v3981 = vrot.slane %v3979, 4
  %v3982 = vshll.u32 %v3934, 16
  %v3984 = vrot.slane %v3982, 5
  %v3985 = vor.u32 %v3981, %v3984
  %v3986 = vrot.slane %v3985, 4
  %v3988 = vshll.u32 %v3935, 16
  %v3990 = vrot.slane %v3988, 5
  %v3991 = vsel %vm462, %v3986, %v3990
  %v3993 = vshrl.u32 %v3936, 16
  %v3995 = vrot.slane %v3993, 4
  %v3996 = vshll.u32 %v3936, 16
  %v3998 = vrot.slane %v3996, 5
  %v3999 = vor.u32 %v3995, %v3998
  %v4000 = vrot.slane %v3999, 4
  %v4002 = vshll.u32 %v3937, 16
  %v4004 = vrot.slane %v4002, 5
  %v4005 = vsel %vm462, %v4000, %v4004
  %v4007 = vshrl.u32 %v3938, 16
  %v4009 = vrot.slane %v4007, 4
  %v4010 = vshll.u32 %v3938, 16
  %v4012 = vrot.slane %v4010, 5
  %v4013 = vor.u32 %v4009, %v4012
  %v4014 = vrot.slane %v4013, 4
  %v4016 = vshll.u32 %v3939, 16
  %v4018 = vrot.slane %v4016, 5
  %v4019 = vsel %vm462, %v4014, %v4018
  %v4021 = vshrl.u32 %v3940, 16
  %v4023 = vrot.slane %v4021, 4
  %v4024 = vshll.u32 %v3940, 16
  %v4026 = vrot.slane %v4024, 5
  %v4027 = vor.u32 %v4023, %v4026
  %v4028 = vrot.slane %v4027, 4
  %v4030 = vshll.u32 %v3941, 16
  %v4032 = vrot.slane %v4030, 5
  %v4033 = vsel %vm462, %v4028, %v4032
  %v4035 = vshrl.u32 %v3942, 16
  %v4037 = vrot.slane %v4035, 4
  %v4038 = vshll.u32 %v3942, 16
  %v4040 = vrot.slane %v4038, 5
  %v4041 = vor.u32 %v4037, %v4040
  %v4042 = vrot.slane %v4041, 4
  %v4044 = vshll.u32 %v3943, 16
  %v4046 = vrot.slane %v4044, 5
  %v4047 = vsel %vm462, %v4042, %v4046
  %v4049 = vshrl.u32 %v3944, 16
  %v4051 = vrot.slane %v4049, 4
  %v4052 = vshll.u32 %v3944, 16
  %v4054 = vrot.slane %v4052, 5
  %v4055 = vor.u32 %v4051, %v4054
  %v4056 = vrot.slane %v4055, 4
  %v4058 = vshll.u32 %v3945, 16
  %v4060 = vrot.slane %v4058, 5
  %v4061 = vsel %vm462, %v4056, %v4060
  %v4063 = vshrl.u32 %v3946, 16
  %v4065 = vrot.slane %v4063, 4
  %v4066 = vshll.u32 %v3946, 16
  %v4068 = vrot.slane %v4066, 5
  %v4069 = vor.u32 %v4065, %v4068
  %v4070 = vrot.slane %v4069, 4
  %v4072 = vshll.u32 %v3947, 16
  %v4074 = vrot.slane %v4072, 5
  %v4075 = vsel %vm462, %v4070, %v4074
  %v4077 = vshrl.u32 %v3948, 16
  %v4079 = vrot.slane %v4077, 4
  %v4080 = vshll.u32 %v3948, 16
  %v4082 = vrot.slane %v4080, 5
  %v4083 = vor.u32 %v4079, %v4082
  %v4084 = vrot.slane %v4083, 4
  %v4086 = vshll.u32 %v3949, 16
  %v4088 = vrot.slane %v4086, 5
  %v4089 = vsel %vm462, %v4084, %v4088
  %v4091 = vshrl.u32 %v3950, 16
  %v4093 = vrot.slane %v4091, 4
  %v4094 = vshll.u32 %v3950, 16
  %v4096 = vrot.slane %v4094, 5
  %v4097 = vor.u32 %v4093, %v4096
  %v4098 = vrot.slane %v4097, 4
  %v4100 = vshll.u32 %v3951, 16
  %v4102 = vrot.slane %v4100, 5
  %v4103 = vsel %vm462, %v4098, %v4102
  %v4105 = vshrl.u32 %v3952, 16
  %v4107 = vrot.slane %v4105, 4
  %v4108 = vshll.u32 %v3952, 16
  %v4110 = vrot.slane %v4108, 5
  %v4111 = vor.u32 %v4107, %v4110
  %v4112 = vrot.slane %v4111, 4
  %v4114 = vshll.u32 %v3953, 16
  %v4116 = vrot.slane %v4114, 5
  %v4117 = vsel %vm462, %v4112, %v4116
  %v4119 = vshrl.u32 %v3954, 16
  %v4121 = vrot.slane %v4119, 4
  %v4122 = vshll.u32 %v3954, 16
  %v4124 = vrot.slane %v4122, 5
  %v4125 = vor.u32 %v4121, %v4124
  %v4126 = vrot.slane %v4125, 4
  %v4128 = vshll.u32 %v3955, 16
  %v4130 = vrot.slane %v4128, 5
  %v4131 = vsel %vm462, %v4126, %v4130
  %v4133 = vshrl.u32 %v3956, 16
  %v4135 = vrot.slane %v4133, 4
  %v4136 = vshll.u32 %v3956, 16
  %v4138 = vrot.slane %v4136, 5
  %v4139 = vor.u32 %v4135, %v4138
  %v4140 = vrot.slane %v4139, 4
  %v4142 = vshll.u32 %v3957, 16
  %v4144 = vrot.slane %v4142, 5
  %v4145 = vsel %vm462, %v4140, %v4144
  %v4147 = vshrl.u32 %v3958, 16
  %v4149 = vrot.slane %v4147, 4
  %v4150 = vshll.u32 %v3958, 16
  %v4152 = vrot.slane %v4150, 5
  %v4153 = vor.u32 %v4149, %v4152
  %v4154 = vrot.slane %v4153, 4
  %v4156 = vshll.u32 %v3959, 16
  %v4158 = vrot.slane %v4156, 5
  %v4159 = vsel %vm462, %v4154, %v4158
  %v4161 = vshrl.u32 %v3960, 16
  %v4163 = vrot.slane %v4161, 4
  %v4164 = vshll.u32 %v3960, 16
  %v4166 = vrot.slane %v4164, 5
  %v4167 = vor.u32 %v4163, %v4166
  %v4168 = vrot.slane %v4167, 4
  %v4170 = vshll.u32 %v3961, 16
  %v4172 = vrot.slane %v4170, 5
  %v4173 = vsel %vm462, %v4168, %v4172
  %v4175 = vshrl.u32 %v3962, 16
  %v4177 = vrot.slane %v4175, 4
  %v4178 = vshll.u32 %v3962, 16
  %v4180 = vrot.slane %v4178, 5
  %v4181 = vor.u32 %v4177, %v4180
  %v4182 = vrot.slane %v4181, 4
  %v4184 = vshll.u32 %v3963, 16
  %v4186 = vrot.slane %v4184, 5
  %v4187 = vsel %vm462, %v4182, %v4186
  %s4188 = scalar_lea.vmem %s2, 256
  %v4189 = vld [vmem:[%s4188] sm:$0xf]
  %v4190 = vld [vmem:[%s4188 + $0x4] sm:$0xf]
  %v4191 = vld [vmem:[%s4188 + $0x8] sm:$0xf]
  %v4192 = vld [vmem:[%s4188 + $0xc] sm:$0xf]
  %v4193 = vld [vmem:[%s4188 + $0x10] sm:$0xf]
  %v4194 = vld [vmem:[%s4188 + $0x14] sm:$0xf]
  %v4195 = vld [vmem:[%s4188 + $0x18] sm:$0xf]
  %v4196 = vld [vmem:[%s4188 + $0x1c] sm:$0xf]
  %v4197 = vld [vmem:[%s4188 + $0x20] sm:$0xf]
  %v4198 = vld [vmem:[%s4188 + $0x24] sm:$0xf]
  %v4199 = vld [vmem:[%s4188 + $0x28] sm:$0xf]
  %v4200 = vld [vmem:[%s4188 + $0x2c] sm:$0xf]
  %v4201 = vld [vmem:[%s4188 + $0x30] sm:$0xf]
  %v4202 = vld [vmem:[%s4188 + $0x34] sm:$0xf]
  %v4203 = vld [vmem:[%s4188 + $0x38] sm:$0xf]
  %v4204 = vld [vmem:[%s4188 + $0x3c] sm:$0xf]
  %v4205 = vunpack.c.l.b16 %v3977
  %v4206 = vunpack.c.l.b16 %v3991
  %v4207 = vunpack.c.l.b16 %v4005
  %v4208 = vunpack.c.l.b16 %v4019
  %v4209 = vunpack.c.l.b16 %v4033
  %v4210 = vunpack.c.l.b16 %v4047
  %v4211 = vunpack.c.l.b16 %v4061
  %v4212 = vunpack.c.l.b16 %v4075
  %v4213 = vunpack.c.l.b16 %v4089
  %v4214 = vunpack.c.l.b16 %v4103
  %v4215 = vunpack.c.l.b16 %v4117
  %v4216 = vunpack.c.l.b16 %v4131
  %v4217 = vunpack.c.l.b16 %v4145
  %v4218 = vunpack.c.l.b16 %v4159
  %v4219 = vunpack.c.l.b16 %v4173
  %v4220 = vunpack.c.l.b16 %v4187
  %v4221 = vpack.c.b16 %v4206, %v4205
  %v4222 = vpack.c.b16 %v4208, %v4207
  %v4223 = vpack.c.b16 %v4210, %v4209
  %v4224 = vpack.c.b16 %v4212, %v4211
  %v4225 = vpack.c.b16 %v4214, %v4213
  %v4226 = vpack.c.b16 %v4216, %v4215
  %v4227 = vpack.c.b16 %v4218, %v4217
  %v4228 = vpack.c.b16 %v4220, %v4219
  %v4253 = vunpack.c.l.b16 %v4189
  %v4254 = vunpack.c.l.b16 %v4190
  %v4255 = vunpack.c.l.b16 %v4191
  %v4256 = vunpack.c.l.b16 %v4192
  %v4257 = vunpack.c.l.b16 %v4193
  %v4258 = vunpack.c.l.b16 %v4194
  %v4259 = vunpack.c.l.b16 %v4195
  %v4260 = vunpack.c.l.b16 %v4196
  %v4261 = vunpack.c.l.b16 %v4197
  %v4262 = vunpack.c.l.b16 %v4198
  %v4263 = vunpack.c.l.b16 %v4199
  %v4264 = vunpack.c.l.b16 %v4200
  %v4265 = vunpack.c.l.b16 %v4201
  %v4266 = vunpack.c.l.b16 %v4202
  %v4267 = vunpack.c.l.b16 %v4203
  %v4268 = vunpack.c.l.b16 %v4204
  %v4269 = vpack.c.b16 %v4254, %v4253
  %v4270 = vpack.c.b16 %v4256, %v4255
  %v4271 = vpack.c.b16 %v4258, %v4257
  %v4272 = vpack.c.b16 %v4260, %v4259
  %v4273 = vpack.c.b16 %v4262, %v4261
  %v4274 = vpack.c.b16 %v4264, %v4263
  %v4275 = vpack.c.b16 %v4266, %v4265
  %v4276 = vpack.c.b16 %v4268, %v4267
  %4285 = vmatprep.subr.bf16.mxu0 0
  %4286 = vmatpush1.bf16.msra.mxu0 %v4276
  %4287 = vmatprep.subr.bf16.mxu0 0
  %4288 = vmatpush1.bf16.msra.mxu0 %v4275
  %4289 = vmatprep.subr.bf16.mxu0 0
  %4290 = vmatpush1.bf16.msra.mxu0 %v4274
  %4291 = vmatprep.subr.bf16.mxu0 0
  %4292 = vmatpush1.bf16.msra.mxu0 %v4273
  %4293 = vmatprep.subr.bf16.mxu0 0
  %4294 = vmatpush1.bf16.msra.mxu0 %v4272
  %4295 = vmatprep.subr.bf16.mxu0 0
  %4296 = vmatpush1.bf16.msra.mxu0 %v4271
  %4297 = vmatprep.subr.bf16.mxu0 0
  %4298 = vmatpush1.bf16.msra.mxu0 %v4270
  %4299 = vmatprep.subr.bf16.mxu0 0
  %4300 = vmatpush1.bf16.msra.mxu0 %v4269
  %4301 = vmatprep.subr.bf16.mxu0 0
  %4302 = vmatpush2.bf16.msra.mxu0 0
  %4303 = vmatprep.subr.bf16.mxu0 0
  %4304 = vmatpush2.bf16.msra.mxu0 0
  %4305 = vmatprep.subr.bf16.mxu0 0
  %4306 = vmatpush2.bf16.msra.mxu0 0
  %4307 = vmatprep.subr.bf16.mxu0 0
  %4308 = vmatpush2.bf16.msra.mxu0 0
  %4309 = vmatprep.subr.bf16.mxu0 0
  %4310 = vmatpush2.bf16.msra.mxu0 0
  %4311 = vmatprep.subr.bf16.mxu0 0
  %4312 = vmatpush2.bf16.msra.mxu0 0
  %4313 = vmatprep.subr.bf16.mxu0 0
  %4314 = vmatpush2.bf16.msra.mxu0 0
  %4315 = vmatprep.subr.bf16.mxu0 0
  %4316 = vmatpush2.bf16.msra.mxu0 0
  %4317 = vmatprep.mubr.bf16.mxu0 0
  %4318 = vmatmul.mubr.bf16.gmra.mxu0 %v4221
  %v4319 = vpop.f32.mrf.mxu0
  %v4320 = vadd.f32 0.0, %v4319
  %v4321 = vpop.f32.mrf.mxu0
  %v4322 = vpop.f32.mrf.mxu0
  %v4323 = vadd.f32 0.0, %v4322
  %v4324 = vpop.f32.mrf.mxu0
  %4325 = vmatprep.mubr.bf16.mxu0 0
  %4326 = vmatmul.mubr.bf16.gmra.mxu0 %v4222
  %v4327 = vpop.f32.mrf.mxu0
  %v4328 = vadd.f32 0.0, %v4327
  %v4329 = vpop.f32.mrf.mxu0
  %v4330 = vpop.f32.mrf.mxu0
  %v4331 = vadd.f32 0.0, %v4330
  %v4332 = vpop.f32.mrf.mxu0
  %4333 = vmatprep.mubr.bf16.mxu0 0
  %4334 = vmatmul.mubr.bf16.gmra.mxu0 %v4223
  %v4335 = vpop.f32.mrf.mxu0
  %v4336 = vadd.f32 0.0, %v4335
  %v4337 = vpop.f32.mrf.mxu0
  %v4338 = vpop.f32.mrf.mxu0
  %v4339 = vadd.f32 0.0, %v4338
  %v4340 = vpop.f32.mrf.mxu0
  %4341 = vmatprep.mubr.bf16.mxu0 0
  %4342 = vmatmul.mubr.bf16.gmra.mxu0 %v4224
  %v4343 = vpop.f32.mrf.mxu0
  %v4344 = vadd.f32 0.0, %v4343
  %v4345 = vpop.f32.mrf.mxu0
  %v4346 = vpop.f32.mrf.mxu0
  %v4347 = vadd.f32 0.0, %v4346
  %v4348 = vpop.f32.mrf.mxu0
  %4349 = vmatprep.mubr.bf16.mxu0 0
  %4350 = vmatmul.mubr.bf16.gmra.mxu0 %v4225
  %v4351 = vpop.f32.mrf.mxu0
  %v4352 = vadd.f32 0.0, %v4351
  %v4353 = vpop.f32.mrf.mxu0
  %v4354 = vpop.f32.mrf.mxu0
  %v4355 = vadd.f32 0.0, %v4354
  %v4356 = vpop.f32.mrf.mxu0
  %4357 = vmatprep.mubr.bf16.mxu0 0
  %4358 = vmatmul.mubr.bf16.gmra.mxu0 %v4226
  %v4359 = vpop.f32.mrf.mxu0
  %v4360 = vadd.f32 0.0, %v4359
  %v4361 = vpop.f32.mrf.mxu0
  %v4362 = vpop.f32.mrf.mxu0
  %v4363 = vadd.f32 0.0, %v4362
  %v4364 = vpop.f32.mrf.mxu0
  %4365 = vmatprep.mubr.bf16.mxu0 0
  %4366 = vmatmul.mubr.bf16.gmra.mxu0 %v4227
  %v4367 = vpop.f32.mrf.mxu0
  %v4368 = vadd.f32 0.0, %v4367
  %v4369 = vpop.f32.mrf.mxu0
  %v4370 = vpop.f32.mrf.mxu0
  %v4371 = vadd.f32 0.0, %v4370
  %v4372 = vpop.f32.mrf.mxu0
  %4373 = vmatprep.mubr.bf16.mxu0 0
  %4374 = vmatmul.mubr.bf16.gmra.mxu0 %v4228
  %v4375 = vpop.f32.mrf.mxu0
  %v4376 = vadd.f32 0.0, %v4375
  %v4377 = vpop.f32.mrf.mxu0
  %v4378 = vpop.f32.mrf.mxu0
  %v4379 = vadd.f32 0.0, %v4378
  %v4380 = vpop.f32.mrf.mxu0
  %4381 = vdwg.mxu0
  %v4382 = vadd.f32 %v3916, %v4320
  %v4383 = vadd.f32 %v3917, %v4323
  %v4384 = vadd.f32 %v3918, %v4328
  %v4385 = vadd.f32 %v3919, %v4331
  %v4386 = vadd.f32 %v3920, %v4336
  %v4387 = vadd.f32 %v3921, %v4339
  %v4388 = vadd.f32 %v3922, %v4344
  %v4389 = vadd.f32 %v3923, %v4347
  %v4390 = vadd.f32 %v3924, %v4352
  %v4391 = vadd.f32 %v3925, %v4355
  %v4392 = vadd.f32 %v3926, %v4360
  %v4393 = vadd.f32 %v3927, %v4363
  %v4394 = vadd.f32 %v3928, %v4368
  %v4395 = vadd.f32 %v3929, %v4371
  %v4396 = vadd.f32 %v3930, %v4376
  %v4397 = vadd.f32 %v3931, %v4379
  %v4398 = vld [vmem:[%s2607] sm:$0xe]
  %v4399 = vld [vmem:[%s2607 + $0x8] sm:$0xe]
  %v4400 = vld [vmem:[%s2607 + $0x10] sm:$0xe]
  %v4401 = vld [vmem:[%s2607 + $0x18] sm:$0xe]
  %v4402 = vld [vmem:[%s2607 + $0x20] sm:$0xe]
  %v4403 = vld [vmem:[%s2607 + $0x28] sm:$0xe]
  %v4404 = vld [vmem:[%s2607 + $0x30] sm:$0xe]
  %v4405 = vld [vmem:[%s2607 + $0x38] sm:$0xe]
  %v4406 = vld [vmem:[%s2607 + $0x50] sm:$0xe]
  %v4407 = vld [vmem:[%s2607 + $0x58] sm:$0xe]
  %v4408 = vld [vmem:[%s2607 + $0x60] sm:$0xe]
  %v4409 = vld [vmem:[%s2607 + $0x68] sm:$0xe]
  %v4410 = vld [vmem:[%s2607 + $0x70] sm:$0xe]
  %v4411 = vld [vmem:[%s2607 + $0x78] sm:$0xe]
  %v4412 = vld [vmem:[%s2607 + $0x80] sm:$0xe]
  %v4413 = vld [vmem:[%s2607 + $0x88] sm:$0xe]
  %v4446 = vrot.slane %v4398, 5
  %v4447 = vrot.slane %v4446, 4
  %v4448 = vrot.slane %v3933, 5
  %v4449 = vsel %vm3415, %v4447, %v4448
  %v4450 = vrot.slane %v4399, 5
  %v4451 = vrot.slane %v4450, 4
  %v4452 = vrot.slane %v3935, 5
  %v4453 = vsel %vm3415, %v4451, %v4452
  %v4454 = vrot.slane %v4400, 5
  %v4455 = vrot.slane %v4454, 4
  %v4456 = vrot.slane %v3937, 5
  %v4457 = vsel %vm3415, %v4455, %v4456
  %v4458 = vrot.slane %v4401, 5
  %v4459 = vrot.slane %v4458, 4
  %v4460 = vrot.slane %v3939, 5
  %v4461 = vsel %vm3415, %v4459, %v4460
  %v4462 = vrot.slane %v4402, 5
  %v4463 = vrot.slane %v4462, 4
  %v4464 = vrot.slane %v3941, 5
  %v4465 = vsel %vm3415, %v4463, %v4464
  %v4466 = vrot.slane %v4403, 5
  %v4467 = vrot.slane %v4466, 4
  %v4468 = vrot.slane %v3943, 5
  %v4469 = vsel %vm3415, %v4467, %v4468
  %v4470 = vrot.slane %v4404, 5
  %v4471 = vrot.slane %v4470, 4
  %v4472 = vrot.slane %v3945, 5
  %v4473 = vsel %vm3415, %v4471, %v4472
  %v4474 = vrot.slane %v4405, 5
  %v4475 = vrot.slane %v4474, 4
  %v4476 = vrot.slane %v3947, 5
  %v4477 = vsel %vm3415, %v4475, %v4476
  %v4478 = vrot.slane %v4406, 5
  %v4479 = vrot.slane %v4478, 4
  %v4480 = vrot.slane %v3949, 5
  %v4481 = vsel %vm3415, %v4479, %v4480
  %v4482 = vrot.slane %v4407, 5
  %v4483 = vrot.slane %v4482, 4
  %v4484 = vrot.slane %v3951, 5
  %v4485 = vsel %vm3415, %v4483, %v4484
  %v4486 = vrot.slane %v4408, 5
  %v4487 = vrot.slane %v4486, 4
  %v4488 = vrot.slane %v3953, 5
  %v4489 = vsel %vm3415, %v4487, %v4488
  %v4490 = vrot.slane %v4409, 5
  %v4491 = vrot.slane %v4490, 4
  %v4492 = vrot.slane %v3955, 5
  %v4493 = vsel %vm3415, %v4491, %v4492
  %v4494 = vrot.slane %v4410, 5
  %v4495 = vrot.slane %v4494, 4
  %v4496 = vrot.slane %v3957, 5
  %v4497 = vsel %vm3415, %v4495, %v4496
  %v4498 = vrot.slane %v4411, 5
  %v4499 = vrot.slane %v4498, 4
  %v4500 = vrot.slane %v3959, 5
  %v4501 = vsel %vm3415, %v4499, %v4500
  %v4502 = vrot.slane %v4412, 5
  %v4503 = vrot.slane %v4502, 4
  %v4504 = vrot.slane %v3961, 5
  %v4505 = vsel %vm3415, %v4503, %v4504
  %v4506 = vrot.slane %v4413, 5
  %v4507 = vrot.slane %v4506, 4
  %v4508 = vrot.slane %v3963, 5
  %v4509 = vsel %vm3415, %v4507, %v4508
  %s4510 = scalar_lea.vmem %s2, 320
  %v4511 = vld [vmem:[%s4510] sm:$0xf]
  %v4512 = vld [vmem:[%s4510 + $0x4] sm:$0xf]
  %v4513 = vld [vmem:[%s4510 + $0x8] sm:$0xf]
  %v4514 = vld [vmem:[%s4510 + $0xc] sm:$0xf]
  %v4515 = vld [vmem:[%s4510 + $0x10] sm:$0xf]
  %v4516 = vld [vmem:[%s4510 + $0x14] sm:$0xf]
  %v4517 = vld [vmem:[%s4510 + $0x18] sm:$0xf]
  %v4518 = vld [vmem:[%s4510 + $0x1c] sm:$0xf]
  %v4519 = vld [vmem:[%s4510 + $0x20] sm:$0xf]
  %v4520 = vld [vmem:[%s4510 + $0x24] sm:$0xf]
  %v4521 = vld [vmem:[%s4510 + $0x28] sm:$0xf]
  %v4522 = vld [vmem:[%s4510 + $0x2c] sm:$0xf]
  %v4523 = vld [vmem:[%s4510 + $0x30] sm:$0xf]
  %v4524 = vld [vmem:[%s4510 + $0x34] sm:$0xf]
  %v4525 = vld [vmem:[%s4510 + $0x38] sm:$0xf]
  %v4526 = vld [vmem:[%s4510 + $0x3c] sm:$0xf]
  %v4527 = vunpack.c.l.b16 %v4449
  %v4528 = vunpack.c.l.b16 %v4453
  %v4529 = vunpack.c.l.b16 %v4457
  %v4530 = vunpack.c.l.b16 %v4461
  %v4531 = vunpack.c.l.b16 %v4465
  %v4532 = vunpack.c.l.b16 %v4469
  %v4533 = vunpack.c.l.b16 %v4473
  %v4534 = vunpack.c.l.b16 %v4477
  %v4535 = vunpack.c.l.b16 %v4481
  %v4536 = vunpack.c.l.b16 %v4485
  %v4537 = vunpack.c.l.b16 %v4489
  %v4538 = vunpack.c.l.b16 %v4493
  %v4539 = vunpack.c.l.b16 %v4497
  %v4540 = vunpack.c.l.b16 %v4501
  %v4541 = vunpack.c.l.b16 %v4505
  %v4542 = vunpack.c.l.b16 %v4509
  %v4543 = vpack.c.b16 %v4528, %v4527
  %v4544 = vpack.c.b16 %v4530, %v4529
  %v4545 = vpack.c.b16 %v4532, %v4531
  %v4546 = vpack.c.b16 %v4534, %v4533
  %v4547 = vpack.c.b16 %v4536, %v4535
  %v4548 = vpack.c.b16 %v4538, %v4537
  %v4549 = vpack.c.b16 %v4540, %v4539
  %v4550 = vpack.c.b16 %v4542, %v4541
  %v4575 = vunpack.c.l.b16 %v4511
  %v4576 = vunpack.c.l.b16 %v4512
  %v4577 = vunpack.c.l.b16 %v4513
  %v4578 = vunpack.c.l.b16 %v4514
  %v4579 = vunpack.c.l.b16 %v4515
  %v4580 = vunpack.c.l.b16 %v4516
  %v4581 = vunpack.c.l.b16 %v4517
  %v4582 = vunpack.c.l.b16 %v4518
  %v4583 = vunpack.c.l.b16 %v4519
  %v4584 = vunpack.c.l.b16 %v4520
  %v4585 = vunpack.c.l.b16 %v4521
  %v4586 = vunpack.c.l.b16 %v4522
  %v4587 = vunpack.c.l.b16 %v4523
  %v4588 = vunpack.c.l.b16 %v4524
  %v4589 = vunpack.c.l.b16 %v4525
  %v4590 = vunpack.c.l.b16 %v4526
  %v4591 = vpack.c.b16 %v4576, %v4575
  %v4592 = vpack.c.b16 %v4578, %v4577
  %v4593 = vpack.c.b16 %v4580, %v4579
  %v4594 = vpack.c.b16 %v4582, %v4581
  %v4595 = vpack.c.b16 %v4584, %v4583
  %v4596 = vpack.c.b16 %v4586, %v4585
  %v4597 = vpack.c.b16 %v4588, %v4587
  %v4598 = vpack.c.b16 %v4590, %v4589
  %4607 = vmatprep.subr.bf16.mxu0 0
  %4608 = vmatpush1.bf16.msra.mxu0 %v4598
  %4609 = vmatprep.subr.bf16.mxu0 0
  %4610 = vmatpush1.bf16.msra.mxu0 %v4597
  %4611 = vmatprep.subr.bf16.mxu0 0
  %4612 = vmatpush1.bf16.msra.mxu0 %v4596
  %4613 = vmatprep.subr.bf16.mxu0 0
  %4614 = vmatpush1.bf16.msra.mxu0 %v4595
  %4615 = vmatprep.subr.bf16.mxu0 0
  %4616 = vmatpush1.bf16.msra.mxu0 %v4594
  %4617 = vmatprep.subr.bf16.mxu0 0
  %4618 = vmatpush1.bf16.msra.mxu0 %v4593
  %4619 = vmatprep.subr.bf16.mxu0 0
  %4620 = vmatpush1.bf16.msra.mxu0 %v4592
  %4621 = vmatprep.subr.bf16.mxu0 0
  %4622 = vmatpush1.bf16.msra.mxu0 %v4591
  %4623 = vmatprep.subr.bf16.mxu0 0
  %4624 = vmatpush2.bf16.msra.mxu0 0
  %4625 = vmatprep.subr.bf16.mxu0 0
  %4626 = vmatpush2.bf16.msra.mxu0 0
  %4627 = vmatprep.subr.bf16.mxu0 0
  %4628 = vmatpush2.bf16.msra.mxu0 0
  %4629 = vmatprep.subr.bf16.mxu0 0
  %4630 = vmatpush2.bf16.msra.mxu0 0
  %4631 = vmatprep.subr.bf16.mxu0 0
  %4632 = vmatpush2.bf16.msra.mxu0 0
  %4633 = vmatprep.subr.bf16.mxu0 0
  %4634 = vmatpush2.bf16.msra.mxu0 0
  %4635 = vmatprep.subr.bf16.mxu0 0
  %4636 = vmatpush2.bf16.msra.mxu0 0
  %4637 = vmatprep.subr.bf16.mxu0 0
  %4638 = vmatpush2.bf16.msra.mxu0 0
  %4639 = vmatprep.mubr.bf16.mxu0 0
  %4640 = vmatmul.mubr.bf16.gmra.mxu0 %v4543
  %v4641 = vpop.f32.mrf.mxu0
  %v4642 = vadd.f32 0.0, %v4641
  %v4643 = vpop.f32.mrf.mxu0
  %v4644 = vpop.f32.mrf.mxu0
  %v4645 = vadd.f32 0.0, %v4644
  %v4646 = vpop.f32.mrf.mxu0
  %4647 = vmatprep.mubr.bf16.mxu0 0
  %4648 = vmatmul.mubr.bf16.gmra.mxu0 %v4544
  %v4649 = vpop.f32.mrf.mxu0
  %v4650 = vadd.f32 0.0, %v4649
  %v4651 = vpop.f32.mrf.mxu0
  %v4652 = vpop.f32.mrf.mxu0
  %v4653 = vadd.f32 0.0, %v4652
  %v4654 = vpop.f32.mrf.mxu0
  %4655 = vmatprep.mubr.bf16.mxu0 0
  %4656 = vmatmul.mubr.bf16.gmra.mxu0 %v4545
  %v4657 = vpop.f32.mrf.mxu0
  %v4658 = vadd.f32 0.0, %v4657
  %v4659 = vpop.f32.mrf.mxu0
  %v4660 = vpop.f32.mrf.mxu0
  %v4661 = vadd.f32 0.0, %v4660
  %v4662 = vpop.f32.mrf.mxu0
  %4663 = vmatprep.mubr.bf16.mxu0 0
  %4664 = vmatmul.mubr.bf16.gmra.mxu0 %v4546
  %v4665 = vpop.f32.mrf.mxu0
  %v4666 = vadd.f32 0.0, %v4665
  %v4667 = vpop.f32.mrf.mxu0
  %v4668 = vpop.f32.mrf.mxu0
  %v4669 = vadd.f32 0.0, %v4668
  %v4670 = vpop.f32.mrf.mxu0
  %4671 = vmatprep.mubr.bf16.mxu0 0
  %4672 = vmatmul.mubr.bf16.gmra.mxu0 %v4547
  %v4673 = vpop.f32.mrf.mxu0
  %v4674 = vadd.f32 0.0, %v4673
  %v4675 = vpop.f32.mrf.mxu0
  %v4676 = vpop.f32.mrf.mxu0
  %v4677 = vadd.f32 0.0, %v4676
  %v4678 = vpop.f32.mrf.mxu0
  %4679 = vmatprep.mubr.bf16.mxu0 0
  %4680 = vmatmul.mubr.bf16.gmra.mxu0 %v4548
  %v4681 = vpop.f32.mrf.mxu0
  %v4682 = vadd.f32 0.0, %v4681
  %v4683 = vpop.f32.mrf.mxu0
  %v4684 = vpop.f32.mrf.mxu0
  %v4685 = vadd.f32 0.0, %v4684
  %v4686 = vpop.f32.mrf.mxu0
  %4687 = vmatprep.mubr.bf16.mxu0 0
  %4688 = vmatmul.mubr.bf16.gmra.mxu0 %v4549
  %v4689 = vpop.f32.mrf.mxu0
  %v4690 = vadd.f32 0.0, %v4689
  %v4691 = vpop.f32.mrf.mxu0
  %v4692 = vpop.f32.mrf.mxu0
  %v4693 = vadd.f32 0.0, %v4692
  %v4694 = vpop.f32.mrf.mxu0
  %4695 = vmatprep.mubr.bf16.mxu0 0
  %4696 = vmatmul.mubr.bf16.gmra.mxu0 %v4550
  %v4697 = vpop.f32.mrf.mxu0
  %v4698 = vadd.f32 0.0, %v4697
  %v4699 = vpop.f32.mrf.mxu0
  %v4700 = vpop.f32.mrf.mxu0
  %v4701 = vadd.f32 0.0, %v4700
  %v4702 = vpop.f32.mrf.mxu0
  %4703 = vdwg.mxu0
  %v4704 = vadd.f32 %v4382, %v4642
  %v4705 = vadd.f32 %v4383, %v4645
  %v4706 = vadd.f32 %v4384, %v4650
  %v4707 = vadd.f32 %v4385, %v4653
  %v4708 = vadd.f32 %v4386, %v4658
  %v4709 = vadd.f32 %v4387, %v4661
  %v4710 = vadd.f32 %v4388, %v4666
  %v4711 = vadd.f32 %v4389, %v4669
  %v4712 = vadd.f32 %v4390, %v4674
  %v4713 = vadd.f32 %v4391, %v4677
  %v4714 = vadd.f32 %v4392, %v4682
  %v4715 = vadd.f32 %v4393, %v4685
  %v4716 = vadd.f32 %v4394, %v4690
  %v4717 = vadd.f32 %v4395, %v4693
  %v4718 = vadd.f32 %v4396, %v4698
  %v4719 = vadd.f32 %v4397, %v4701
  %s4720 = scalar_lea.vmem [#allocation2], 16
  %v4721 = vld [vmem:[%s4720] sm:$0xf]
  %v4722 = vld [vmem:[%s4720 + $0x8] sm:$0xf]
  %v4723 = vld [vmem:[%s4720 + $0x10] sm:$0xf]
  %v4724 = vld [vmem:[%s4720 + $0x18] sm:$0xf]
  %v4725 = vld [vmem:[%s4720 + $0x20] sm:$0xf]
  %v4726 = vld [vmem:[%s4720 + $0x28] sm:$0xf]
  %v4727 = vld [vmem:[%s4720 + $0x30] sm:$0xf]
  %v4728 = vld [vmem:[%s4720 + $0x38] sm:$0xf]
  %v4729 = vld [vmem:[%s4720 + $0x50] sm:$0xf]
  %v4730 = vld [vmem:[%s4720 + $0x58] sm:$0xf]
  %v4731 = vld [vmem:[%s4720 + $0x60] sm:$0xf]
  %v4732 = vld [vmem:[%s4720 + $0x68] sm:$0xf]
  %v4733 = vld [vmem:[%s4720 + $0x70] sm:$0xf]
  %v4734 = vld [vmem:[%s4720 + $0x78] sm:$0xf]
  %v4735 = vld [vmem:[%s4720 + $0x80] sm:$0xf]
  %v4736 = vld [vmem:[%s4720 + $0x88] sm:$0xf]
  %s4737 = scalar_lea.vmem %s2, 384
  %v4738 = vld [vmem:[%s4737] sm:$0xf]
  %v4739 = vld [vmem:[%s4737 + $0x4] sm:$0xf]
  %v4740 = vld [vmem:[%s4737 + $0x8] sm:$0xf]
  %v4741 = vld [vmem:[%s4737 + $0xc] sm:$0xf]
  %v4742 = vld [vmem:[%s4737 + $0x10] sm:$0xf]
  %v4743 = vld [vmem:[%s4737 + $0x14] sm:$0xf]
  %v4744 = vld [vmem:[%s4737 + $0x18] sm:$0xf]
  %v4745 = vld [vmem:[%s4737 + $0x1c] sm:$0xf]
  %v4746 = vld [vmem:[%s4737 + $0x20] sm:$0xf]
  %v4747 = vld [vmem:[%s4737 + $0x24] sm:$0xf]
  %v4748 = vld [vmem:[%s4737 + $0x28] sm:$0xf]
  %v4749 = vld [vmem:[%s4737 + $0x2c] sm:$0xf]
  %v4750 = vld [vmem:[%s4737 + $0x30] sm:$0xf]
  %v4751 = vld [vmem:[%s4737 + $0x34] sm:$0xf]
  %v4752 = vld [vmem:[%s4737 + $0x38] sm:$0xf]
  %v4753 = vld [vmem:[%s4737 + $0x3c] sm:$0xf]
  %v4770 = vunpack.c.l.b16 %v4721
  %v4771 = vunpack.c.l.b16 %v4722
  %v4772 = vunpack.c.l.b16 %v4723
  %v4773 = vunpack.c.l.b16 %v4724
  %v4774 = vunpack.c.l.b16 %v4725
  %v4775 = vunpack.c.l.b16 %v4726
  %v4776 = vunpack.c.l.b16 %v4727
  %v4777 = vunpack.c.l.b16 %v4728
  %v4778 = vunpack.c.l.b16 %v4729
  %v4779 = vunpack.c.l.b16 %v4730
  %v4780 = vunpack.c.l.b16 %v4731
  %v4781 = vunpack.c.l.b16 %v4732
  %v4782 = vunpack.c.l.b16 %v4733
  %v4783 = vunpack.c.l.b16 %v4734
  %v4784 = vunpack.c.l.b16 %v4735
  %v4785 = vunpack.c.l.b16 %v4736
  %v4786 = vpack.c.b16 %v4771, %v4770
  %v4787 = vpack.c.b16 %v4773, %v4772
  %v4788 = vpack.c.b16 %v4775, %v4774
  %v4789 = vpack.c.b16 %v4777, %v4776
  %v4790 = vpack.c.b16 %v4779, %v4778
  %v4791 = vpack.c.b16 %v4781, %v4780
  %v4792 = vpack.c.b16 %v4783, %v4782
  %v4793 = vpack.c.b16 %v4785, %v4784
  %v4818 = vunpack.c.l.b16 %v4738
  %v4819 = vunpack.c.l.b16 %v4739
  %v4820 = vunpack.c.l.b16 %v4740
  %v4821 = vunpack.c.l.b16 %v4741
  %v4822 = vunpack.c.l.b16 %v4742
  %v4823 = vunpack.c.l.b16 %v4743
  %v4824 = vunpack.c.l.b16 %v4744
  %v4825 = vunpack.c.l.b16 %v4745
  %v4826 = vunpack.c.l.b16 %v4746
  %v4827 = vunpack.c.l.b16 %v4747
  %v4828 = vunpack.c.l.b16 %v4748
  %v4829 = vunpack.c.l.b16 %v4749
  %v4830 = vunpack.c.l.b16 %v4750
  %v4831 = vunpack.c.l.b16 %v4751
  %v4832 = vunpack.c.l.b16 %v4752
  %v4833 = vunpack.c.l.b16 %v4753
  %v4834 = vpack.c.b16 %v4819, %v4818
  %v4835 = vpack.c.b16 %v4821, %v4820
  %v4836 = vpack.c.b16 %v4823, %v4822
  %v4837 = vpack.c.b16 %v4825, %v4824
  %v4838 = vpack.c.b16 %v4827, %v4826
  %v4839 = vpack.c.b16 %v4829, %v4828
  %v4840 = vpack.c.b16 %v4831, %v4830
  %v4841 = vpack.c.b16 %v4833, %v4832
  %4850 = vmatprep.subr.bf16.mxu0 0
  %4851 = vmatpush1.bf16.msra.mxu0 %v4841
  %4852 = vmatprep.subr.bf16.mxu0 0
  %4853 = vmatpush1.bf16.msra.mxu0 %v4840
  %4854 = vmatprep.subr.bf16.mxu0 0
  %4855 = vmatpush1.bf16.msra.mxu0 %v4839
  %4856 = vmatprep.subr.bf16.mxu0 0
  %4857 = vmatpush1.bf16.msra.mxu0 %v4838
  %4858 = vmatprep.subr.bf16.mxu0 0
  %4859 = vmatpush1.bf16.msra.mxu0 %v4837
  %4860 = vmatprep.subr.bf16.mxu0 0
  %4861 = vmatpush1.bf16.msra.mxu0 %v4836
  %4862 = vmatprep.subr.bf16.mxu0 0
  %4863 = vmatpush1.bf16.msra.mxu0 %v4835
  %4864 = vmatprep.subr.bf16.mxu0 0
  %4865 = vmatpush1.bf16.msra.mxu0 %v4834
  %4866 = vmatprep.subr.bf16.mxu0 0
  %4867 = vmatpush2.bf16.msra.mxu0 0
  %4868 = vmatprep.subr.bf16.mxu0 0
  %4869 = vmatpush2.bf16.msra.mxu0 0
  %4870 = vmatprep.subr.bf16.mxu0 0
  %4871 = vmatpush2.bf16.msra.mxu0 0
  %4872 = vmatprep.subr.bf16.mxu0 0
  %4873 = vmatpush2.bf16.msra.mxu0 0
  %4874 = vmatprep.subr.bf16.mxu0 0
  %4875 = vmatpush2.bf16.msra.mxu0 0
  %4876 = vmatprep.subr.bf16.mxu0 0
  %4877 = vmatpush2.bf16.msra.mxu0 0
  %4878 = vmatprep.subr.bf16.mxu0 0
  %4879 = vmatpush2.bf16.msra.mxu0 0
  %4880 = vmatprep.subr.bf16.mxu0 0
  %4881 = vmatpush2.bf16.msra.mxu0 0
  %4882 = vmatprep.mubr.bf16.mxu0 0
  %4883 = vmatmul.mubr.bf16.gmra.mxu0 %v4786
  %v4884 = vpop.f32.mrf.mxu0
  %v4885 = vadd.f32 0.0, %v4884
  %v4886 = vpop.f32.mrf.mxu0
  %v4887 = vpop.f32.mrf.mxu0
  %v4888 = vadd.f32 0.0, %v4887
  %v4889 = vpop.f32.mrf.mxu0
  %4890 = vmatprep.mubr.bf16.mxu0 0
  %4891 = vmatmul.mubr.bf16.gmra.mxu0 %v4787
  %v4892 = vpop.f32.mrf.mxu0
  %v4893 = vadd.f32 0.0, %v4892
  %v4894 = vpop.f32.mrf.mxu0
  %v4895 = vpop.f32.mrf.mxu0
  %v4896 = vadd.f32 0.0, %v4895
  %v4897 = vpop.f32.mrf.mxu0
  %4898 = vmatprep.mubr.bf16.mxu0 0
  %4899 = vmatmul.mubr.bf16.gmra.mxu0 %v4788
  %v4900 = vpop.f32.mrf.mxu0
  %v4901 = vadd.f32 0.0, %v4900
  %v4902 = vpop.f32.mrf.mxu0
  %v4903 = vpop.f32.mrf.mxu0
  %v4904 = vadd.f32 0.0, %v4903
  %v4905 = vpop.f32.mrf.mxu0
  %4906 = vmatprep.mubr.bf16.mxu0 0
  %4907 = vmatmul.mubr.bf16.gmra.mxu0 %v4789
  %v4908 = vpop.f32.mrf.mxu0
  %v4909 = vadd.f32 0.0, %v4908
  %v4910 = vpop.f32.mrf.mxu0
  %v4911 = vpop.f32.mrf.mxu0
  %v4912 = vadd.f32 0.0, %v4911
  %v4913 = vpop.f32.mrf.mxu0
  %4914 = vmatprep.mubr.bf16.mxu0 0
  %4915 = vmatmul.mubr.bf16.gmra.mxu0 %v4790
  %v4916 = vpop.f32.mrf.mxu0
  %v4917 = vadd.f32 0.0, %v4916
  %v4918 = vpop.f32.mrf.mxu0
  %v4919 = vpop.f32.mrf.mxu0
  %v4920 = vadd.f32 0.0, %v4919
  %v4921 = vpop.f32.mrf.mxu0
  %4922 = vmatprep.mubr.bf16.mxu0 0
  %4923 = vmatmul.mubr.bf16.gmra.mxu0 %v4791
  %v4924 = vpop.f32.mrf.mxu0
  %v4925 = vadd.f32 0.0, %v4924
  %v4926 = vpop.f32.mrf.mxu0
  %v4927 = vpop.f32.mrf.mxu0
  %v4928 = vadd.f32 0.0, %v4927
  %v4929 = vpop.f32.mrf.mxu0
  %4930 = vmatprep.mubr.bf16.mxu0 0
  %4931 = vmatmul.mubr.bf16.gmra.mxu0 %v4792
  %v4932 = vpop.f32.mrf.mxu0
  %v4933 = vadd.f32 0.0, %v4932
  %v4934 = vpop.f32.mrf.mxu0
  %v4935 = vpop.f32.mrf.mxu0
  %v4936 = vadd.f32 0.0, %v4935
  %v4937 = vpop.f32.mrf.mxu0
  %4938 = vmatprep.mubr.bf16.mxu0 0
  %4939 = vmatmul.mubr.bf16.gmra.mxu0 %v4793
  %v4940 = vpop.f32.mrf.mxu0
  %v4941 = vadd.f32 0.0, %v4940
  %v4942 = vpop.f32.mrf.mxu0
  %v4943 = vpop.f32.mrf.mxu0
  %v4944 = vadd.f32 0.0, %v4943
  %v4945 = vpop.f32.mrf.mxu0
  %4946 = vdwg.mxu0
  %v4947 = vadd.f32 %v4704, %v4885
  %v4948 = vadd.f32 %v4705, %v4888
  %v4949 = vadd.f32 %v4706, %v4893
  %v4950 = vadd.f32 %v4707, %v4896
  %v4951 = vadd.f32 %v4708, %v4901
  %v4952 = vadd.f32 %v4709, %v4904
  %v4953 = vadd.f32 %v4710, %v4909
  %v4954 = vadd.f32 %v4711, %v4912
  %v4955 = vadd.f32 %v4712, %v4917
  %v4956 = vadd.f32 %v4713, %v4920
  %v4957 = vadd.f32 %v4714, %v4925
  %v4958 = vadd.f32 %v4715, %v4928
  %v4959 = vadd.f32 %v4716, %v4933
  %v4960 = vadd.f32 %v4717, %v4936
  %v4961 = vadd.f32 %v4718, %v4941
  %v4962 = vadd.f32 %v4719, %v4944
  %v4963 = vld [vmem:[%s4720] sm:$0xf]
  %v4964 = vld [vmem:[%s4720 + $0x4] sm:$0x1]
  %v4965 = vld [vmem:[%s4720 + $0x8] sm:$0xf]
  %v4966 = vld [vmem:[%s4720 + $0xc] sm:$0x1]
  %v4967 = vld [vmem:[%s4720 + $0x10] sm:$0xf]
  %v4968 = vld [vmem:[%s4720 + $0x14] sm:$0x1]
  %v4969 = vld [vmem:[%s4720 + $0x18] sm:$0xf]
  %v4970 = vld [vmem:[%s4720 + $0x1c] sm:$0x1]
  %v4971 = vld [vmem:[%s4720 + $0x20] sm:$0xf]
  %v4972 = vld [vmem:[%s4720 + $0x24] sm:$0x1]
  %v4973 = vld [vmem:[%s4720 + $0x28] sm:$0xf]
  %v4974 = vld [vmem:[%s4720 + $0x2c] sm:$0x1]
  %v4975 = vld [vmem:[%s4720 + $0x30] sm:$0xf]
  %v4976 = vld [vmem:[%s4720 + $0x34] sm:$0x1]
  %v4977 = vld [vmem:[%s4720 + $0x38] sm:$0xf]
  %v4978 = vld [vmem:[%s4720 + $0x3c] sm:$0x1]
  %v4979 = vld [vmem:[%s4720 + $0x50] sm:$0xf]
  %v4980 = vld [vmem:[%s4720 + $0x54] sm:$0x1]
  %v4981 = vld [vmem:[%s4720 + $0x58] sm:$0xf]
  %v4982 = vld [vmem:[%s4720 + $0x5c] sm:$0x1]
  %v4983 = vld [vmem:[%s4720 + $0x60] sm:$0xf]
  %v4984 = vld [vmem:[%s4720 + $0x64] sm:$0x1]
  %v4985 = vld [vmem:[%s4720 + $0x68] sm:$0xf]
  %v4986 = vld [vmem:[%s4720 + $0x6c] sm:$0x1]
  %v4987 = vld [vmem:[%s4720 + $0x70] sm:$0xf]
  %v4988 = vld [vmem:[%s4720 + $0x74] sm:$0x1]
  %v4989 = vld [vmem:[%s4720 + $0x78] sm:$0xf]
  %v4990 = vld [vmem:[%s4720 + $0x7c] sm:$0x1]
  %v4991 = vld [vmem:[%s4720 + $0x80] sm:$0xf]
  %v4992 = vld [vmem:[%s4720 + $0x84] sm:$0x1]
  %v4993 = vld [vmem:[%s4720 + $0x88] sm:$0xf]
  %v4994 = vld [vmem:[%s4720 + $0x8c] sm:$0x1]
  %v4996 = vshrl.u32 %v4963, 16
  %v4998 = vrot.slane %v4996, 4
  %v4999 = vshll.u32 %v4963, 16
  %v5001 = vrot.slane %v4999, 5
  %v5002 = vor.u32 %v4998, %v5001
  %v5003 = vrot.slane %v5002, 4
  %v5005 = vshll.u32 %v4964, 16
  %v5007 = vrot.slane %v5005, 5
  %v5008 = vsel %vm462, %v5003, %v5007
  %v5010 = vshrl.u32 %v4965, 16
  %v5012 = vrot.slane %v5010, 4
  %v5013 = vshll.u32 %v4965, 16
  %v5015 = vrot.slane %v5013, 5
  %v5016 = vor.u32 %v5012, %v5015
  %v5017 = vrot.slane %v5016, 4
  %v5019 = vshll.u32 %v4966, 16
  %v5021 = vrot.slane %v5019, 5
  %v5022 = vsel %vm462, %v5017, %v5021
  %v5024 = vshrl.u32 %v4967, 16
  %v5026 = vrot.slane %v5024, 4
  %v5027 = vshll.u32 %v4967, 16
  %v5029 = vrot.slane %v5027, 5
  %v5030 = vor.u32 %v5026, %v5029
  %v5031 = vrot.slane %v5030, 4
  %v5033 = vshll.u32 %v4968, 16
  %v5035 = vrot.slane %v5033, 5
  %v5036 = vsel %vm462, %v5031, %v5035
  %v5038 = vshrl.u32 %v4969, 16
  %v5040 = vrot.slane %v5038, 4
  %v5041 = vshll.u32 %v4969, 16
  %v5043 = vrot.slane %v5041, 5
  %v5044 = vor.u32 %v5040, %v5043
  %v5045 = vrot.slane %v5044, 4
  %v5047 = vshll.u32 %v4970, 16
  %v5049 = vrot.slane %v5047, 5
  %v5050 = vsel %vm462, %v5045, %v5049
  %v5052 = vshrl.u32 %v4971, 16
  %v5054 = vrot.slane %v5052, 4
  %v5055 = vshll.u32 %v4971, 16
  %v5057 = vrot.slane %v5055, 5
  %v5058 = vor.u32 %v5054, %v5057
  %v5059 = vrot.slane %v5058, 4
  %v5061 = vshll.u32 %v4972, 16
  %v5063 = vrot.slane %v5061, 5
  %v5064 = vsel %vm462, %v5059, %v5063
  %v5066 = vshrl.u32 %v4973, 16
  %v5068 = vrot.slane %v5066, 4
  %v5069 = vshll.u32 %v4973, 16
  %v5071 = vrot.slane %v5069, 5
  %v5072 = vor.u32 %v5068, %v5071
  %v5073 = vrot.slane %v5072, 4
  %v5075 = vshll.u32 %v4974, 16
  %v5077 = vrot.slane %v5075, 5
  %v5078 = vsel %vm462, %v5073, %v5077
  %v5080 = vshrl.u32 %v4975, 16
  %v5082 = vrot.slane %v5080, 4
  %v5083 = vshll.u32 %v4975, 16
  %v5085 = vrot.slane %v5083, 5
  %v5086 = vor.u32 %v5082, %v5085
  %v5087 = vrot.slane %v5086, 4
  %v5089 = vshll.u32 %v4976, 16
  %v5091 = vrot.slane %v5089, 5
  %v5092 = vsel %vm462, %v5087, %v5091
  %v5094 = vshrl.u32 %v4977, 16
  %v5096 = vrot.slane %v5094, 4
  %v5097 = vshll.u32 %v4977, 16
  %v5099 = vrot.slane %v5097, 5
  %v5100 = vor.u32 %v5096, %v5099
  %v5101 = vrot.slane %v5100, 4
  %v5103 = vshll.u32 %v4978, 16
  %v5105 = vrot.slane %v5103, 5
  %v5106 = vsel %vm462, %v5101, %v5105
  %v5108 = vshrl.u32 %v4979, 16
  %v5110 = vrot.slane %v5108, 4
  %v5111 = vshll.u32 %v4979, 16
  %v5113 = vrot.slane %v5111, 5
  %v5114 = vor.u32 %v5110, %v5113
  %v5115 = vrot.slane %v5114, 4
  %v5117 = vshll.u32 %v4980, 16
  %v5119 = vrot.slane %v5117, 5
  %v5120 = vsel %vm462, %v5115, %v5119
  %v5122 = vshrl.u32 %v4981, 16
  %v5124 = vrot.slane %v5122, 4
  %v5125 = vshll.u32 %v4981, 16
  %v5127 = vrot.slane %v5125, 5
  %v5128 = vor.u32 %v5124, %v5127
  %v5129 = vrot.slane %v5128, 4
  %v5131 = vshll.u32 %v4982, 16
  %v5133 = vrot.slane %v5131, 5
  %v5134 = vsel %vm462, %v5129, %v5133
  %v5136 = vshrl.u32 %v4983, 16
  %v5138 = vrot.slane %v5136, 4
  %v5139 = vshll.u32 %v4983, 16
  %v5141 = vrot.slane %v5139, 5
  %v5142 = vor.u32 %v5138, %v5141
  %v5143 = vrot.slane %v5142, 4
  %v5145 = vshll.u32 %v4984, 16
  %v5147 = vrot.slane %v5145, 5
  %v5148 = vsel %vm462, %v5143, %v5147
  %v5150 = vshrl.u32 %v4985, 16
  %v5152 = vrot.slane %v5150, 4
  %v5153 = vshll.u32 %v4985, 16
  %v5155 = vrot.slane %v5153, 5
  %v5156 = vor.u32 %v5152, %v5155
  %v5157 = vrot.slane %v5156, 4
  %v5159 = vshll.u32 %v4986, 16
  %v5161 = vrot.slane %v5159, 5
  %v5162 = vsel %vm462, %v5157, %v5161
  %v5164 = vshrl.u32 %v4987, 16
  %v5166 = vrot.slane %v5164, 4
  %v5167 = vshll.u32 %v4987, 16
  %v5169 = vrot.slane %v5167, 5
  %v5170 = vor.u32 %v5166, %v5169
  %v5171 = vrot.slane %v5170, 4
  %v5173 = vshll.u32 %v4988, 16
  %v5175 = vrot.slane %v5173, 5
  %v5176 = vsel %vm462, %v5171, %v5175
  %v5178 = vshrl.u32 %v4989, 16
  %v5180 = vrot.slane %v5178, 4
  %v5181 = vshll.u32 %v4989, 16
  %v5183 = vrot.slane %v5181, 5
  %v5184 = vor.u32 %v5180, %v5183
  %v5185 = vrot.slane %v5184, 4
  %v5187 = vshll.u32 %v4990, 16
  %v5189 = vrot.slane %v5187, 5
  %v5190 = vsel %vm462, %v5185, %v5189
  %v5192 = vshrl.u32 %v4991, 16
  %v5194 = vrot.slane %v5192, 4
  %v5195 = vshll.u32 %v4991, 16
  %v5197 = vrot.slane %v5195, 5
  %v5198 = vor.u32 %v5194, %v5197
  %v5199 = vrot.slane %v5198, 4
  %v5201 = vshll.u32 %v4992, 16
  %v5203 = vrot.slane %v5201, 5
  %v5204 = vsel %vm462, %v5199, %v5203
  %v5206 = vshrl.u32 %v4993, 16
  %v5208 = vrot.slane %v5206, 4
  %v5209 = vshll.u32 %v4993, 16
  %v5211 = vrot.slane %v5209, 5
  %v5212 = vor.u32 %v5208, %v5211
  %v5213 = vrot.slane %v5212, 4
  %v5215 = vshll.u32 %v4994, 16
  %v5217 = vrot.slane %v5215, 5
  %v5218 = vsel %vm462, %v5213, %v5217
  %s5219 = scalar_lea.vmem %s2, 448
  %v5220 = vld [vmem:[%s5219] sm:$0xf]
  %v5221 = vld [vmem:[%s5219 + $0x4] sm:$0xf]
  %v5222 = vld [vmem:[%s5219 + $0x8] sm:$0xf]
  %v5223 = vld [vmem:[%s5219 + $0xc] sm:$0xf]
  %v5224 = vld [vmem:[%s5219 + $0x10] sm:$0xf]
  %v5225 = vld [vmem:[%s5219 + $0x14] sm:$0xf]
  %v5226 = vld [vmem:[%s5219 + $0x18] sm:$0xf]
  %v5227 = vld [vmem:[%s5219 + $0x1c] sm:$0xf]
  %v5228 = vld [vmem:[%s5219 + $0x20] sm:$0xf]
  %v5229 = vld [vmem:[%s5219 + $0x24] sm:$0xf]
  %v5230 = vld [vmem:[%s5219 + $0x28] sm:$0xf]
  %v5231 = vld [vmem:[%s5219 + $0x2c] sm:$0xf]
  %v5232 = vld [vmem:[%s5219 + $0x30] sm:$0xf]
  %v5233 = vld [vmem:[%s5219 + $0x34] sm:$0xf]
  %v5234 = vld [vmem:[%s5219 + $0x38] sm:$0xf]
  %v5235 = vld [vmem:[%s5219 + $0x3c] sm:$0xf]
  %v5236 = vunpack.c.l.b16 %v5008
  %v5237 = vunpack.c.l.b16 %v5022
  %v5238 = vunpack.c.l.b16 %v5036
  %v5239 = vunpack.c.l.b16 %v5050
  %v5240 = vunpack.c.l.b16 %v5064
  %v5241 = vunpack.c.l.b16 %v5078
  %v5242 = vunpack.c.l.b16 %v5092
  %v5243 = vunpack.c.l.b16 %v5106
  %v5244 = vunpack.c.l.b16 %v5120
  %v5245 = vunpack.c.l.b16 %v5134
  %v5246 = vunpack.c.l.b16 %v5148
  %v5247 = vunpack.c.l.b16 %v5162
  %v5248 = vunpack.c.l.b16 %v5176
  %v5249 = vunpack.c.l.b16 %v5190
  %v5250 = vunpack.c.l.b16 %v5204
  %v5251 = vunpack.c.l.b16 %v5218
  %v5252 = vpack.c.b16 %v5237, %v5236
  %v5253 = vpack.c.b16 %v5239, %v5238
  %v5254 = vpack.c.b16 %v5241, %v5240
  %v5255 = vpack.c.b16 %v5243, %v5242
  %v5256 = vpack.c.b16 %v5245, %v5244
  %v5257 = vpack.c.b16 %v5247, %v5246
  %v5258 = vpack.c.b16 %v5249, %v5248
  %v5259 = vpack.c.b16 %v5251, %v5250
  %v5284 = vunpack.c.l.b16 %v5220
  %v5285 = vunpack.c.l.b16 %v5221
  %v5286 = vunpack.c.l.b16 %v5222
  %v5287 = vunpack.c.l.b16 %v5223
  %v5288 = vunpack.c.l.b16 %v5224
  %v5289 = vunpack.c.l.b16 %v5225
  %v5290 = vunpack.c.l.b16 %v5226
  %v5291 = vunpack.c.l.b16 %v5227
  %v5292 = vunpack.c.l.b16 %v5228
  %v5293 = vunpack.c.l.b16 %v5229
  %v5294 = vunpack.c.l.b16 %v5230
  %v5295 = vunpack.c.l.b16 %v5231
  %v5296 = vunpack.c.l.b16 %v5232
  %v5297 = vunpack.c.l.b16 %v5233
  %v5298 = vunpack.c.l.b16 %v5234
  %v5299 = vunpack.c.l.b16 %v5235
  %v5300 = vpack.c.b16 %v5285, %v5284
  %v5301 = vpack.c.b16 %v5287, %v5286
  %v5302 = vpack.c.b16 %v5289, %v5288
  %v5303 = vpack.c.b16 %v5291, %v5290
  %v5304 = vpack.c.b16 %v5293, %v5292
  %v5305 = vpack.c.b16 %v5295, %v5294
  %v5306 = vpack.c.b16 %v5297, %v5296
  %v5307 = vpack.c.b16 %v5299, %v5298
  %5316 = vmatprep.subr.bf16.mxu0 0
  %5317 = vmatpush1.bf16.msra.mxu0 %v5307
  %5318 = vmatprep.subr.bf16.mxu0 0
  %5319 = vmatpush1.bf16.msra.mxu0 %v5306
  %5320 = vmatprep.subr.bf16.mxu0 0
  %5321 = vmatpush1.bf16.msra.mxu0 %v5305
  %5322 = vmatprep.subr.bf16.mxu0 0
  %5323 = vmatpush1.bf16.msra.mxu0 %v5304
  %5324 = vmatprep.subr.bf16.mxu0 0
  %5325 = vmatpush1.bf16.msra.mxu0 %v5303
  %5326 = vmatprep.subr.bf16.mxu0 0
  %5327 = vmatpush1.bf16.msra.mxu0 %v5302
  %5328 = vmatprep.subr.bf16.mxu0 0
  %5329 = vmatpush1.bf16.msra.mxu0 %v5301
  %5330 = vmatprep.subr.bf16.mxu0 0
  %5331 = vmatpush1.bf16.msra.mxu0 %v5300
  %5332 = vmatprep.subr.bf16.mxu0 0
  %5333 = vmatpush2.bf16.msra.mxu0 0
  %5334 = vmatprep.subr.bf16.mxu0 0
  %5335 = vmatpush2.bf16.msra.mxu0 0
  %5336 = vmatprep.subr.bf16.mxu0 0
  %5337 = vmatpush2.bf16.msra.mxu0 0
  %5338 = vmatprep.subr.bf16.mxu0 0
  %5339 = vmatpush2.bf16.msra.mxu0 0
  %5340 = vmatprep.subr.bf16.mxu0 0
  %5341 = vmatpush2.bf16.msra.mxu0 0
  %5342 = vmatprep.subr.bf16.mxu0 0
  %5343 = vmatpush2.bf16.msra.mxu0 0
  %5344 = vmatprep.subr.bf16.mxu0 0
  %5345 = vmatpush2.bf16.msra.mxu0 0
  %5346 = vmatprep.subr.bf16.mxu0 0
  %5347 = vmatpush2.bf16.msra.mxu0 0
  %5348 = vmatprep.mubr.bf16.mxu0 0
  %5349 = vmatmul.mubr.bf16.gmra.mxu0 %v5252
  %v5350 = vpop.f32.mrf.mxu0
  %v5351 = vadd.f32 0.0, %v5350
  %v5352 = vpop.f32.mrf.mxu0
  %v5353 = vpop.f32.mrf.mxu0
  %v5354 = vadd.f32 0.0, %v5353
  %v5355 = vpop.f32.mrf.mxu0
  %5356 = vmatprep.mubr.bf16.mxu0 0
  %5357 = vmatmul.mubr.bf16.gmra.mxu0 %v5253
  %v5358 = vpop.f32.mrf.mxu0
  %v5359 = vadd.f32 0.0, %v5358
  %v5360 = vpop.f32.mrf.mxu0
  %v5361 = vpop.f32.mrf.mxu0
  %v5362 = vadd.f32 0.0, %v5361
  %v5363 = vpop.f32.mrf.mxu0
  %5364 = vmatprep.mubr.bf16.mxu0 0
  %5365 = vmatmul.mubr.bf16.gmra.mxu0 %v5254
  %v5366 = vpop.f32.mrf.mxu0
  %v5367 = vadd.f32 0.0, %v5366
  %v5368 = vpop.f32.mrf.mxu0
  %v5369 = vpop.f32.mrf.mxu0
  %v5370 = vadd.f32 0.0, %v5369
  %v5371 = vpop.f32.mrf.mxu0
  %5372 = vmatprep.mubr.bf16.mxu0 0
  %5373 = vmatmul.mubr.bf16.gmra.mxu0 %v5255
  %v5374 = vpop.f32.mrf.mxu0
  %v5375 = vadd.f32 0.0, %v5374
  %v5376 = vpop.f32.mrf.mxu0
  %v5377 = vpop.f32.mrf.mxu0
  %v5378 = vadd.f32 0.0, %v5377
  %v5379 = vpop.f32.mrf.mxu0
  %5380 = vmatprep.mubr.bf16.mxu0 0
  %5381 = vmatmul.mubr.bf16.gmra.mxu0 %v5256
  %v5382 = vpop.f32.mrf.mxu0
  %v5383 = vadd.f32 0.0, %v5382
  %v5384 = vpop.f32.mrf.mxu0
  %v5385 = vpop.f32.mrf.mxu0
  %v5386 = vadd.f32 0.0, %v5385
  %v5387 = vpop.f32.mrf.mxu0
  %5388 = vmatprep.mubr.bf16.mxu0 0
  %5389 = vmatmul.mubr.bf16.gmra.mxu0 %v5257
  %v5390 = vpop.f32.mrf.mxu0
  %v5391 = vadd.f32 0.0, %v5390
  %v5392 = vpop.f32.mrf.mxu0
  %v5393 = vpop.f32.mrf.mxu0
  %v5394 = vadd.f32 0.0, %v5393
  %v5395 = vpop.f32.mrf.mxu0
  %5396 = vmatprep.mubr.bf16.mxu0 0
  %5397 = vmatmul.mubr.bf16.gmra.mxu0 %v5258
  %v5398 = vpop.f32.mrf.mxu0
  %v5399 = vadd.f32 0.0, %v5398
  %v5400 = vpop.f32.mrf.mxu0
  %v5401 = vpop.f32.mrf.mxu0
  %v5402 = vadd.f32 0.0, %v5401
  %v5403 = vpop.f32.mrf.mxu0
  %5404 = vmatprep.mubr.bf16.mxu0 0
  %5405 = vmatmul.mubr.bf16.gmra.mxu0 %v5259
  %v5406 = vpop.f32.mrf.mxu0
  %v5407 = vadd.f32 0.0, %v5406
  %v5408 = vpop.f32.mrf.mxu0
  %v5409 = vpop.f32.mrf.mxu0
  %v5410 = vadd.f32 0.0, %v5409
  %v5411 = vpop.f32.mrf.mxu0
  %5412 = vdwg.mxu0
  %v5413 = vadd.f32 %v4947, %v5351
  %v5414 = vadd.f32 %v4948, %v5354
  %v5415 = vadd.f32 %v4949, %v5359
  %v5416 = vadd.f32 %v4950, %v5362
  %v5417 = vadd.f32 %v4951, %v5367
  %v5418 = vadd.f32 %v4952, %v5370
  %v5419 = vadd.f32 %v4953, %v5375
  %v5420 = vadd.f32 %v4954, %v5378
  %v5421 = vadd.f32 %v4955, %v5383
  %v5422 = vadd.f32 %v4956, %v5386
  %v5423 = vadd.f32 %v4957, %v5391
  %v5424 = vadd.f32 %v4958, %v5394
  %v5425 = vadd.f32 %v4959, %v5399
  %v5426 = vadd.f32 %v4960, %v5402
  %v5427 = vadd.f32 %v4961, %v5407
  %v5428 = vadd.f32 %v4962, %v5410
  %v5429 = vld [vmem:[%s4720] sm:$0xe]
  %v5430 = vld [vmem:[%s4720 + $0x8] sm:$0xe]
  %v5431 = vld [vmem:[%s4720 + $0x10] sm:$0xe]
  %v5432 = vld [vmem:[%s4720 + $0x18] sm:$0xe]
  %v5433 = vld [vmem:[%s4720 + $0x20] sm:$0xe]
  %v5434 = vld [vmem:[%s4720 + $0x28] sm:$0xe]
  %v5435 = vld [vmem:[%s4720 + $0x30] sm:$0xe]
  %v5436 = vld [vmem:[%s4720 + $0x38] sm:$0xe]
  %v5437 = vld [vmem:[%s4720 + $0x50] sm:$0xe]
  %v5438 = vld [vmem:[%s4720 + $0x58] sm:$0xe]
  %v5439 = vld [vmem:[%s4720 + $0x60] sm:$0xe]
  %v5440 = vld [vmem:[%s4720 + $0x68] sm:$0xe]
  %v5441 = vld [vmem:[%s4720 + $0x70] sm:$0xe]
  %v5442 = vld [vmem:[%s4720 + $0x78] sm:$0xe]
  %v5443 = vld [vmem:[%s4720 + $0x80] sm:$0xe]
  %v5444 = vld [vmem:[%s4720 + $0x88] sm:$0xe]
  %v5477 = vrot.slane %v5429, 5
  %v5478 = vrot.slane %v5477, 4
  %v5479 = vrot.slane %v4964, 5
  %v5480 = vsel %vm3415, %v5478, %v5479
  %v5481 = vrot.slane %v5430, 5
  %v5482 = vrot.slane %v5481, 4
  %v5483 = vrot.slane %v4966, 5
  %v5484 = vsel %vm3415, %v5482, %v5483
  %v5485 = vrot.slane %v5431, 5
  %v5486 = vrot.slane %v5485, 4
  %v5487 = vrot.slane %v4968, 5
  %v5488 = vsel %vm3415, %v5486, %v5487
  %v5489 = vrot.slane %v5432, 5
  %v5490 = vrot.slane %v5489, 4
  %v5491 = vrot.slane %v4970, 5
  %v5492 = vsel %vm3415, %v5490, %v5491
  %v5493 = vrot.slane %v5433, 5
  %v5494 = vrot.slane %v5493, 4
  %v5495 = vrot.slane %v4972, 5
  %v5496 = vsel %vm3415, %v5494, %v5495
  %v5497 = vrot.slane %v5434, 5
  %v5498 = vrot.slane %v5497, 4
  %v5499 = vrot.slane %v4974, 5
  %v5500 = vsel %vm3415, %v5498, %v5499
  %v5501 = vrot.slane %v5435, 5
  %v5502 = vrot.slane %v5501, 4
  %v5503 = vrot.slane %v4976, 5
  %v5504 = vsel %vm3415, %v5502, %v5503
  %v5505 = vrot.slane %v5436, 5
  %v5506 = vrot.slane %v5505, 4
  %v5507 = vrot.slane %v4978, 5
  %v5508 = vsel %vm3415, %v5506, %v5507
  %v5509 = vrot.slane %v5437, 5
  %v5510 = vrot.slane %v5509, 4
  %v5511 = vrot.slane %v4980, 5
  %v5512 = vsel %vm3415, %v5510, %v5511
  %v5513 = vrot.slane %v5438, 5
  %v5514 = vrot.slane %v5513, 4
  %v5515 = vrot.slane %v4982, 5
  %v5516 = vsel %vm3415, %v5514, %v5515
  %v5517 = vrot.slane %v5439, 5
  %v5518 = vrot.slane %v5517, 4
  %v5519 = vrot.slane %v4984, 5
  %v5520 = vsel %vm3415, %v5518, %v5519
  %v5521 = vrot.slane %v5440, 5
  %v5522 = vrot.slane %v5521, 4
  %v5523 = vrot.slane %v4986, 5
  %v5524 = vsel %vm3415, %v5522, %v5523
  %v5525 = vrot.slane %v5441, 5
  %v5526 = vrot.slane %v5525, 4
  %v5527 = vrot.slane %v4988, 5
  %v5528 = vsel %vm3415, %v5526, %v5527
  %v5529 = vrot.slane %v5442, 5
  %v5530 = vrot.slane %v5529, 4
  %v5531 = vrot.slane %v4990, 5
  %v5532 = vsel %vm3415, %v5530, %v5531
  %v5533 = vrot.slane %v5443, 5
  %v5534 = vrot.slane %v5533, 4
  %v5535 = vrot.slane %v4992, 5
  %v5536 = vsel %vm3415, %v5534, %v5535
  %v5537 = vrot.slane %v5444, 5
  %v5538 = vrot.slane %v5537, 4
  %v5539 = vrot.slane %v4994, 5
  %v5540 = vsel %vm3415, %v5538, %v5539
  %s5541 = scalar_lea.vmem %s2, 512
  %v5542 = vld [vmem:[%s5541] sm:$0xf]
  %v5543 = vld [vmem:[%s5541 + $0x4] sm:$0xf]
  %v5544 = vld [vmem:[%s5541 + $0x8] sm:$0xf]
  %v5545 = vld [vmem:[%s5541 + $0xc] sm:$0xf]
  %v5546 = vld [vmem:[%s5541 + $0x10] sm:$0xf]
  %v5547 = vld [vmem:[%s5541 + $0x14] sm:$0xf]
  %v5548 = vld [vmem:[%s5541 + $0x18] sm:$0xf]
  %v5549 = vld [vmem:[%s5541 + $0x1c] sm:$0xf]
  %v5550 = vld [vmem:[%s5541 + $0x20] sm:$0xf]
  %v5551 = vld [vmem:[%s5541 + $0x24] sm:$0xf]
  %v5552 = vld [vmem:[%s5541 + $0x28] sm:$0xf]
  %v5553 = vld [vmem:[%s5541 + $0x2c] sm:$0xf]
  %v5554 = vld [vmem:[%s5541 + $0x30] sm:$0xf]
  %v5555 = vld [vmem:[%s5541 + $0x34] sm:$0xf]
  %v5556 = vld [vmem:[%s5541 + $0x38] sm:$0xf]
  %v5557 = vld [vmem:[%s5541 + $0x3c] sm:$0xf]
  %v5558 = vunpack.c.l.b16 %v5480
  %v5559 = vunpack.c.l.b16 %v5484
  %v5560 = vunpack.c.l.b16 %v5488
  %v5561 = vunpack.c.l.b16 %v5492
  %v5562 = vunpack.c.l.b16 %v5496
  %v5563 = vunpack.c.l.b16 %v5500
  %v5564 = vunpack.c.l.b16 %v5504
  %v5565 = vunpack.c.l.b16 %v5508
  %v5566 = vunpack.c.l.b16 %v5512
  %v5567 = vunpack.c.l.b16 %v5516
  %v5568 = vunpack.c.l.b16 %v5520
  %v5569 = vunpack.c.l.b16 %v5524
  %v5570 = vunpack.c.l.b16 %v5528
  %v5571 = vunpack.c.l.b16 %v5532
  %v5572 = vunpack.c.l.b16 %v5536
  %v5573 = vunpack.c.l.b16 %v5540
  %v5574 = vpack.c.b16 %v5559, %v5558
  %v5575 = vpack.c.b16 %v5561, %v5560
  %v5576 = vpack.c.b16 %v5563, %v5562
  %v5577 = vpack.c.b16 %v5565, %v5564
  %v5578 = vpack.c.b16 %v5567, %v5566
  %v5579 = vpack.c.b16 %v5569, %v5568
  %v5580 = vpack.c.b16 %v5571, %v5570
  %v5581 = vpack.c.b16 %v5573, %v5572
  %v5606 = vunpack.c.l.b16 %v5542
  %v5607 = vunpack.c.l.b16 %v5543
  %v5608 = vunpack.c.l.b16 %v5544
  %v5609 = vunpack.c.l.b16 %v5545
  %v5610 = vunpack.c.l.b16 %v5546
  %v5611 = vunpack.c.l.b16 %v5547
  %v5612 = vunpack.c.l.b16 %v5548
  %v5613 = vunpack.c.l.b16 %v5549
  %v5614 = vunpack.c.l.b16 %v5550
  %v5615 = vunpack.c.l.b16 %v5551
  %v5616 = vunpack.c.l.b16 %v5552
  %v5617 = vunpack.c.l.b16 %v5553
  %v5618 = vunpack.c.l.b16 %v5554
  %v5619 = vunpack.c.l.b16 %v5555
  %v5620 = vunpack.c.l.b16 %v5556
  %v5621 = vunpack.c.l.b16 %v5557
  %v5622 = vpack.c.b16 %v5607, %v5606
  %v5623 = vpack.c.b16 %v5609, %v5608
  %v5624 = vpack.c.b16 %v5611, %v5610
  %v5625 = vpack.c.b16 %v5613, %v5612
  %v5626 = vpack.c.b16 %v5615, %v5614
  %v5627 = vpack.c.b16 %v5617, %v5616
  %v5628 = vpack.c.b16 %v5619, %v5618
  %v5629 = vpack.c.b16 %v5621, %v5620
  %5638 = vmatprep.subr.bf16.mxu0 0
  %5639 = vmatpush1.bf16.msra.mxu0 %v5629
  %5640 = vmatprep.subr.bf16.mxu0 0
  %5641 = vmatpush1.bf16.msra.mxu0 %v5628
  %5642 = vmatprep.subr.bf16.mxu0 0
  %5643 = vmatpush1.bf16.msra.mxu0 %v5627
  %5644 = vmatprep.subr.bf16.mxu0 0
  %5645 = vmatpush1.bf16.msra.mxu0 %v5626
  %5646 = vmatprep.subr.bf16.mxu0 0
  %5647 = vmatpush1.bf16.msra.mxu0 %v5625
  %5648 = vmatprep.subr.bf16.mxu0 0
  %5649 = vmatpush1.bf16.msra.mxu0 %v5624
  %5650 = vmatprep.subr.bf16.mxu0 0
  %5651 = vmatpush1.bf16.msra.mxu0 %v5623
  %5652 = vmatprep.subr.bf16.mxu0 0
  %5653 = vmatpush1.bf16.msra.mxu0 %v5622
  %5654 = vmatprep.subr.bf16.mxu0 0
  %5655 = vmatpush2.bf16.msra.mxu0 0
  %5656 = vmatprep.subr.bf16.mxu0 0
  %5657 = vmatpush2.bf16.msra.mxu0 0
  %5658 = vmatprep.subr.bf16.mxu0 0
  %5659 = vmatpush2.bf16.msra.mxu0 0
  %5660 = vmatprep.subr.bf16.mxu0 0
  %5661 = vmatpush2.bf16.msra.mxu0 0
  %5662 = vmatprep.subr.bf16.mxu0 0
  %5663 = vmatpush2.bf16.msra.mxu0 0
  %5664 = vmatprep.subr.bf16.mxu0 0
  %5665 = vmatpush2.bf16.msra.mxu0 0
  %5666 = vmatprep.subr.bf16.mxu0 0
  %5667 = vmatpush2.bf16.msra.mxu0 0
  %5668 = vmatprep.subr.bf16.mxu0 0
  %5669 = vmatpush2.bf16.msra.mxu0 0
  %5670 = vmatprep.mubr.bf16.mxu0 0
  %5671 = vmatmul.mubr.bf16.gmra.mxu0 %v5574
  %v5672 = vpop.f32.mrf.mxu0
  %v5673 = vadd.f32 0.0, %v5672
  %v5674 = vpop.f32.mrf.mxu0
  %v5675 = vpop.f32.mrf.mxu0
  %v5676 = vadd.f32 0.0, %v5675
  %v5677 = vpop.f32.mrf.mxu0
  %5678 = vmatprep.mubr.bf16.mxu0 0
  %5679 = vmatmul.mubr.bf16.gmra.mxu0 %v5575
  %v5680 = vpop.f32.mrf.mxu0
  %v5681 = vadd.f32 0.0, %v5680
  %v5682 = vpop.f32.mrf.mxu0
  %v5683 = vpop.f32.mrf.mxu0
  %v5684 = vadd.f32 0.0, %v5683
  %v5685 = vpop.f32.mrf.mxu0
  %5686 = vmatprep.mubr.bf16.mxu0 0
  %5687 = vmatmul.mubr.bf16.gmra.mxu0 %v5576
  %v5688 = vpop.f32.mrf.mxu0
  %v5689 = vadd.f32 0.0, %v5688
  %v5690 = vpop.f32.mrf.mxu0
  %v5691 = vpop.f32.mrf.mxu0
  %v5692 = vadd.f32 0.0, %v5691
  %v5693 = vpop.f32.mrf.mxu0
  %5694 = vmatprep.mubr.bf16.mxu0 0
  %5695 = vmatmul.mubr.bf16.gmra.mxu0 %v5577
  %v5696 = vpop.f32.mrf.mxu0
  %v5697 = vadd.f32 0.0, %v5696
  %v5698 = vpop.f32.mrf.mxu0
  %v5699 = vpop.f32.mrf.mxu0
  %v5700 = vadd.f32 0.0, %v5699
  %v5701 = vpop.f32.mrf.mxu0
  %5702 = vmatprep.mubr.bf16.mxu0 0
  %5703 = vmatmul.mubr.bf16.gmra.mxu0 %v5578
  %v5704 = vpop.f32.mrf.mxu0
  %v5705 = vadd.f32 0.0, %v5704
  %v5706 = vpop.f32.mrf.mxu0
  %v5707 = vpop.f32.mrf.mxu0
  %v5708 = vadd.f32 0.0, %v5707
  %v5709 = vpop.f32.mrf.mxu0
  %5710 = vmatprep.mubr.bf16.mxu0 0
  %5711 = vmatmul.mubr.bf16.gmra.mxu0 %v5579
  %v5712 = vpop.f32.mrf.mxu0
  %v5713 = vadd.f32 0.0, %v5712
  %v5714 = vpop.f32.mrf.mxu0
  %v5715 = vpop.f32.mrf.mxu0
  %v5716 = vadd.f32 0.0, %v5715
  %v5717 = vpop.f32.mrf.mxu0
  %5718 = vmatprep.mubr.bf16.mxu0 0
  %5719 = vmatmul.mubr.bf16.gmra.mxu0 %v5580
  %v5720 = vpop.f32.mrf.mxu0
  %v5721 = vadd.f32 0.0, %v5720
  %v5722 = vpop.f32.mrf.mxu0
  %v5723 = vpop.f32.mrf.mxu0
  %v5724 = vadd.f32 0.0, %v5723
  %v5725 = vpop.f32.mrf.mxu0
  %5726 = vmatprep.mubr.bf16.mxu0 0
  %5727 = vmatmul.mubr.bf16.gmra.mxu0 %v5581
  %v5728 = vpop.f32.mrf.mxu0
  %v5729 = vadd.f32 0.0, %v5728
  %v5730 = vpop.f32.mrf.mxu0
  %v5731 = vpop.f32.mrf.mxu0
  %v5732 = vadd.f32 0.0, %v5731
  %v5733 = vpop.f32.mrf.mxu0
  %5734 = vdwg.mxu0
  %v5735 = vadd.f32 %v5413, %v5673
  %v5736 = vadd.f32 %v5414, %v5676
  %v5737 = vadd.f32 %v5415, %v5681
  %v5738 = vadd.f32 %v5416, %v5684
  %v5739 = vadd.f32 %v5417, %v5689
  %v5740 = vadd.f32 %v5418, %v5692
  %v5741 = vadd.f32 %v5419, %v5697
  %v5742 = vadd.f32 %v5420, %v5700
  %v5743 = vadd.f32 %v5421, %v5705
  %v5744 = vadd.f32 %v5422, %v5708
  %v5745 = vadd.f32 %v5423, %v5713
  %v5746 = vadd.f32 %v5424, %v5716
  %v5747 = vadd.f32 %v5425, %v5721
  %v5748 = vadd.f32 %v5426, %v5724
  %v5749 = vadd.f32 %v5427, %v5729
  %v5750 = vadd.f32 %v5428, %v5732
  %v5751 = vlaneseq
  %v5752 = vshrl.u32 %v5751, 7
  %v5753 = vsub.s32 3, %v5752
  %v5754 = vrot.slane %v21, %v5753
  %v5755 = vadd.f32 %v5735, %v5754
  %v5756 = vadd.f32 %v5736, %v5754
  %v5757 = vadd.f32 %v5737, %v5754
  %v5758 = vadd.f32 %v5738, %v5754
  %v5759 = vadd.f32 %v5739, %v5754
  %v5760 = vadd.f32 %v5740, %v5754
  %v5761 = vadd.f32 %v5741, %v5754
  %v5762 = vadd.f32 %v5742, %v5754
  %v5763 = vadd.f32 %v5743, %v5754
  %v5764 = vadd.f32 %v5744, %v5754
  %v5765 = vadd.f32 %v5745, %v5754
  %v5766 = vadd.f32 %v5746, %v5754
  %v5767 = vadd.f32 %v5747, %v5754
  %v5768 = vadd.f32 %v5748, %v5754
  %v5769 = vadd.f32 %v5749, %v5754
  %v5770 = vadd.f32 %v5750, %v5754
  %v5771 = vadd.f32 %v5755, %v5756
  %v5772 = vadd.f32 %v5771, %v5757
  %v5773 = vadd.f32 %v5772, %v5758
  %v5774 = vadd.f32 %v5773, %v5759
  %v5775 = vadd.f32 %v5774, %v5760
  %v5776 = vadd.f32 %v5775, %v5761
  %v5777 = vadd.f32 %v5776, %v5762
  %v5778 = vadd.f32 %v5777, %v5763
  %v5779 = vadd.f32 %v5778, %v5764
  %v5780 = vadd.f32 %v5779, %v5765
  %v5781 = vadd.f32 %v5780, %v5766
  %v5782 = vadd.f32 %v5781, %v5767
  %v5783 = vadd.f32 %v5782, %v5768
  %v5784 = vadd.f32 %v5783, %v5769
  %v5785 = vadd.f32 %v5784, %v5770
  %v5786 = vrot.slane %v5785, 4
  %v5787 = vadd.f32 %v5785, %v5786
  %v5788 = vrot.slane %v5787, 2
  %v5789 = vadd.f32 %v5787, %v5788
  %v5790 = vrot.slane %v5789, 1
  %v5791 = vadd.f32 %v5789, %v5790
  %v5792 = vmul.f32 %v5791, 0.0078125
  %v5793 = vsub.f32 %v5755, %v5792
  %v5794 = vsub.f32 %v5756, %v5792
  %v5795 = vsub.f32 %v5757, %v5792
  %v5796 = vsub.f32 %v5758, %v5792
  %v5797 = vsub.f32 %v5759, %v5792
  %v5798 = vsub.f32 %v5760, %v5792
  %v5799 = vsub.f32 %v5761, %v5792
  %v5800 = vsub.f32 %v5762, %v5792
  %v5801 = vsub.f32 %v5763, %v5792
  %v5802 = vsub.f32 %v5764, %v5792
  %v5803 = vsub.f32 %v5765, %v5792
  %v5804 = vsub.f32 %v5766, %v5792
  %v5805 = vsub.f32 %v5767, %v5792
  %v5806 = vsub.f32 %v5768, %v5792
  %v5807 = vsub.f32 %v5769, %v5792
  %v5808 = vsub.f32 %v5770, %v5792
  %v5809 = vmul.f32 %v5793, %v5793
  %v5810 = vmul.f32 %v5794, %v5794
  %v5811 = vmul.f32 %v5795, %v5795
  %v5812 = vmul.f32 %v5796, %v5796
  %v5813 = vmul.f32 %v5797, %v5797
  %v5814 = vmul.f32 %v5798, %v5798
  %v5815 = vmul.f32 %v5799, %v5799
  %v5816 = vmul.f32 %v5800, %v5800
  %v5817 = vmul.f32 %v5801, %v5801
  %v5818 = vmul.f32 %v5802, %v5802
  %v5819 = vmul.f32 %v5803, %v5803
  %v5820 = vmul.f32 %v5804, %v5804
  %v5821 = vmul.f32 %v5805, %v5805
  %v5822 = vmul.f32 %v5806, %v5806
  %v5823 = vmul.f32 %v5807, %v5807
  %v5824 = vmul.f32 %v5808, %v5808
  %v5825 = vadd.f32 %v5809, %v5810
  %v5826 = vadd.f32 %v5825, %v5811
  %v5827 = vadd.f32 %v5826, %v5812
  %v5828 = vadd.f32 %v5827, %v5813
  %v5829 = vadd.f32 %v5828, %v5814
  %v5830 = vadd.f32 %v5829, %v5815
  %v5831 = vadd.f32 %v5830, %v5816
  %v5832 = vadd.f32 %v5831, %v5817
  %v5833 = vadd.f32 %v5832, %v5818
  %v5834 = vadd.f32 %v5833, %v5819
  %v5835 = vadd.f32 %v5834, %v5820
  %v5836 = vadd.f32 %v5835, %v5821
  %v5837 = vadd.f32 %v5836, %v5822
  %v5838 = vadd.f32 %v5837, %v5823
  %v5839 = vadd.f32 %v5838, %v5824
  %v5840 = vrot.slane %v5839, 4
  %v5841 = vadd.f32 %v5839, %v5840
  %v5842 = vrot.slane %v5841, 2
  %v5843 = vadd.f32 %v5841, %v5842
  %v5844 = vrot.slane %v5843, 1
  %v5845 = vadd.f32 %v5843, %v5844
  %v5846 = vmul.f32 %v5845, 0.0078125
  %v5847 = vlaneseq
  %v5848 = vshrl.u32 %v5847, 7
  %v5849 = vsub.s32 4, %v5848
  %v5850 = vrot.slane %v21, %v5849
  %v5851 = vmul.f32 %v5850, %v5793
  %v5852 = vmul.f32 %v5850, %v5794
  %v5853 = vmul.f32 %v5850, %v5795
  %v5854 = vmul.f32 %v5850, %v5796
  %v5855 = vmul.f32 %v5850, %v5797
  %v5856 = vmul.f32 %v5850, %v5798
  %v5857 = vmul.f32 %v5850, %v5799
  %v5858 = vmul.f32 %v5850, %v5800
  %v5859 = vmul.f32 %v5850, %v5801
  %v5860 = vmul.f32 %v5850, %v5802
  %v5861 = vmul.f32 %v5850, %v5803
  %v5862 = vmul.f32 %v5850, %v5804
  %v5863 = vmul.f32 %v5850, %v5805
  %v5864 = vmul.f32 %v5850, %v5806
  %v5865 = vmul.f32 %v5850, %v5807
  %v5866 = vmul.f32 %v5850, %v5808
  %v5867 = vadd.f32 %v5846, 1e-05
  %v5868 = vrsqrt.pop %v5867
  %v5869 = vmul.f32 %v5851, %v5868
  %v5870 = vmul.f32 %v5852, %v5868
  %v5871 = vmul.f32 %v5853, %v5868
  %v5872 = vmul.f32 %v5854, %v5868
  %v5873 = vmul.f32 %v5855, %v5868
  %v5874 = vmul.f32 %v5856, %v5868
  %v5875 = vmul.f32 %v5857, %v5868
  %v5876 = vmul.f32 %v5858, %v5868
  %v5877 = vmul.f32 %v5859, %v5868
  %v5878 = vmul.f32 %v5860, %v5868
  %v5879 = vmul.f32 %v5861, %v5868
  %v5880 = vmul.f32 %v5862, %v5868
  %v5881 = vmul.f32 %v5863, %v5868
  %v5882 = vmul.f32 %v5864, %v5868
  %v5883 = vmul.f32 %v5865, %v5868
  %v5884 = vmul.f32 %v5866, %v5868
  %v5885 = vlaneseq
  %v5886 = vshrl.u32 %v5885, 7
  %v5887 = vsub.s32 5, %v5886
  %v5888 = vrot.slane %v21, %v5887
  %v5889 = vadd.f32 %v5869, %v5888
  %v5890 = vadd.f32 %v5870, %v5888
  %v5891 = vadd.f32 %v5871, %v5888
  %v5892 = vadd.f32 %v5872, %v5888
  %v5893 = vadd.f32 %v5873, %v5888
  %v5894 = vadd.f32 %v5874, %v5888
  %v5895 = vadd.f32 %v5875, %v5888
  %v5896 = vadd.f32 %v5876, %v5888
  %v5897 = vadd.f32 %v5877, %v5888
  %v5898 = vadd.f32 %v5878, %v5888
  %v5899 = vadd.f32 %v5879, %v5888
  %v5900 = vadd.f32 %v5880, %v5888
  %v5901 = vadd.f32 %v5881, %v5888
  %v5902 = vadd.f32 %v5882, %v5888
  %v5903 = vadd.f32 %v5883, %v5888
  %v5904 = vadd.f32 %v5884, %v5888
  %v5905 = vld [vmem:[%s3] sm:$0x3]
  %v5906 = vld [vmem:[%s4 + $0x6] sm:$0x1]
  %v5907 = vlaneseq
  %v5908 = vshrl.u32 %v5907, 7
  %v5909 = vsub.s32 0, %v5908
  %v5910 = vrot.slane %v5906, %v5909
  %v5912 = vand.u32 %v5905, %v195
  %5914 = vmatprep.subr.bf16.mxu0 0
  %5915 = vmatpush1.bf16.msra.mxu0 0
  %5916 = vmatprep.subr.bf16.mxu0 0
  %5917 = vmatpush1.bf16.msra.mxu0 0
  %5918 = vmatprep.subr.bf16.mxu0 0
  %5919 = vmatpush1.bf16.msra.mxu0 0
  %5920 = vmatprep.subr.bf16.mxu0 0
  %5921 = vmatpush1.bf16.msra.mxu0 0
  %5922 = vmatprep.subr.bf16.mxu0 0
  %5923 = vmatpush1.bf16.msra.mxu0 0
  %5924 = vmatprep.subr.bf16.mxu0 0
  %5925 = vmatpush1.bf16.msra.mxu0 0
  %5926 = vmatprep.subr.bf16.mxu0 0
  %5927 = vmatpush1.bf16.msra.mxu0 0
  %5928 = vmatprep.subr.bf16.mxu0 0
  %5929 = vmatpush1.bf16.msra.mxu0 %v5912
  %5930 = vmatprep.subr.bf16.mxu0 0
  %5931 = vmatpush2.bf16.msra.mxu0 0
  %5932 = vmatprep.subr.bf16.mxu0 0
  %5933 = vmatpush2.bf16.msra.mxu0 0
  %5934 = vmatprep.subr.bf16.mxu0 0
  %5935 = vmatpush2.bf16.msra.mxu0 0
  %5936 = vmatprep.subr.bf16.mxu0 0
  %5937 = vmatpush2.bf16.msra.mxu0 0
  %5938 = vmatprep.subr.bf16.mxu0 0
  %5939 = vmatpush2.bf16.msra.mxu0 0
  %5940 = vmatprep.subr.bf16.mxu0 0
  %5941 = vmatpush2.bf16.msra.mxu0 0
  %5942 = vmatprep.subr.bf16.mxu0 0
  %5943 = vmatpush2.bf16.msra.mxu0 0
  %5944 = vmatprep.subr.bf16.mxu0 0
  %5945 = vmatpush2.bf16.msra.mxu0 0
  %5946 = vmatprep.mubr.bf16.mxu0 0
  %5947 = vmatmul.mubr.bf16.gmra.mxu0 %v1078
  %v5948 = vpop.f32.mrf.mxu0
  %v5949 = vadd.f32 %v5910, %v5948
  %v5950 = vpop.f32.mrf.mxu0
  %v5951 = vpop.f32.mrf.mxu0
  %v5952 = vadd.f32 %v5910, %v5951
  %v5953 = vpop.f32.mrf.mxu0
  %5954 = vmatprep.mubr.bf16.mxu0 0
  %5955 = vmatmul.mubr.bf16.gmra.mxu0 %v1081
  %v5956 = vpop.f32.mrf.mxu0
  %v5957 = vadd.f32 %v5910, %v5956
  %v5958 = vpop.f32.mrf.mxu0
  %v5959 = vpop.f32.mrf.mxu0
  %v5960 = vadd.f32 %v5910, %v5959
  %v5961 = vpop.f32.mrf.mxu0
  %5962 = vmatprep.mubr.bf16.mxu0 0
  %5963 = vmatmul.mubr.bf16.gmra.mxu0 %v1084
  %v5964 = vpop.f32.mrf.mxu0
  %v5965 = vadd.f32 %v5910, %v5964
  %v5966 = vpop.f32.mrf.mxu0
  %v5967 = vpop.f32.mrf.mxu0
  %v5968 = vadd.f32 %v5910, %v5967
  %v5969 = vpop.f32.mrf.mxu0
  %5970 = vmatprep.mubr.bf16.mxu0 0
  %5971 = vmatmul.mubr.bf16.gmra.mxu0 %v1087
  %v5972 = vpop.f32.mrf.mxu0
  %v5973 = vadd.f32 %v5910, %v5972
  %v5974 = vpop.f32.mrf.mxu0
  %v5975 = vpop.f32.mrf.mxu0
  %v5976 = vadd.f32 %v5910, %v5975
  %v5977 = vpop.f32.mrf.mxu0
  %5978 = vmatprep.mubr.bf16.mxu0 0
  %5979 = vmatmul.mubr.bf16.gmra.mxu0 %v1090
  %v5980 = vpop.f32.mrf.mxu0
  %v5981 = vadd.f32 %v5910, %v5980
  %v5982 = vpop.f32.mrf.mxu0
  %v5983 = vpop.f32.mrf.mxu0
  %v5984 = vadd.f32 %v5910, %v5983
  %v5985 = vpop.f32.mrf.mxu0
  %5986 = vmatprep.mubr.bf16.mxu0 0
  %5987 = vmatmul.mubr.bf16.gmra.mxu0 %v1093
  %v5988 = vpop.f32.mrf.mxu0
  %v5989 = vadd.f32 %v5910, %v5988
  %v5990 = vpop.f32.mrf.mxu0
  %v5991 = vpop.f32.mrf.mxu0
  %v5992 = vadd.f32 %v5910, %v5991
  %v5993 = vpop.f32.mrf.mxu0
  %5994 = vmatprep.mubr.bf16.mxu0 0
  %5995 = vmatmul.mubr.bf16.gmra.mxu0 %v1096
  %v5996 = vpop.f32.mrf.mxu0
  %v5997 = vadd.f32 %v5910, %v5996
  %v5998 = vpop.f32.mrf.mxu0
  %v5999 = vpop.f32.mrf.mxu0
  %v6000 = vadd.f32 %v5910, %v5999
  %v6001 = vpop.f32.mrf.mxu0
  %6002 = vmatprep.mubr.bf16.mxu0 0
  %6003 = vmatmul.mubr.bf16.gmra.mxu0 %v1099
  %v6004 = vpop.f32.mrf.mxu0
  %v6005 = vadd.f32 %v5910, %v6004
  %v6006 = vpop.f32.mrf.mxu0
  %v6007 = vpop.f32.mrf.mxu0
  %v6008 = vadd.f32 %v5910, %v6007
  %v6009 = vpop.f32.mrf.mxu0
  %6010 = vdwg.mxu0
  %v6011 = vadd.f32 %v5889, %v5949
  %v6012 = vadd.f32 %v5890, %v5952
  %v6013 = vadd.f32 %v5891, %v5957
  %v6014 = vadd.f32 %v5892, %v5960
  %v6015 = vadd.f32 %v5893, %v5965
  %v6016 = vadd.f32 %v5894, %v5968
  %v6017 = vadd.f32 %v5895, %v5973
  %v6018 = vadd.f32 %v5896, %v5976
  %v6019 = vadd.f32 %v5897, %v5981
  %v6020 = vadd.f32 %v5898, %v5984
  %v6021 = vadd.f32 %v5899, %v5989
  %v6022 = vadd.f32 %v5900, %v5992
  %v6023 = vadd.f32 %v5901, %v5997
  %v6024 = vadd.f32 %v5902, %v6000
  %v6025 = vadd.f32 %v5903, %v6005
  %v6026 = vadd.f32 %v5904, %v6008
  %v6027 = vmax.f32 %v6011, 0.0
  %v6028 = vmax.f32 %v6012, 0.0
  %v6029 = vmax.f32 %v6013, 0.0
  %v6030 = vmax.f32 %v6014, 0.0
  %v6031 = vmax.f32 %v6015, 0.0
  %v6032 = vmax.f32 %v6016, 0.0
  %v6033 = vmax.f32 %v6017, 0.0
  %v6034 = vmax.f32 %v6018, 0.0
  %v6035 = vmax.f32 %v6019, 0.0
  %v6036 = vmax.f32 %v6020, 0.0
  %v6037 = vmax.f32 %v6021, 0.0
  %v6038 = vmax.f32 %v6022, 0.0
  %v6039 = vmax.f32 %v6023, 0.0
  %v6040 = vmax.f32 %v6024, 0.0
  %v6041 = vmax.f32 %v6025, 0.0
  %v6042 = vmax.f32 %v6026, 0.0
  %6043 = vst [vmem:[%s5] sm:$0xff] %v6027
  %6044 = vst [vmem:[%s5 + $0x8] sm:$0xff] %v6028
  %6045 = vst [vmem:[%s5 + $0x10] sm:$0xff] %v6029
  %6046 = vst [vmem:[%s5 + $0x18] sm:$0xff] %v6030
  %6047 = vst [vmem:[%s5 + $0x20] sm:$0xff] %v6031
  %6048 = vst [vmem:[%s5 + $0x28] sm:$0xff] %v6032
  %6049 = vst [vmem:[%s5 + $0x30] sm:$0xff] %v6033
  %6050 = vst [vmem:[%s5 + $0x38] sm:$0xff] %v6034
  %6051 = vst [vmem:[%s5 + $0x40] sm:$0xff] %v6035
  %6052 = vst [vmem:[%s5 + $0x48] sm:$0xff] %v6036
  %6053 = vst [vmem:[%s5 + $0x50] sm:$0xff] %v6037
  %6054 = vst [vmem:[%s5 + $0x58] sm:$0xff] %v6038
  %6055 = vst [vmem:[%s5 + $0x60] sm:$0xff] %v6039
  %6056 = vst [vmem:[%s5 + $0x68] sm:$0xff] %v6040
  %6057 = vst [vmem:[%s5 + $0x70] sm:$0xff] %v6041
  %6058 = vst [vmem:[%s5 + $0x78] sm:$0xff] %v6042
  // Predicated region
  $region22: #{residual_block_forward.1} parent=0 // pred_check
    _
  $region23: #{residual_block_forward.1} parent=0 // pred_check_branch
    %6060 = sbr.rel (0) target = $region25
  $region24: #{residual_block_forward.1} parent=0 // pred_region
    _
  $region25: #{residual_block_forward.1} parent=0 // pred_fallthru
    _
  // Predicated region
  $region26: #{residual_block_forward.1} parent=0 // pred_check
    _
  $region27: #{residual_block_forward.1} parent=0 // pred_check_branch
    %6062 = sbr.rel (0) target = $region29
  $region28: #{residual_block_forward.1} parent=0 // pred_region
    _
  $region29: #{residual_block_forward.1} parent=0 // pred_fallthru
    _

</llo_original>
